<compile_context>
chip_gen: v6e
topology: v6e:2x2x1
jax: 0.10.0
libtpu: 0.0.40
codegen_flags: <defaults>
</compile_context>

<pallas_src>
import functools

import jax
import jax.numpy as jnp
from jax import lax
from jax.experimental import pallas as pl
from jax.experimental.pallas import tpu as pltpu

block_size = 512
dropout = 0.2
n_embed = 384


def _head_kernel(x_ref, wqkv_ref, o_ref,
                 q_scr, k_scr, v_scr, m_scr, l_scr, acc_scr, *, tq):
    # x_ref block:    (1, T, C)  bf16   (full sequence for this batch element)
    # wqkv_ref block: (C, 3H)    bf16   (fused [Wq*scale | Wk | Wv])
    # o_ref block:    (1, Tq, H) f32
    # scratch: q/k/v (T, H) bf16 persist across qi; m/l/acc are per-tile f32 state.
    qi = pl.program_id(1)
    H = q_scr.shape[-1]
    tk = tq  # square kv tiles so the diagonal is exactly one tile

    # ---- fused QKV projection, once per batch element ----------------------
    @pl.when(qi == 0)
    def _():
        x = x_ref[0]                                               # (T, C) bf16
        qkv = jnp.dot(x, wqkv_ref[...],
                      preferred_element_type=jnp.float32)          # (T, 3H) f32
        q_scr[...] = qkv[:, :H].astype(q_scr.dtype)        # already scaled via Wq
        k_scr[...] = qkv[:, H:2 * H].astype(k_scr.dtype)
        v_scr[...] = qkv[:, 2 * H:].astype(v_scr.dtype)

    # ---- init online-softmax state for this query tile ---------------------
    m_scr[...] = jnp.full_like(m_scr, -jnp.inf)
    l_scr[...] = jnp.zeros_like(l_scr)
    acc_scr[...] = jnp.zeros_like(acc_scr)

    q_start = pl.multiple_of(qi * tq, tq)
    q = q_scr[pl.ds(q_start, tq), :]                               # (Tq, H) bf16

    def kv_step(kv_idx, masked):
        k_start = pl.multiple_of(kv_idx * tk, tk)
        k = k_scr[pl.ds(k_start, tk), :]                           # (Tk, H) bf16
        v = v_scr[pl.ds(k_start, tk), :]                           # (Tk, H) bf16
        # contract over H without materializing k.T
        s = lax.dot_general(q, k, (((1,), (1,)), ((), ())),
                            preferred_element_type=jnp.float32)    # (Tq, Tk) f32
        if masked:
            # only the diagonal tile needs the causal mask; since tq == tk and
            # kv_idx == qi here, the mask is simply local_col <= local_row.
            row = lax.broadcasted_iota(jnp.int32, (tq, tk), 0)
            col = lax.broadcasted_iota(jnp.int32, (tq, tk), 1)
            s = jnp.where(col <= row, s, -jnp.inf)
        m_prev = m_scr[...]
        m_new = jnp.maximum(m_prev, jnp.max(s, axis=-1, keepdims=True))
        alpha = jnp.exp(m_prev - m_new)                            # (Tq, 1)
        p = jnp.exp(s - m_new)                                     # (Tq, Tk)
        l_scr[...] = alpha * l_scr[...] + jnp.sum(p, axis=-1, keepdims=True)
        acc_scr[...] = alpha * acc_scr[...] + jnp.dot(
            p.astype(v.dtype), v, preferred_element_type=jnp.float32)
        m_scr[...] = m_new

    # fully-visible kv tiles (strictly below the diagonal): no masking work
    @pl.loop(0, qi)
    def _(kv_idx):
        kv_step(kv_idx, masked=False)

    # diagonal tile: local triangular mask (diagonal itself always unmasked,
    # so the softmax denominator is never zero)
    kv_step(qi, masked=True)

    o_ref[0] = (acc_scr[...] * pl.reciprocal(l_scr[...], approx=True)
                ).astype(o_ref.dtype)


def head_forward(x, wk, wq, wv, *, tq=128):
    """x: (B, T, C) float32; wk/wq/wv: (C, H) float32 -> (B, T, H) float32."""
    B, T, C = x.shape
    H = wk.shape[1]
    scale = float(C) ** -0.5

    tq = min(tq, T)
    assert T % tq == 0, "sequence length must be divisible by the query tile"
    nq = T // tq

    # Fold the C**-0.5 score scale into Wq, fuse [Wq|Wk|Wv], feed bf16 to the
    # MXU (f32 accumulation happens inside the kernel).
    wqkv = jnp.concatenate([wq * scale, wk, wv], axis=1).astype(jnp.bfloat16)
    x_bf = x.astype(jnp.bfloat16)

    kernel = functools.partial(_head_kernel, tq=tq)

    return pl.pallas_call(
        kernel,
        out_shape=jax.ShapeDtypeStruct((B, T, H), x.dtype),
        grid_spec=pltpu.PrefetchScalarGridSpec(
            num_scalar_prefetch=0,
            grid=(B, nq),
            in_specs=[
                # full sequence per batch element; block index constant in qi,
                # so the pipeline does not re-DMA it across query tiles
                pl.BlockSpec((1, T, C), lambda b, qi: (b, 0, 0)),
                # fused weights, constant across the whole grid
                pl.BlockSpec((C, 3 * H), lambda b, qi: (0, 0)),
            ],
            out_specs=pl.BlockSpec((1, tq, H), lambda b, qi: (b, qi, 0)),
            scratch_shapes=[
                pltpu.VMEM((T, H), jnp.bfloat16),    # q (pre-scaled via Wq)
                pltpu.VMEM((T, H), jnp.bfloat16),    # k
                pltpu.VMEM((T, H), jnp.bfloat16),    # v
                pltpu.VMEM((tq, 1), jnp.float32),    # running max
                pltpu.VMEM((tq, 1), jnp.float32),    # running denom
                pltpu.VMEM((tq, H), jnp.float32),    # output accumulator
            ],
        ),
        compiler_params=pltpu.CompilerParams(
            # batch axis feeds both TensorCores; query-tile axis carries the
            # q/k/v scratch, so it must stay sequential ("arbitrary").
            dimension_semantics=("parallel", "arbitrary"),
        ),
    )(x_bf, wqkv)


if __name__ == "__main__":
    key = jax.random.PRNGKey(0)
    k_x, k_k, k_q, k_v = jax.random.split(key, 4)

    B, T, C = 2, 256, n_embed     # T <= block_size; exercises 2 query tiles
    head_size = 64
    assert T <= block_size

    # Deterministic parameter init mimicking nn.Linear(bias=False):
    # uniform(-1/sqrt(C), 1/sqrt(C)), stored as (C, head_size) (transposed).
    bound = 1.0 / (C ** 0.5)
    wk = jax.random.uniform(k_k, (C, head_size), jnp.float32, -bound, bound)
    wq = jax.random.uniform(k_q, (C, head_size), jnp.float32, -bound, bound)
    wv = jax.random.uniform(k_v, (C, head_size), jnp.float32, -bound, bound)

    x = jax.random.normal(k_x, (B, T, C), jnp.float32)

    out = head_forward(x, wk, wq, wv)
    jax.block_until_ready(out)

    # Pure-JAX f32 reference (eval-mode dropout = identity)
    k_ref = x @ wk
    q_ref = x @ wq
    v_ref = x @ wv
    wei = (q_ref @ jnp.swapaxes(k_ref, -2, -1)) * (C ** -0.5)
    mask = jnp.tril(jnp.ones((T, T), jnp.float32)) == 0
    wei = jnp.where(mask[None, :, :], -jnp.inf, wei)
    wei = jax.nn.softmax(wei, axis=-1)
    ref = wei @ v_ref

    assert out.shape == (B, T, head_size)
    # bf16 MXU operands + approx reciprocal => looser tolerance than pure f32
    assert jnp.allclose(out, ref, atol=2e-2, rtol=2e-2), (
        float(jnp.max(jnp.abs(out - ref))))

    print("KERNEL_OK")
</pallas_src>

<mosaic_0001>
module attributes {stable_mosaic.version = 11 : i64} {
  func.func @_head_kernel(%arg0: i32, %arg1: i32, %arg2: memref<1x256x384xbf16, #tpu.memory_space<vmem>>, %arg3: memref<384x192xbf16, #tpu.memory_space<vmem>>, %arg4: memref<1x128x64xf32, #tpu.memory_space<vmem>>, %arg5: memref<256x64xbf16, #tpu.memory_space<vmem>>, %arg6: memref<256x64xbf16, #tpu.memory_space<vmem>>, %arg7: memref<256x64xbf16, #tpu.memory_space<vmem>>, %arg8: memref<128x1xf32, #tpu.memory_space<vmem>>, %arg9: memref<128x1xf32, #tpu.memory_space<vmem>>, %arg10: memref<128x64xf32, #tpu.memory_space<vmem>>) attributes {dimension_semantics = [#tpu.dimension_semantics<parallel>, #tpu.dimension_semantics<arbitrary>], iteration_bounds = array<i64: 2, 2>, scalar_prefetch = 0 : i64, scratch_operands = 6 : i64, tpu.core_type = #tpu.core_type<tc>, window_params = [{transform_indices = @transform_0, window_bounds = array<i64: 1, 256, 384>}, {pipeline_mode = #tpu.pipeline_mode<synchronous>, transform_indices = @transform_1, window_bounds = array<i64: 384, 192>}, {transform_indices = @transform_2, window_bounds = array<i64: 1, 128, 64>}]} {
    %c0_i32 = arith.constant 0 : i32
    %0 = arith.cmpi eq, %arg1, %c0_i32 : i32
    %1 = arith.extui %0 : i1 to i32
    %c0_i32_0 = arith.constant 0 : i32
    %2 = arith.cmpi ne, %1, %c0_i32_0 : i32
    scf.if %2 {
      %c0_43 = arith.constant 0 : index
      %c0_44 = arith.constant 0 : index
      %c0_45 = arith.constant 0 : index
      %62 = vector.load %arg2[%c0_43, %c0_44, %c0_45] : memref<1x256x384xbf16, #tpu.memory_space<vmem>>, vector<1x256x384xbf16>
      %63 = vector.shape_cast %62 : vector<1x256x384xbf16> to vector<256x384xbf16>
      %c0_46 = arith.constant 0 : index
      %c0_47 = arith.constant 0 : index
      %64 = vector.load %arg3[%c0_46, %c0_47] : memref<384x192xbf16, #tpu.memory_space<vmem>>, vector<384x192xbf16>
      %cst_48 = arith.constant dense<0.000000e+00> : vector<256x192xf32>
      %65 = tpu.matmul %63, %64, %cst_48 {dimension_numbers = #tpu.dot_dimension_numbers<[1], [0], [0], [1], [0, 0, 1, 1], [], []>} : vector<256x384xbf16>, vector<384x192xbf16>, vector<256x192xf32> -> vector<256x192xf32>
      %66 = vector.extract_strided_slice %65 {offsets = [0, 0], sizes = [256, 64], strides = [1, 1]} : vector<256x192xf32> to vector<256x64xf32>
      %67 = arith.truncf %66 : vector<256x64xf32> to vector<256x64xbf16>
      %c0_49 = arith.constant 0 : index
      %c0_50 = arith.constant 0 : index
      %68 = vector.load %arg5[%c0_49, %c0_50] : memref<256x64xbf16, #tpu.memory_space<vmem>>, vector<256x64xbf16>
      tpu.vector_store %arg5[%c0_49, %c0_50], %67 {strides = array<i32>} : memref<256x64xbf16, #tpu.memory_space<vmem>>, vector<256x64xbf16>,
      %69 = vector.extract_strided_slice %65 {offsets = [0, 64], sizes = [256, 64], strides = [1, 1]} : vector<256x192xf32> to vector<256x64xf32>
      %70 = arith.truncf %69 : vector<256x64xf32> to vector<256x64xbf16>
      %c0_51 = arith.constant 0 : index
      %c0_52 = arith.constant 0 : index
      %71 = vector.load %arg6[%c0_51, %c0_52] : memref<256x64xbf16, #tpu.memory_space<vmem>>, vector<256x64xbf16>
      tpu.vector_store %arg6[%c0_51, %c0_52], %70 {strides = array<i32>} : memref<256x64xbf16, #tpu.memory_space<vmem>>, vector<256x64xbf16>,
      %72 = vector.extract_strided_slice %65 {offsets = [0, 128], sizes = [256, 64], strides = [1, 1]} : vector<256x192xf32> to vector<256x64xf32>
      %73 = arith.truncf %72 : vector<256x64xf32> to vector<256x64xbf16>
      %c0_53 = arith.constant 0 : index
      %c0_54 = arith.constant 0 : index
      %74 = vector.load %arg7[%c0_53, %c0_54] : memref<256x64xbf16, #tpu.memory_space<vmem>>, vector<256x64xbf16>
      tpu.vector_store %arg7[%c0_53, %c0_54], %73 {strides = array<i32>} : memref<256x64xbf16, #tpu.memory_space<vmem>>, vector<256x64xbf16>,
    } else {
    }
    %cst = arith.constant 0xFF800000 : f32
    %3 = vector.broadcast %cst : f32 to vector<128x1xf32>
    %c0 = arith.constant 0 : index
    %c0_1 = arith.constant 0 : index
    %4 = vector.load %arg8[%c0, %c0_1] : memref<128x1xf32, #tpu.memory_space<vmem>>, vector<128x1xf32>
    tpu.vector_store %arg8[%c0, %c0_1], %3 {strides = array<i32>} : memref<128x1xf32, #tpu.memory_space<vmem>>, vector<128x1xf32>,
    %cst_2 = arith.constant 0.000000e+00 : f32
    %5 = vector.broadcast %cst_2 : f32 to vector<128x1xf32>
    %c0_3 = arith.constant 0 : index
    %c0_4 = arith.constant 0 : index
    %6 = vector.load %arg9[%c0_3, %c0_4] : memref<128x1xf32, #tpu.memory_space<vmem>>, vector<128x1xf32>
    tpu.vector_store %arg9[%c0_3, %c0_4], %5 {strides = array<i32>} : memref<128x1xf32, #tpu.memory_space<vmem>>, vector<128x1xf32>,
    %cst_5 = arith.constant 0.000000e+00 : f32
    %7 = vector.broadcast %cst_5 : f32 to vector<128x64xf32>
    %c0_6 = arith.constant 0 : index
    %c0_7 = arith.constant 0 : index
    %8 = vector.load %arg10[%c0_6, %c0_7] : memref<128x64xf32, #tpu.memory_space<vmem>>, vector<128x64xf32>
    tpu.vector_store %arg10[%c0_6, %c0_7], %7 {strides = array<i32>} : memref<128x64xf32, #tpu.memory_space<vmem>>, vector<128x64xf32>,
    %c128_i32 = arith.constant 128 : i32
    %9 = arith.muli %arg1, %c128_i32 : i32
    %10 = tpu.assume_multiple %9, 128 : i32
    %11 = arith.index_cast %10 : i32 to index
    %c0_8 = arith.constant 0 : index
    %12 = vector.load %arg5[%11, %c0_8] : memref<256x64xbf16, #tpu.memory_space<vmem>>, vector<128x64xbf16>
    %c0_i32_9 = arith.constant 0 : i32
    %13 = arith.subi %arg1, %c0_i32_9 : i32
    %c1_i32 = arith.constant 1 : i32
    %c1_i32_10 = arith.constant 1 : i32
    %14 = arith.subi %c1_i32, %c1_i32_10 : i32
    %15 = arith.addi %13, %14 : i32
    %c1_i32_11 = arith.constant 1 : i32
    %16 = arith.divsi %15, %c1_i32_11 : i32
    %c1_i32_12 = arith.constant 1 : i32
    %c0_i32_13 = arith.constant 0 : i32
    %c0_i32_14 = arith.constant 0 : i32
    %17 = arith.subi %16, %c0_i32_14 : i32
    %18 = arith.addi %c0_i32_14, %17 : i32
    %c1_i32_15 = arith.constant 1 : i32
    scf.for %arg11 = %c0_i32_14 to %18 step %c1_i32_15  : i32 {
      %62 = arith.muli %arg11, %c1_i32_12 : i32
      %63 = arith.addi %c0_i32_13, %62 : i32
      %c128_i32_43 = arith.constant 128 : i32
      %64 = arith.muli %63, %c128_i32_43 : i32
      %65 = tpu.assume_multiple %64, 128 : i32
      %66 = arith.index_cast %65 : i32 to index
      %c0_44 = arith.constant 0 : index
      %67 = vector.load %arg6[%66, %c0_44] : memref<256x64xbf16, #tpu.memory_space<vmem>>, vector<128x64xbf16>
      %68 = arith.index_cast %65 : i32 to index
      %c0_45 = arith.constant 0 : index
      %69 = vector.load %arg7[%68, %c0_45] : memref<256x64xbf16, #tpu.memory_space<vmem>>, vector<128x64xbf16>
      %cst_46 = arith.constant dense<0.000000e+00> : vector<128x128xf32>
      %70 = tpu.matmul %12, %67, %cst_46 {dimension_numbers = #tpu.dot_dimension_numbers<[1], [1], [0], [0], [0, 0, 1, 0], [], []>} : vector<128x64xbf16>, vector<128x64xbf16>, vector<128x128xf32> -> vector<128x128xf32>
      %c0_47 = arith.constant 0 : index
      %c0_48 = arith.constant 0 : index
      %71 = vector.load %arg8[%c0_47, %c0_48] : memref<128x1xf32, #tpu.memory_space<vmem>>, vector<128x1xf32>
      %cst_49 = arith.constant dense<0xFF800000> : vector<128xf32>
      %72 = vector.multi_reduction <maximumf>, %70, %cst_49 [1] : vector<128x128xf32> to vector<128xf32>
      %73 = vector.shape_cast %72 : vector<128xf32> to vector<128x1xf32>
      %74 = arith.maximumf %71, %73 : vector<128x1xf32>
      %75 = arith.subf %71, %74 : vector<128x1xf32>
      %76 = math.exp %75 : vector<128x1xf32>
      %77 = vector.broadcast %74 : vector<128x1xf32> to vector<128x128xf32>
      %78 = arith.subf %70, %77 : vector<128x128xf32>
      %79 = math.exp %78 : vector<128x128xf32>
      %c0_50 = arith.constant 0 : index
      %c0_51 = arith.constant 0 : index
      %80 = vector.load %arg9[%c0_50, %c0_51] : memref<128x1xf32, #tpu.memory_space<vmem>>, vector<128x1xf32>
      %81 = arith.mulf %76, %80 : vector<128x1xf32>
      %cst_52 = arith.constant dense<0.000000e+00> : vector<128xf32>
      %82 = vector.multi_reduction <add>, %79, %cst_52 [1] : vector<128x128xf32> to vector<128xf32>
      %83 = vector.shape_cast %82 : vector<128xf32> to vector<128x1xf32>
      %84 = arith.addf %81, %83 : vector<128x1xf32>
      %c0_53 = arith.constant 0 : index
      %c0_54 = arith.constant 0 : index
      %85 = vector.load %arg9[%c0_53, %c0_54] : memref<128x1xf32, #tpu.memory_space<vmem>>, vector<128x1xf32>
      tpu.vector_store %arg9[%c0_53, %c0_54], %84 {strides = array<i32>} : memref<128x1xf32, #tpu.memory_space<vmem>>, vector<128x1xf32>,
      %c0_55 = arith.constant 0 : index
      %c0_56 = arith.constant 0 : index
      %86 = vector.load %arg10[%c0_55, %c0_56] : memref<128x64xf32, #tpu.memory_space<vmem>>, vector<128x64xf32>
      %87 = vector.broadcast %76 : vector<128x1xf32> to vector<128x64xf32>
      %88 = arith.mulf %87, %86 : vector<128x64xf32>
      %89 = arith.truncf %79 : vector<128x128xf32> to vector<128x128xbf16>
      %cst_57 = arith.constant dense<0.000000e+00> : vector<128x64xf32>
      %90 = tpu.matmul %89, %69, %cst_57 {dimension_numbers = #tpu.dot_dimension_numbers<[1], [0], [0], [1], [0, 0, 1, 1], [], []>} : vector<128x128xbf16>, vector<128x64xbf16>, vector<128x64xf32> -> vector<128x64xf32>
      %91 = arith.addf %88, %90 : vector<128x64xf32>
      %c0_58 = arith.constant 0 : index
      %c0_59 = arith.constant 0 : index
      %92 = vector.load %arg10[%c0_58, %c0_59] : memref<128x64xf32, #tpu.memory_space<vmem>>, vector<128x64xf32>
      tpu.vector_store %arg10[%c0_58, %c0_59], %91 {strides = array<i32>} : memref<128x64xf32, #tpu.memory_space<vmem>>, vector<128x64xf32>,
      %c0_60 = arith.constant 0 : index
      %c0_61 = arith.constant 0 : index
      %93 = vector.load %arg8[%c0_60, %c0_61] : memref<128x1xf32, #tpu.memory_space<vmem>>, vector<128x1xf32>
      tpu.vector_store %arg8[%c0_60, %c0_61], %74 {strides = array<i32>} : memref<128x1xf32, #tpu.memory_space<vmem>>, vector<128x1xf32>,
    }
    %c128_i32_16 = arith.constant 128 : i32
    %19 = arith.muli %arg1, %c128_i32_16 : i32
    %20 = tpu.assume_multiple %19, 128 : i32
    %21 = arith.index_cast %20 : i32 to index
    %c0_17 = arith.constant 0 : index
    %22 = vector.load %arg6[%21, %c0_17] : memref<256x64xbf16, #tpu.memory_space<vmem>>, vector<128x64xbf16>
    %23 = arith.index_cast %20 : i32 to index
    %c0_18 = arith.constant 0 : index
    %24 = vector.load %arg7[%23, %c0_18] : memref<256x64xbf16, #tpu.memory_space<vmem>>, vector<128x64xbf16>
    %cst_19 = arith.constant dense<0.000000e+00> : vector<128x128xf32>
    %25 = tpu.matmul %12, %22, %cst_19 {dimension_numbers = #tpu.dot_dimension_numbers<[1], [1], [0], [0], [0, 0, 1, 0], [], []>} : vector<128x64xbf16>, vector<128x64xbf16>, vector<128x128xf32> -> vector<128x128xf32>
    %26 = tpu.iota {dimensions = array<i32: 0>} : vector<128x128xi32>
    %27 = tpu.iota {dimensions = array<i32: 1>} : vector<128x128xi32>
    %28 = arith.cmpi sle, %27, %26 : vector<128x128xi32>
    %cst_20 = arith.constant 0xFF800000 : f32
    %29 = vector.broadcast %cst_20 : f32 to vector<128x128xf32>
    %30 = arith.select %28, %25, %29 : vector<128x128xi1>, vector<128x128xf32>
    %c0_21 = arith.constant 0 : index
    %c0_22 = arith.constant 0 : index
    %31 = vector.load %arg8[%c0_21, %c0_22] : memref<128x1xf32, #tpu.memory_space<vmem>>, vector<128x1xf32>
    %cst_23 = arith.constant dense<0xFF800000> : vector<128xf32>
    %32 = vector.multi_reduction <maximumf>, %30, %cst_23 [1] : vector<128x128xf32> to vector<128xf32>
    %33 = vector.shape_cast %32 : vector<128xf32> to vector<128x1xf32>
    %34 = arith.maximumf %31, %33 : vector<128x1xf32>
    %35 = arith.subf %31, %34 : vector<128x1xf32>
    %36 = math.exp %35 : vector<128x1xf32>
    %37 = vector.broadcast %34 : vector<128x1xf32> to vector<128x128xf32>
    %38 = arith.subf %30, %37 : vector<128x128xf32>
    %39 = math.exp %38 : vector<128x128xf32>
    %c0_24 = arith.constant 0 : index
    %c0_25 = arith.constant 0 : index
    %40 = vector.load %arg9[%c0_24, %c0_25] : memref<128x1xf32, #tpu.memory_space<vmem>>, vector<128x1xf32>
    %41 = arith.mulf %36, %40 : vector<128x1xf32>
    %cst_26 = arith.constant dense<0.000000e+00> : vector<128xf32>
    %42 = vector.multi_reduction <add>, %39, %cst_26 [1] : vector<128x128xf32> to vector<128xf32>
    %43 = vector.shape_cast %42 : vector<128xf32> to vector<128x1xf32>
    %44 = arith.addf %41, %43 : vector<128x1xf32>
    %c0_27 = arith.constant 0 : index
    %c0_28 = arith.constant 0 : index
    %45 = vector.load %arg9[%c0_27, %c0_28] : memref<128x1xf32, #tpu.memory_space<vmem>>, vector<128x1xf32>
    tpu.vector_store %arg9[%c0_27, %c0_28], %44 {strides = array<i32>} : memref<128x1xf32, #tpu.memory_space<vmem>>, vector<128x1xf32>,
    %c0_29 = arith.constant 0 : index
    %c0_30 = arith.constant 0 : index
    %46 = vector.load %arg10[%c0_29, %c0_30] : memref<128x64xf32, #tpu.memory_space<vmem>>, vector<128x64xf32>
    %47 = vector.broadcast %36 : vector<128x1xf32> to vector<128x64xf32>
    %48 = arith.mulf %47, %46 : vector<128x64xf32>
    %49 = arith.truncf %39 : vector<128x128xf32> to vector<128x128xbf16>
    %cst_31 = arith.constant dense<0.000000e+00> : vector<128x64xf32>
    %50 = tpu.matmul %49, %24, %cst_31 {dimension_numbers = #tpu.dot_dimension_numbers<[1], [0], [0], [1], [0, 0, 1, 1], [], []>} : vector<128x128xbf16>, vector<128x64xbf16>, vector<128x64xf32> -> vector<128x64xf32>
    %51 = arith.addf %48, %50 : vector<128x64xf32>
    %c0_32 = arith.constant 0 : index
    %c0_33 = arith.constant 0 : index
    %52 = vector.load %arg10[%c0_32, %c0_33] : memref<128x64xf32, #tpu.memory_space<vmem>>, vector<128x64xf32>
    tpu.vector_store %arg10[%c0_32, %c0_33], %51 {strides = array<i32>} : memref<128x64xf32, #tpu.memory_space<vmem>>, vector<128x64xf32>,
    %c0_34 = arith.constant 0 : index
    %c0_35 = arith.constant 0 : index
    %53 = vector.load %arg8[%c0_34, %c0_35] : memref<128x1xf32, #tpu.memory_space<vmem>>, vector<128x1xf32>
    tpu.vector_store %arg8[%c0_34, %c0_35], %34 {strides = array<i32>} : memref<128x1xf32, #tpu.memory_space<vmem>>, vector<128x1xf32>,
    %c0_36 = arith.constant 0 : index
    %c0_37 = arith.constant 0 : index
    %54 = vector.load %arg10[%c0_36, %c0_37] : memref<128x64xf32, #tpu.memory_space<vmem>>, vector<128x64xf32>
    %c0_38 = arith.constant 0 : index
    %c0_39 = arith.constant 0 : index
    %55 = vector.load %arg9[%c0_38, %c0_39] : memref<128x1xf32, #tpu.memory_space<vmem>>, vector<128x1xf32>
    %56 = tpu.reciprocal %55 {approx = true} : vector<128x1xf32> -> vector<128x1xf32>
    %57 = vector.broadcast %56 : vector<128x1xf32> to vector<128x64xf32>
    %58 = arith.mulf %54, %57 : vector<128x64xf32>
    %c0_40 = arith.constant 0 : index
    %c0_41 = arith.constant 0 : index
    %c0_42 = arith.constant 0 : index
    %59 = vector.load %arg4[%c0_40, %c0_41, %c0_42] : memref<1x128x64xf32, #tpu.memory_space<vmem>>, vector<1x128x64xf32>
    %60 = vector.shape_cast %59 : vector<1x128x64xf32> to vector<128x64xf32>
    %61 = vector.shape_cast %58 : vector<128x64xf32> to vector<1x128x64xf32>
    tpu.vector_store %arg4[%c0_40, %c0_41, %c0_42], %61 {strides = array<i32>} : memref<1x128x64xf32, #tpu.memory_space<vmem>>, vector<1x128x64xf32>,
    return
  }
  func.func @transform_0(%arg0: i32, %arg1: i32) -> (i32, i32, i32) {
    %c0_i32 = arith.constant 0 : i32
    %c0_i32_0 = arith.constant 0 : i32
    %c0_i32_1 = arith.constant 0 : i32
    return %arg0, %c0_i32, %c0_i32_0 : i32, i32, i32
  }
  func.func @transform_1(%arg0: i32, %arg1: i32) -> (i32, i32) {
    %c0_i32 = arith.constant 0 : i32
    %c0_i32_0 = arith.constant 0 : i32
    %c0_i32_1 = arith.constant 0 : i32
    return %c0_i32, %c0_i32_0 : i32, i32
  }
  func.func @transform_2(%arg0: i32, %arg1: i32) -> (i32, i32, i32) {
    %c0_i32 = arith.constant 0 : i32
    %c0_i32_0 = arith.constant 0 : i32
    return %arg0, %arg1, %c0_i32 : i32, i32, i32
  }
}

</mosaic_0001>

<llo_original>
// kernel: tpu_custom_call.1
$region0: #{tpu_custom_call.1}
  #allocation0 [shape = 'u32[]', space=smem, size = 0x4, offset = 0x4, fixed_abs, tag = 'smem constant byte address 0x4 - core index']
  #allocation1 [shape = 'u32[144,128]{1,0:T(1,128)}', space=vmem, size = 0x12000, scoped, tag = 'internal scratch']
  #allocation2 [shape = 'bf16[256,64]{1,0:T(8,128)(2,1)}', space=vmem, size = 0x10000, scoped, tag = 'scratch operand']
  #allocation3 [shape = 'bf16[256,64]{1,0:T(8,128)(2,1)}', space=vmem, size = 0x10000, scoped, tag = 'scratch operand']
  #allocation4 [shape = 'bf16[256,64]{1,0:T(8,128)(2,1)}', space=vmem, size = 0x10000, scoped, tag = 'scratch operand']
  #allocation5 [shape = 'f32[128,1]{1,0:T(8,128)}', space=vmem, size = 0x10000, scoped, tag = 'scratch operand']
  #allocation6 [shape = 'f32[128,1]{1,0:T(8,128)}', space=vmem, size = 0x10000, scoped, tag = 'scratch operand']
  #allocation7 [shape = 'f32[128,64]{1,0:T(8,128)}', space=vmem, size = 0x10000, scoped, tag = 'scratch operand']
  %s0 = inlined_call_operand.hbm [shape: bf16[2,256,384], index: 0, kind: input, shape index: {}]
  %s1 = inlined_call_operand.vmem [shape: bf16[384,192], index: 1, kind: input, shape index: {}]
  %s2 = inlined_call_operand.vmem [shape: f32[2,256,64], index: 2, kind: output, shape index: {}]
  %s3 = sld [smem:[#allocation0]]
  $region56: #{tpu_custom_call.1} parent=0
    _
  %s5 = ssub.s32 1, %s3
  %s6 = scalar_select 0, %s5, %s3
  $region1: #{tpu_custom_call.1} parent=0
    #allocation8 [shape = 'u8[393216]{0}', space=vmem, size = 0x60000, scoped, tag = 'input window, operand 0']
    #allocation9 [shape = 's32[2]{0}', space=sflag, size = 0x8, scoped, tag = 'scoped memory for tpu_custom_call.1']
    %7 = vsyncpa [#allocation9], 0
    %s8 = scalar_lea.sflag [#allocation9], 1
    %9 = vsyncpa %s8, 0
    loop: start=0, step=1, limit=6
    $region2: #{tpu_custom_call.1} parent=1 // loop_pre_header
      _
    $region3: #{tpu_custom_call.1} parent=1 // loop_header
      %s11 = sphi 0, %s15
      %p12 = scmp.ge.s32.totalorder %s11, 6
      %s18 = sphi 0, %s30
      %s19 = sphi 0, %s26
      %s20 = sphi 0, %s18
      %s21 = sphi 0, %s19
      %s22 = sphi 0, %s20
      %s23 = sphi 0, %s21
      %s33 = sphi 0, %s35
      %s36 = sphi 0, %s33
      %s37 = sphi 0, %s36
      %s53 = sphi 0, %s37
      %s57 = sphi 0, %s57
      %s59 = sphi 0, %s57
      %s60 = sphi 0, %s59
      %s74 = sphi 0, %s60
      %s82 = sphi 0, %s84
      %s85 = sphi 0, %s82
      %s86 = sphi 0, %s85
      %s102 = sphi 0, %s86
    $region4: #{tpu_custom_call.1} parent=1 // loop_header_branch
      %14 = sbr.rel (%p12) target = $region8
    $region5: #{tpu_custom_call.1} parent=1 // loop_body
      %s16 = ssub.s32 %s11, 1
      %s17 = ssub.s32 %s11, 2
      %s24 = sadd.s32 1, %s19
      %p25 = scmp.ge.s32.totalorder %s24, 2
      %s26 = scalar_select %p25, 0, %s24
      %s27 = sadd.s32 1, %s18
      %s28 = scalar_select %p25, %s27, %s18
      %p29 = scmp.ge.s32.totalorder %s28, 2
      %s30 = scalar_select %p29, 0, %s28
      %s31 = ssub.s32 %s18, %s30
      %p32 = scmp.eq.s32.totalorder %s31, 0
      %s34 = sadd.s32 %s33, 1
      %s35 = scalar_select %p32, %s33, %s34
      %p38 = pneg %p32
      %p39 = scmp.eq.s32.totalorder %s11, 3
      %p40 = por %p38, %p39
      %p41 = scmp.ne.s32.totalorder %s33, %s36
      %p42 = scmp.eq.s32.totalorder %s11, 0
      %p43 = por %p41, %p42
      %p44 = scmp.ne.s32.totalorder %s33, %s36
      %p45 = scmp.eq.s32.totalorder %s16, 3
      %p46 = por %p44, %p45
      %p47 = scmp.ne.s32.totalorder %s36, %s37
      %p48 = scmp.eq.s32.totalorder %s16, 0
      %p49 = por %p47, %p48
      %p50 = scmp.ne.s32.totalorder %s36, %s37
      %p51 = scmp.eq.s32.totalorder %s17, 3
      %p52 = por %p50, %p51
      %p54 = scmp.ne.s32.totalorder %s37, %s53
      %p55 = scmp.eq.s32.totalorder %s17, 0
      %p56 = por %p54, %p55
      %s58 = sadd.s32 %s57, 1
      %p61 = scmp.eq.s32.totalorder %s11, 3
      %p62 = scmp.ne.s32.totalorder %s57, %s59
      %p63 = scmp.eq.s32.totalorder %s11, 0
      %p64 = por %p62, %p63
      %p65 = scmp.ne.s32.totalorder %s57, %s59
      %p66 = scmp.eq.s32.totalorder %s16, 3
      %p67 = por %p65, %p66
      %p68 = scmp.ne.s32.totalorder %s59, %s60
      %p69 = scmp.eq.s32.totalorder %s16, 0
      %p70 = por %p68, %p69
      %p71 = scmp.ne.s32.totalorder %s59, %s60
      %p72 = scmp.eq.s32.totalorder %s17, 3
      %p73 = por %p71, %p72
      %p75 = scmp.ne.s32.totalorder %s60, %s74
      %p76 = scmp.eq.s32.totalorder %s17, 0
      %p77 = por %p75, %p76
      %s78 = ssub.s32 %s18, %s30
      %s79 = ssub.s32 %s19, %s26
      %s80 = sor.u32 %s78, %s79
      %p81 = scmp.eq.s32.totalorder %s80, 0
      %s83 = sadd.s32 %s82, 1
      %s84 = scalar_select %p81, %s82, %s83
      %p87 = pneg %p81
      %p88 = scmp.eq.s32.totalorder %s11, 3
      %p89 = por %p87, %p88
      %p90 = scmp.ne.s32.totalorder %s82, %s85
      %p91 = scmp.eq.s32.totalorder %s11, 0
      %p92 = por %p90, %p91
      %p93 = scmp.ne.s32.totalorder %s82, %s85
      %p94 = scmp.eq.s32.totalorder %s16, 3
      %p95 = por %p93, %p94
      %p96 = scmp.ne.s32.totalorder %s85, %s86
      %p97 = scmp.eq.s32.totalorder %s16, 0
      %p98 = por %p96, %p97
      %p99 = scmp.ne.s32.totalorder %s85, %s86
      %p100 = scmp.eq.s32.totalorder %s17, 3
      %p101 = por %p99, %p100
      %p103 = scmp.ne.s32.totalorder %s86, %s102
      %p104 = scmp.eq.s32.totalorder %s17, 0
      %p105 = por %p103, %p104
      %p106 = scmp.le.s32.totalorder 1, %s11
      %p107 = scmp.lt.s32.totalorder %s11, 5
      %p108 = pnand %p106, %p107
      %p109 = pneg %p108
      // Predicated region
      $region9: #{tpu_custom_call.1} parent=5 // pred_check
        _
      $region10: #{tpu_custom_call.1} parent=5 // pred_check_branch
        %111 = sbr.rel (%p108) target = $region12
      $region11: #{tpu_custom_call.1} parent=5 // pred_region
        %s112 = ssub.s32 %s11, 1
        // Predicated region
        $region13: #{tpu_custom_call.1} parent=11 // pred_check
          %p113 = pneg %p70
        $region14: #{tpu_custom_call.1} parent=11 // pred_check_branch
          %115 = sbr.rel (%p113) target = $region16
        $region15: #{tpu_custom_call.1} parent=11 // pred_region
          _
        $region16: #{tpu_custom_call.1} parent=11 // pred_fallthru
          _
      $region12: #{tpu_custom_call.1} parent=5 // pred_fallthru
        _
      %p116 = scmp.lt.s32.totalorder %s11, 4
      // Predicated region
      $region17: #{tpu_custom_call.1} parent=5 // pred_check
        %p117 = pneg %p116
      $region18: #{tpu_custom_call.1} parent=5 // pred_check_branch
        %119 = sbr.rel (%p117) target = $region20
      $region19: #{tpu_custom_call.1} parent=5 // pred_region
        // Predicated region
        $region21: #{tpu_custom_call.1} parent=19 // pred_check
          %p120 = pneg %p43
        $region22: #{tpu_custom_call.1} parent=19 // pred_check_branch
          %122 = sbr.rel (%p120) target = $region24
        $region23: #{tpu_custom_call.1} parent=19 // pred_region
          %s123 = sand.u32 %s33, 1
          %s124 = scalar_lea.sflag [#allocation9], %s123
          %s125 = sand.u32 %s33, 1
          %s126 = smul.addr %s125, 384
          %s127 = scalar_lea.vmem [#allocation8], %s126
          %s129 = ssub.s32 6144, 6144
          %130 = vsyncadd %s124, %s129
          %s131 = smul.addr %s18, 96
          %s132 = smul.addr %s131, 64
          %s133 = scalar_lea.hbm %s0, %s132
          %s134 = sshll.u32 %s127, 4
          %s135 = int_to_ptr.vmem [resolvable:$true] %s134
          %140 = dma.hbm_to_vmem [thread:$0]  %s133, 6144, %s135, %s124, 192, 192, 12
        $region24: #{tpu_custom_call.1} parent=19 // pred_fallthru
          _
      $region20: #{tpu_custom_call.1} parent=5 // pred_fallthru
        _
      %p141 = scmp.le.s32.totalorder 1, %s11
      %p142 = scmp.lt.s32.totalorder %s11, 5
      %p143 = pnand %p141, %p142
      %p144 = pneg %p143
      // Predicated region
      $region25: #{tpu_custom_call.1} parent=5 // pred_check
        _
      $region26: #{tpu_custom_call.1} parent=5 // pred_check_branch
        %146 = sbr.rel (%p143) target = $region28
      $region27: #{tpu_custom_call.1} parent=5 // pred_region
        %s147 = ssub.s32 %s11, 1
        %s148 = sand.u32 %s36, 1
        %s149 = scalar_lea.sflag [#allocation9], %s148
        %s150 = sand.u32 %s36, 1
        %s151 = smul.addr %s150, 384
        %s152 = scalar_lea.vmem [#allocation8], %s151
        // Predicated region
        $region29: #{tpu_custom_call.1} parent=27 // pred_check
          %p153 = pneg %p49
        $region30: #{tpu_custom_call.1} parent=27 // pred_check_branch
          %155 = sbr.rel (%p153) target = $region32
        $region31: #{tpu_custom_call.1} parent=27 // pred_region
          %156 = dma.done %s149, 6144
        $region32: #{tpu_custom_call.1} parent=27 // pred_fallthru
          _
        %s157 = sand.u32 %s36, 1
        %s158 = scalar_lea.sflag [#allocation9], %s157
        %s159 = sand.u32 %s36, 1
        %s160 = smul.addr %s159, 384
        %s161 = scalar_lea.vmem [#allocation8], %s160
        %p162 = pneg %p49
        %p163 = pneg %p46
        %p164 = pneg %p70
        %p165 = pneg %p67
        %p166 = pneg %p98
        %p167 = pneg %p95
        %s168 = smul.u32 16, %s21
        %p169 = scmp.lt.s32.totalorder %s20, 1
        %s170 = scalar_select %p169, %s20, 1
        %p171 = scmp.lt.s32.totalorder %s168, 31
        %s172 = scalar_select %p171, %s168, 31
        %s173 = smul.addr %s170, 32
        %s174 = sadd.s32 %s172, %s173
        %s175 = smul.addr %s174, 8
        %s176 = scalar_lea.vmem %s2, %s175
        %s177 = smul.u32 16, %s21
        %p178 = scmp.lt.s32.totalorder %s20, 1
        %s179 = scalar_select %p178, %s20, 1
        %p180 = scmp.lt.s32.totalorder %s177, 31
        %s181 = scalar_select %p180, %s177, 31
        %s182 = smul.addr %s179, 32
        %s183 = sadd.s32 %s181, %s182
        %s184 = smul.addr %s183, 8
        %s185 = scalar_lea.vmem %s2, %s184
        %s186 = smul.u32 16, %s21
        %p188 = scmp.eq.s32.totalorder %s21, 0
        // Predicated region
        $region33: #{tpu_custom_call.1} parent=27 // pred_check
          %p189 = pneg %p188
        $region34: #{tpu_custom_call.1} parent=27 // pred_check_branch
          %191 = sbr.rel (%p189) target = $region36
        $region35: #{tpu_custom_call.1} parent=27 // pred_region
          %v192 = vld [vmem:[%s152] sm:$0xff]
          %v193 = vld [vmem:[%s152 + $0x8] sm:$0xf]
          %v194 = vld [vmem:[%s152 + $0xc] sm:$0xff]
          %v195 = vld [vmem:[%s152 + $0x14] sm:$0xf]
          %v196 = vld [vmem:[%s152 + $0x18] sm:$0xff]
          %v197 = vld [vmem:[%s152 + $0x20] sm:$0xf]
          %v198 = vld [vmem:[%s152 + $0x24] sm:$0xff]
          %v199 = vld [vmem:[%s152 + $0x2c] sm:$0xf]
          %v200 = vld [vmem:[%s152 + $0x30] sm:$0xff]
          %v201 = vld [vmem:[%s152 + $0x38] sm:$0xf]
          %v202 = vld [vmem:[%s152 + $0x3c] sm:$0xff]
          %v203 = vld [vmem:[%s152 + $0x44] sm:$0xf]
          %v204 = vld [vmem:[%s152 + $0x48] sm:$0xff]
          %v205 = vld [vmem:[%s152 + $0x50] sm:$0xf]
          %v206 = vld [vmem:[%s152 + $0x54] sm:$0xff]
          %v207 = vld [vmem:[%s152 + $0x5c] sm:$0xf]
          %v208 = vld [vmem:[%s152 + $0x60] sm:$0xff]
          %v209 = vld [vmem:[%s152 + $0x68] sm:$0xf]
          %v210 = vld [vmem:[%s152 + $0x6c] sm:$0xff]
          %v211 = vld [vmem:[%s152 + $0x74] sm:$0xf]
          %v212 = vld [vmem:[%s152 + $0x78] sm:$0xff]
          %v213 = vld [vmem:[%s152 + $0x80] sm:$0xf]
          %v214 = vld [vmem:[%s152 + $0x84] sm:$0xff]
          %v215 = vld [vmem:[%s152 + $0x8c] sm:$0xf]
          %v216 = vld [vmem:[%s152 + $0x90] sm:$0xff]
          %v217 = vld [vmem:[%s152 + $0x98] sm:$0xf]
          %v218 = vld [vmem:[%s152 + $0x9c] sm:$0xff]
          %v219 = vld [vmem:[%s152 + $0xa4] sm:$0xf]
          %v220 = vld [vmem:[%s152 + $0xa8] sm:$0xff]
          %v221 = vld [vmem:[%s152 + $0xb0] sm:$0xf]
          %v222 = vld [vmem:[%s152 + $0xb4] sm:$0xff]
          %v223 = vld [vmem:[%s152 + $0xbc] sm:$0xf]
          %v224 = vld [vmem:[%s152 + $0xc0] sm:$0xff]
          %v225 = vld [vmem:[%s152 + $0xc8] sm:$0xf]
          %v226 = vld [vmem:[%s152 + $0xcc] sm:$0xff]
          %v227 = vld [vmem:[%s152 + $0xd4] sm:$0xf]
          %v228 = vld [vmem:[%s152 + $0xd8] sm:$0xff]
          %v229 = vld [vmem:[%s152 + $0xe0] sm:$0xf]
          %v230 = vld [vmem:[%s152 + $0xe4] sm:$0xff]
          %v231 = vld [vmem:[%s152 + $0xec] sm:$0xf]
          %v232 = vld [vmem:[%s152 + $0xf0] sm:$0xff]
          %v233 = vld [vmem:[%s152 + $0xf8] sm:$0xf]
          %v234 = vld [vmem:[%s152 + $0xfc] sm:$0xff]
          %v235 = vld [vmem:[%s152 + $0x104] sm:$0xf]
          %v236 = vld [vmem:[%s152 + $0x108] sm:$0xff]
          %v237 = vld [vmem:[%s152 + $0x110] sm:$0xf]
          %v238 = vld [vmem:[%s152 + $0x114] sm:$0xff]
          %v239 = vld [vmem:[%s152 + $0x11c] sm:$0xf]
          %v240 = vld [vmem:[%s152 + $0x120] sm:$0xff]
          %v241 = vld [vmem:[%s152 + $0x128] sm:$0xf]
          %v242 = vld [vmem:[%s152 + $0x12c] sm:$0xff]
          %v243 = vld [vmem:[%s152 + $0x134] sm:$0xf]
          %v244 = vld [vmem:[%s152 + $0x138] sm:$0xff]
          %v245 = vld [vmem:[%s152 + $0x140] sm:$0xf]
          %v246 = vld [vmem:[%s152 + $0x144] sm:$0xff]
          %v247 = vld [vmem:[%s152 + $0x14c] sm:$0xf]
          %v248 = vld [vmem:[%s152 + $0x150] sm:$0xff]
          %v249 = vld [vmem:[%s152 + $0x158] sm:$0xf]
          %v250 = vld [vmem:[%s152 + $0x15c] sm:$0xff]
          %v251 = vld [vmem:[%s152 + $0x164] sm:$0xf]
          %v252 = vld [vmem:[%s152 + $0x168] sm:$0xff]
          %v253 = vld [vmem:[%s152 + $0x170] sm:$0xf]
          %v254 = vld [vmem:[%s152 + $0x174] sm:$0xff]
          %v255 = vld [vmem:[%s152 + $0x17c] sm:$0xf]
          %v256 = vld [vmem:[%s1] sm:$0xff]
          %v257 = vld [vmem:[%s1 + $0x8] sm:$0xff]
          %v258 = vld [vmem:[%s1 + $0x10] sm:$0xff]
          %v259 = vld [vmem:[%s1 + $0x18] sm:$0xff]
          %v260 = vld [vmem:[%s1 + $0x20] sm:$0xff]
          %v261 = vld [vmem:[%s1 + $0x28] sm:$0xff]
          %v262 = vld [vmem:[%s1 + $0x30] sm:$0xff]
          %v263 = vld [vmem:[%s1 + $0x38] sm:$0xff]
          %v264 = vld [vmem:[%s1 + $0x40] sm:$0xff]
          %v265 = vld [vmem:[%s1 + $0x48] sm:$0xff]
          %v266 = vld [vmem:[%s1 + $0x50] sm:$0xff]
          %v267 = vld [vmem:[%s1 + $0x58] sm:$0xff]
          %v268 = vld [vmem:[%s1 + $0x60] sm:$0xff]
          %v269 = vld [vmem:[%s1 + $0x68] sm:$0xff]
          %v270 = vld [vmem:[%s1 + $0x70] sm:$0xff]
          %v271 = vld [vmem:[%s1 + $0x78] sm:$0xff]
          %v272 = vld [vmem:[%s1 + $0x80] sm:$0xff]
          %v273 = vld [vmem:[%s1 + $0x88] sm:$0xff]
          %v274 = vld [vmem:[%s1 + $0x90] sm:$0xff]
          %v275 = vld [vmem:[%s1 + $0x98] sm:$0xff]
          %v276 = vld [vmem:[%s1 + $0xa0] sm:$0xff]
          %v277 = vld [vmem:[%s1 + $0xa8] sm:$0xff]
          %v278 = vld [vmem:[%s1 + $0xb0] sm:$0xff]
          %v279 = vld [vmem:[%s1 + $0xb8] sm:$0xff]
          %v280 = vld [vmem:[%s1 + $0xc0] sm:$0xff]
          %v281 = vld [vmem:[%s1 + $0xc8] sm:$0xff]
          %v282 = vld [vmem:[%s1 + $0xd0] sm:$0xff]
          %v283 = vld [vmem:[%s1 + $0xd8] sm:$0xff]
          %v284 = vld [vmem:[%s1 + $0xe0] sm:$0xff]
          %v285 = vld [vmem:[%s1 + $0xe8] sm:$0xff]
          %v286 = vld [vmem:[%s1 + $0xf0] sm:$0xff]
          %v287 = vld [vmem:[%s1 + $0xf8] sm:$0xff]
          %v288 = vld [vmem:[%s1 + $0x100] sm:$0xff]
          %v289 = vld [vmem:[%s1 + $0x108] sm:$0xff]
          %v290 = vld [vmem:[%s1 + $0x110] sm:$0xff]
          %v291 = vld [vmem:[%s1 + $0x118] sm:$0xff]
          %v292 = vld [vmem:[%s1 + $0x120] sm:$0xff]
          %v293 = vld [vmem:[%s1 + $0x128] sm:$0xff]
          %v294 = vld [vmem:[%s1 + $0x130] sm:$0xff]
          %v295 = vld [vmem:[%s1 + $0x138] sm:$0xff]
          %v296 = vld [vmem:[%s1 + $0x140] sm:$0xff]
          %v297 = vld [vmem:[%s1 + $0x148] sm:$0xff]
          %v298 = vld [vmem:[%s1 + $0x150] sm:$0xff]
          %v299 = vld [vmem:[%s1 + $0x158] sm:$0xff]
          %v300 = vld [vmem:[%s1 + $0x160] sm:$0xff]
          %v301 = vld [vmem:[%s1 + $0x168] sm:$0xff]
          %v302 = vld [vmem:[%s1 + $0x170] sm:$0xff]
          %v303 = vld [vmem:[%s1 + $0x178] sm:$0xff]
          %v368 = vunpack.c.l.b16 %v192
          %v369 = vunpack.c.h.b16 %v192
          %v370 = vunpack.c.l.b16 %v193
          %v371 = vunpack.c.l.b16 %v194
          %v372 = vunpack.c.h.b16 %v194
          %v373 = vunpack.c.l.b16 %v195
          %v374 = vunpack.c.l.b16 %v196
          %v375 = vunpack.c.h.b16 %v196
          %v376 = vunpack.c.l.b16 %v197
          %v377 = vunpack.c.l.b16 %v198
          %v378 = vunpack.c.h.b16 %v198
          %v379 = vunpack.c.l.b16 %v199
          %v380 = vunpack.c.l.b16 %v200
          %v381 = vunpack.c.h.b16 %v200
          %v382 = vunpack.c.l.b16 %v201
          %v383 = vunpack.c.l.b16 %v202
          %v384 = vunpack.c.h.b16 %v202
          %v385 = vunpack.c.l.b16 %v203
          %v386 = vunpack.c.l.b16 %v204
          %v387 = vunpack.c.h.b16 %v204
          %v388 = vunpack.c.l.b16 %v205
          %v389 = vunpack.c.l.b16 %v206
          %v390 = vunpack.c.h.b16 %v206
          %v391 = vunpack.c.l.b16 %v207
          %v392 = vunpack.c.l.b16 %v208
          %v393 = vunpack.c.h.b16 %v208
          %v394 = vunpack.c.l.b16 %v209
          %v395 = vunpack.c.l.b16 %v210
          %v396 = vunpack.c.h.b16 %v210
          %v397 = vunpack.c.l.b16 %v211
          %v398 = vunpack.c.l.b16 %v212
          %v399 = vunpack.c.h.b16 %v212
          %v400 = vunpack.c.l.b16 %v213
          %v401 = vunpack.c.l.b16 %v214
          %v402 = vunpack.c.h.b16 %v214
          %v403 = vunpack.c.l.b16 %v215
          %v404 = vunpack.c.l.b16 %v216
          %v405 = vunpack.c.h.b16 %v216
          %v406 = vunpack.c.l.b16 %v217
          %v407 = vunpack.c.l.b16 %v218
          %v408 = vunpack.c.h.b16 %v218
          %v409 = vunpack.c.l.b16 %v219
          %v410 = vunpack.c.l.b16 %v220
          %v411 = vunpack.c.h.b16 %v220
          %v412 = vunpack.c.l.b16 %v221
          %v413 = vunpack.c.l.b16 %v222
          %v414 = vunpack.c.h.b16 %v222
          %v415 = vunpack.c.l.b16 %v223
          %v416 = vunpack.c.l.b16 %v224
          %v417 = vunpack.c.h.b16 %v224
          %v418 = vunpack.c.l.b16 %v225
          %v419 = vunpack.c.l.b16 %v226
          %v420 = vunpack.c.h.b16 %v226
          %v421 = vunpack.c.l.b16 %v227
          %v422 = vunpack.c.l.b16 %v228
          %v423 = vunpack.c.h.b16 %v228
          %v424 = vunpack.c.l.b16 %v229
          %v425 = vunpack.c.l.b16 %v230
          %v426 = vunpack.c.h.b16 %v230
          %v427 = vunpack.c.l.b16 %v231
          %v428 = vunpack.c.l.b16 %v232
          %v429 = vunpack.c.h.b16 %v232
          %v430 = vunpack.c.l.b16 %v233
          %v431 = vunpack.c.l.b16 %v234
          %v432 = vunpack.c.h.b16 %v234
          %v433 = vunpack.c.l.b16 %v235
          %v434 = vunpack.c.l.b16 %v236
          %v435 = vunpack.c.h.b16 %v236
          %v436 = vunpack.c.l.b16 %v237
          %v437 = vunpack.c.l.b16 %v238
          %v438 = vunpack.c.h.b16 %v238
          %v439 = vunpack.c.l.b16 %v239
          %v440 = vunpack.c.l.b16 %v240
          %v441 = vunpack.c.h.b16 %v240
          %v442 = vunpack.c.l.b16 %v241
          %v443 = vunpack.c.l.b16 %v242
          %v444 = vunpack.c.h.b16 %v242
          %v445 = vunpack.c.l.b16 %v243
          %v446 = vunpack.c.l.b16 %v244
          %v447 = vunpack.c.h.b16 %v244
          %v448 = vunpack.c.l.b16 %v245
          %v449 = vunpack.c.l.b16 %v246
          %v450 = vunpack.c.h.b16 %v246
          %v451 = vunpack.c.l.b16 %v247
          %v452 = vunpack.c.l.b16 %v248
          %v453 = vunpack.c.h.b16 %v248
          %v454 = vunpack.c.l.b16 %v249
          %v455 = vunpack.c.l.b16 %v250
          %v456 = vunpack.c.h.b16 %v250
          %v457 = vunpack.c.l.b16 %v251
          %v458 = vunpack.c.l.b16 %v252
          %v459 = vunpack.c.h.b16 %v252
          %v460 = vunpack.c.l.b16 %v253
          %v461 = vunpack.c.l.b16 %v254
          %v462 = vunpack.c.h.b16 %v254
          %v463 = vunpack.c.l.b16 %v255
          %v464 = vpack.c.b16 %v371, %v368
          %v465 = vpack.c.b16 %v372, %v369
          %v466 = vpack.c.b16 %v373, %v370
          %v467 = vpack.c.b16 %v377, %v374
          %v468 = vpack.c.b16 %v378, %v375
          %v469 = vpack.c.b16 %v379, %v376
          %v470 = vpack.c.b16 %v383, %v380
          %v471 = vpack.c.b16 %v384, %v381
          %v472 = vpack.c.b16 %v385, %v382
          %v473 = vpack.c.b16 %v389, %v386
          %v474 = vpack.c.b16 %v390, %v387
          %v475 = vpack.c.b16 %v391, %v388
          %v476 = vpack.c.b16 %v395, %v392
          %v477 = vpack.c.b16 %v396, %v393
          %v478 = vpack.c.b16 %v397, %v394
          %v479 = vpack.c.b16 %v401, %v398
          %v480 = vpack.c.b16 %v402, %v399
          %v481 = vpack.c.b16 %v403, %v400
          %v482 = vpack.c.b16 %v407, %v404
          %v483 = vpack.c.b16 %v408, %v405
          %v484 = vpack.c.b16 %v409, %v406
          %v485 = vpack.c.b16 %v413, %v410
          %v486 = vpack.c.b16 %v414, %v411
          %v487 = vpack.c.b16 %v415, %v412
          %v488 = vpack.c.b16 %v419, %v416
          %v489 = vpack.c.b16 %v420, %v417
          %v490 = vpack.c.b16 %v421, %v418
          %v491 = vpack.c.b16 %v425, %v422
          %v492 = vpack.c.b16 %v426, %v423
          %v493 = vpack.c.b16 %v427, %v424
          %v494 = vpack.c.b16 %v431, %v428
          %v495 = vpack.c.b16 %v432, %v429
          %v496 = vpack.c.b16 %v433, %v430
          %v497 = vpack.c.b16 %v437, %v434
          %v498 = vpack.c.b16 %v438, %v435
          %v499 = vpack.c.b16 %v439, %v436
          %v500 = vpack.c.b16 %v443, %v440
          %v501 = vpack.c.b16 %v444, %v441
          %v502 = vpack.c.b16 %v445, %v442
          %v503 = vpack.c.b16 %v449, %v446
          %v504 = vpack.c.b16 %v450, %v447
          %v505 = vpack.c.b16 %v451, %v448
          %v506 = vpack.c.b16 %v455, %v452
          %v507 = vpack.c.b16 %v456, %v453
          %v508 = vpack.c.b16 %v457, %v454
          %v509 = vpack.c.b16 %v461, %v458
          %v510 = vpack.c.b16 %v462, %v459
          %v511 = vpack.c.b16 %v463, %v460
          %v608 = vunpack.c.l.b16 %v256
          %v609 = vunpack.c.h.b16 %v256
          %v610 = vunpack.c.l.b16 %v257
          %v611 = vunpack.c.h.b16 %v257
          %v612 = vunpack.c.l.b16 %v258
          %v613 = vunpack.c.h.b16 %v258
          %v614 = vunpack.c.l.b16 %v259
          %v615 = vunpack.c.h.b16 %v259
          %v616 = vunpack.c.l.b16 %v260
          %v617 = vunpack.c.h.b16 %v260
          %v618 = vunpack.c.l.b16 %v261
          %v619 = vunpack.c.h.b16 %v261
          %v620 = vunpack.c.l.b16 %v262
          %v621 = vunpack.c.h.b16 %v262
          %v622 = vunpack.c.l.b16 %v263
          %v623 = vunpack.c.h.b16 %v263
          %v624 = vunpack.c.l.b16 %v264
          %v625 = vunpack.c.h.b16 %v264
          %v626 = vunpack.c.l.b16 %v265
          %v627 = vunpack.c.h.b16 %v265
          %v628 = vunpack.c.l.b16 %v266
          %v629 = vunpack.c.h.b16 %v266
          %v630 = vunpack.c.l.b16 %v267
          %v631 = vunpack.c.h.b16 %v267
          %v632 = vunpack.c.l.b16 %v268
          %v633 = vunpack.c.h.b16 %v268
          %v634 = vunpack.c.l.b16 %v269
          %v635 = vunpack.c.h.b16 %v269
          %v636 = vunpack.c.l.b16 %v270
          %v637 = vunpack.c.h.b16 %v270
          %v638 = vunpack.c.l.b16 %v271
          %v639 = vunpack.c.h.b16 %v271
          %v640 = vunpack.c.l.b16 %v272
          %v641 = vunpack.c.h.b16 %v272
          %v642 = vunpack.c.l.b16 %v273
          %v643 = vunpack.c.h.b16 %v273
          %v644 = vunpack.c.l.b16 %v274
          %v645 = vunpack.c.h.b16 %v274
          %v646 = vunpack.c.l.b16 %v275
          %v647 = vunpack.c.h.b16 %v275
          %v648 = vunpack.c.l.b16 %v276
          %v649 = vunpack.c.h.b16 %v276
          %v650 = vunpack.c.l.b16 %v277
          %v651 = vunpack.c.h.b16 %v277
          %v652 = vunpack.c.l.b16 %v278
          %v653 = vunpack.c.h.b16 %v278
          %v654 = vunpack.c.l.b16 %v279
          %v655 = vunpack.c.h.b16 %v279
          %v656 = vunpack.c.l.b16 %v280
          %v657 = vunpack.c.h.b16 %v280
          %v658 = vunpack.c.l.b16 %v281
          %v659 = vunpack.c.h.b16 %v281
          %v660 = vunpack.c.l.b16 %v282
          %v661 = vunpack.c.h.b16 %v282
          %v662 = vunpack.c.l.b16 %v283
          %v663 = vunpack.c.h.b16 %v283
          %v664 = vunpack.c.l.b16 %v284
          %v665 = vunpack.c.h.b16 %v284
          %v666 = vunpack.c.l.b16 %v285
          %v667 = vunpack.c.h.b16 %v285
          %v668 = vunpack.c.l.b16 %v286
          %v669 = vunpack.c.h.b16 %v286
          %v670 = vunpack.c.l.b16 %v287
          %v671 = vunpack.c.h.b16 %v287
          %v672 = vunpack.c.l.b16 %v288
          %v673 = vunpack.c.h.b16 %v288
          %v674 = vunpack.c.l.b16 %v289
          %v675 = vunpack.c.h.b16 %v289
          %v676 = vunpack.c.l.b16 %v290
          %v677 = vunpack.c.h.b16 %v290
          %v678 = vunpack.c.l.b16 %v291
          %v679 = vunpack.c.h.b16 %v291
          %v680 = vunpack.c.l.b16 %v292
          %v681 = vunpack.c.h.b16 %v292
          %v682 = vunpack.c.l.b16 %v293
          %v683 = vunpack.c.h.b16 %v293
          %v684 = vunpack.c.l.b16 %v294
          %v685 = vunpack.c.h.b16 %v294
          %v686 = vunpack.c.l.b16 %v295
          %v687 = vunpack.c.h.b16 %v295
          %v688 = vunpack.c.l.b16 %v296
          %v689 = vunpack.c.h.b16 %v296
          %v690 = vunpack.c.l.b16 %v297
          %v691 = vunpack.c.h.b16 %v297
          %v692 = vunpack.c.l.b16 %v298
          %v693 = vunpack.c.h.b16 %v298
          %v694 = vunpack.c.l.b16 %v299
          %v695 = vunpack.c.h.b16 %v299
          %v696 = vunpack.c.l.b16 %v300
          %v697 = vunpack.c.h.b16 %v300
          %v698 = vunpack.c.l.b16 %v301
          %v699 = vunpack.c.h.b16 %v301
          %v700 = vunpack.c.l.b16 %v302
          %v701 = vunpack.c.h.b16 %v302
          %v702 = vunpack.c.l.b16 %v303
          %v703 = vunpack.c.h.b16 %v303
          %v704 = vpack.c.b16 %v610, %v608
          %v705 = vpack.c.b16 %v611, %v609
          %v706 = vpack.c.b16 %v614, %v612
          %v707 = vpack.c.b16 %v615, %v613
          %v708 = vpack.c.b16 %v618, %v616
          %v709 = vpack.c.b16 %v619, %v617
          %v710 = vpack.c.b16 %v622, %v620
          %v711 = vpack.c.b16 %v623, %v621
          %v712 = vpack.c.b16 %v626, %v624
          %v713 = vpack.c.b16 %v627, %v625
          %v714 = vpack.c.b16 %v630, %v628
          %v715 = vpack.c.b16 %v631, %v629
          %v716 = vpack.c.b16 %v634, %v632
          %v717 = vpack.c.b16 %v635, %v633
          %v718 = vpack.c.b16 %v638, %v636
          %v719 = vpack.c.b16 %v639, %v637
          %v720 = vpack.c.b16 %v642, %v640
          %v721 = vpack.c.b16 %v643, %v641
          %v722 = vpack.c.b16 %v646, %v644
          %v723 = vpack.c.b16 %v647, %v645
          %v724 = vpack.c.b16 %v650, %v648
          %v725 = vpack.c.b16 %v651, %v649
          %v726 = vpack.c.b16 %v654, %v652
          %v727 = vpack.c.b16 %v655, %v653
          %v728 = vpack.c.b16 %v658, %v656
          %v729 = vpack.c.b16 %v659, %v657
          %v730 = vpack.c.b16 %v662, %v660
          %v731 = vpack.c.b16 %v663, %v661
          %v732 = vpack.c.b16 %v666, %v664
          %v733 = vpack.c.b16 %v667, %v665
          %v734 = vpack.c.b16 %v670, %v668
          %v735 = vpack.c.b16 %v671, %v669
          %v736 = vpack.c.b16 %v674, %v672
          %v737 = vpack.c.b16 %v675, %v673
          %v738 = vpack.c.b16 %v678, %v676
          %v739 = vpack.c.b16 %v679, %v677
          %v740 = vpack.c.b16 %v682, %v680
          %v741 = vpack.c.b16 %v683, %v681
          %v742 = vpack.c.b16 %v686, %v684
          %v743 = vpack.c.b16 %v687, %v685
          %v744 = vpack.c.b16 %v690, %v688
          %v745 = vpack.c.b16 %v691, %v689
          %v746 = vpack.c.b16 %v694, %v692
          %v747 = vpack.c.b16 %v695, %v693
          %v748 = vpack.c.b16 %v698, %v696
          %v749 = vpack.c.b16 %v699, %v697
          %v750 = vpack.c.b16 %v702, %v700
          %v751 = vpack.c.b16 %v703, %v701
          %800 = vmatprep.subr.bf16.mxu0 %v719
          %801 = vmatpush1.bf16.msra.mxu0 %v718
          %802 = vmatprep.subr.bf16.mxu0 %v717
          %803 = vmatpush1.bf16.msra.mxu0 %v716
          %804 = vmatprep.subr.bf16.mxu0 %v715
          %805 = vmatpush1.bf16.msra.mxu0 %v714
          %806 = vmatprep.subr.bf16.mxu0 %v713
          %807 = vmatpush1.bf16.msra.mxu0 %v712
          %808 = vmatprep.subr.bf16.mxu0 %v711
          %809 = vmatpush1.bf16.msra.mxu0 %v710
          %810 = vmatprep.subr.bf16.mxu0 %v709
          %811 = vmatpush1.bf16.msra.mxu0 %v708
          %812 = vmatprep.subr.bf16.mxu0 %v707
          %813 = vmatpush1.bf16.msra.mxu0 %v706
          %814 = vmatprep.subr.bf16.mxu0 %v705
          %815 = vmatpush1.bf16.msra.mxu0 %v704
          %816 = vmatprep.subr.bf16.mxu0 %v735
          %817 = vmatpush2.bf16.msra.mxu0 %v734
          %818 = vmatprep.subr.bf16.mxu0 %v733
          %819 = vmatpush2.bf16.msra.mxu0 %v732
          %820 = vmatprep.subr.bf16.mxu0 %v731
          %821 = vmatpush2.bf16.msra.mxu0 %v730
          %822 = vmatprep.subr.bf16.mxu0 %v729
          %823 = vmatpush2.bf16.msra.mxu0 %v728
          %824 = vmatprep.subr.bf16.mxu0 %v727
          %825 = vmatpush2.bf16.msra.mxu0 %v726
          %826 = vmatprep.subr.bf16.mxu0 %v725
          %827 = vmatpush2.bf16.msra.mxu0 %v724
          %828 = vmatprep.subr.bf16.mxu0 %v723
          %829 = vmatpush2.bf16.msra.mxu0 %v722
          %830 = vmatprep.subr.bf16.mxu0 %v721
          %831 = vmatpush2.bf16.msra.mxu0 %v720
          %832 = vmatprep.mubr.bf16.mxu0 %v465
          %833 = vmatmul.mubr.bf16.gmra.mxu0 %v464
          %v834 = vpop.f32.mrf.mxu0
          %v835 = vadd.f32 0.0, %v834
          %v836 = vpop.f32.mrf.mxu0
          %v837 = vadd.f32 0.0, %v836
          %v838 = vpop.f32.mrf.mxu0
          %v839 = vadd.f32 0.0, %v838
          %v840 = vpop.f32.mrf.mxu0
          %v841 = vadd.f32 0.0, %v840
          %842 = vmatprep.mubr.bf16.mxu0 %v468
          %843 = vmatmul.mubr.bf16.gmra.mxu0 %v467
          %v844 = vpop.f32.mrf.mxu0
          %v845 = vadd.f32 0.0, %v844
          %v846 = vpop.f32.mrf.mxu0
          %v847 = vadd.f32 0.0, %v846
          %v848 = vpop.f32.mrf.mxu0
          %v849 = vadd.f32 0.0, %v848
          %v850 = vpop.f32.mrf.mxu0
          %v851 = vadd.f32 0.0, %v850
          %852 = vmatprep.mubr.bf16.mxu0 %v471
          %853 = vmatmul.mubr.bf16.gmra.mxu0 %v470
          %v854 = vpop.f32.mrf.mxu0
          %v855 = vadd.f32 0.0, %v854
          %v856 = vpop.f32.mrf.mxu0
          %v857 = vadd.f32 0.0, %v856
          %v858 = vpop.f32.mrf.mxu0
          %v859 = vadd.f32 0.0, %v858
          %v860 = vpop.f32.mrf.mxu0
          %v861 = vadd.f32 0.0, %v860
          %862 = vmatprep.mubr.bf16.mxu0 %v474
          %863 = vmatmul.mubr.bf16.gmra.mxu0 %v473
          %v864 = vpop.f32.mrf.mxu0
          %v865 = vadd.f32 0.0, %v864
          %v866 = vpop.f32.mrf.mxu0
          %v867 = vadd.f32 0.0, %v866
          %v868 = vpop.f32.mrf.mxu0
          %v869 = vadd.f32 0.0, %v868
          %v870 = vpop.f32.mrf.mxu0
          %v871 = vadd.f32 0.0, %v870
          %872 = vmatprep.mubr.bf16.mxu0 %v477
          %873 = vmatmul.mubr.bf16.gmra.mxu0 %v476
          %v874 = vpop.f32.mrf.mxu0
          %v875 = vadd.f32 0.0, %v874
          %v876 = vpop.f32.mrf.mxu0
          %v877 = vadd.f32 0.0, %v876
          %v878 = vpop.f32.mrf.mxu0
          %v879 = vadd.f32 0.0, %v878
          %v880 = vpop.f32.mrf.mxu0
          %v881 = vadd.f32 0.0, %v880
          %882 = vmatprep.mubr.bf16.mxu0 %v480
          %883 = vmatmul.mubr.bf16.gmra.mxu0 %v479
          %v884 = vpop.f32.mrf.mxu0
          %v885 = vadd.f32 0.0, %v884
          %v886 = vpop.f32.mrf.mxu0
          %v887 = vadd.f32 0.0, %v886
          %v888 = vpop.f32.mrf.mxu0
          %v889 = vadd.f32 0.0, %v888
          %v890 = vpop.f32.mrf.mxu0
          %v891 = vadd.f32 0.0, %v890
          %892 = vmatprep.mubr.bf16.mxu0 %v483
          %893 = vmatmul.mubr.bf16.gmra.mxu0 %v482
          %v894 = vpop.f32.mrf.mxu0
          %v895 = vadd.f32 0.0, %v894
          %v896 = vpop.f32.mrf.mxu0
          %v897 = vadd.f32 0.0, %v896
          %v898 = vpop.f32.mrf.mxu0
          %v899 = vadd.f32 0.0, %v898
          %v900 = vpop.f32.mrf.mxu0
          %v901 = vadd.f32 0.0, %v900
          %902 = vmatprep.mubr.bf16.mxu0 %v486
          %903 = vmatmul.mubr.bf16.gmra.mxu0 %v485
          %v904 = vpop.f32.mrf.mxu0
          %v905 = vadd.f32 0.0, %v904
          %v906 = vpop.f32.mrf.mxu0
          %v907 = vadd.f32 0.0, %v906
          %v908 = vpop.f32.mrf.mxu0
          %v909 = vadd.f32 0.0, %v908
          %v910 = vpop.f32.mrf.mxu0
          %v911 = vadd.f32 0.0, %v910
          %912 = vmatprep.mubr.bf16.mxu0 %v489
          %913 = vmatmul.mubr.bf16.gmra.mxu0 %v488
          %v914 = vpop.f32.mrf.mxu0
          %v915 = vadd.f32 0.0, %v914
          %v916 = vpop.f32.mrf.mxu0
          %v917 = vadd.f32 0.0, %v916
          %v918 = vpop.f32.mrf.mxu0
          %v919 = vadd.f32 0.0, %v918
          %v920 = vpop.f32.mrf.mxu0
          %v921 = vadd.f32 0.0, %v920
          %922 = vmatprep.mubr.bf16.mxu0 %v492
          %923 = vmatmul.mubr.bf16.gmra.mxu0 %v491
          %v924 = vpop.f32.mrf.mxu0
          %v925 = vadd.f32 0.0, %v924
          %v926 = vpop.f32.mrf.mxu0
          %v927 = vadd.f32 0.0, %v926
          %v928 = vpop.f32.mrf.mxu0
          %v929 = vadd.f32 0.0, %v928
          %v930 = vpop.f32.mrf.mxu0
          %v931 = vadd.f32 0.0, %v930
          %932 = vmatprep.mubr.bf16.mxu0 %v495
          %933 = vmatmul.mubr.bf16.gmra.mxu0 %v494
          %v934 = vpop.f32.mrf.mxu0
          %v935 = vadd.f32 0.0, %v934
          %v936 = vpop.f32.mrf.mxu0
          %v937 = vadd.f32 0.0, %v936
          %v938 = vpop.f32.mrf.mxu0
          %v939 = vadd.f32 0.0, %v938
          %v940 = vpop.f32.mrf.mxu0
          %v941 = vadd.f32 0.0, %v940
          %942 = vmatprep.mubr.bf16.mxu0 %v498
          %943 = vmatmul.mubr.bf16.gmra.mxu0 %v497
          %v944 = vpop.f32.mrf.mxu0
          %v945 = vadd.f32 0.0, %v944
          %v946 = vpop.f32.mrf.mxu0
          %v947 = vadd.f32 0.0, %v946
          %v948 = vpop.f32.mrf.mxu0
          %v949 = vadd.f32 0.0, %v948
          %v950 = vpop.f32.mrf.mxu0
          %v951 = vadd.f32 0.0, %v950
          %952 = vmatprep.mubr.bf16.mxu0 %v501
          %953 = vmatmul.mubr.bf16.gmra.mxu0 %v500
          %v954 = vpop.f32.mrf.mxu0
          %v955 = vadd.f32 0.0, %v954
          %v956 = vpop.f32.mrf.mxu0
          %v957 = vadd.f32 0.0, %v956
          %v958 = vpop.f32.mrf.mxu0
          %v959 = vadd.f32 0.0, %v958
          %v960 = vpop.f32.mrf.mxu0
          %v961 = vadd.f32 0.0, %v960
          %962 = vmatprep.mubr.bf16.mxu0 %v504
          %963 = vmatmul.mubr.bf16.gmra.mxu0 %v503
          %v964 = vpop.f32.mrf.mxu0
          %v965 = vadd.f32 0.0, %v964
          %v966 = vpop.f32.mrf.mxu0
          %v967 = vadd.f32 0.0, %v966
          %v968 = vpop.f32.mrf.mxu0
          %v969 = vadd.f32 0.0, %v968
          %v970 = vpop.f32.mrf.mxu0
          %v971 = vadd.f32 0.0, %v970
          %972 = vmatprep.mubr.bf16.mxu0 %v507
          %973 = vmatmul.mubr.bf16.gmra.mxu0 %v506
          %v974 = vpop.f32.mrf.mxu0
          %v975 = vadd.f32 0.0, %v974
          %v976 = vpop.f32.mrf.mxu0
          %v977 = vadd.f32 0.0, %v976
          %v978 = vpop.f32.mrf.mxu0
          %v979 = vadd.f32 0.0, %v978
          %v980 = vpop.f32.mrf.mxu0
          %v981 = vadd.f32 0.0, %v980
          %982 = vmatprep.mubr.bf16.mxu0 %v510
          %983 = vmatmul.mubr.bf16.gmra.mxu0 %v509
          %v984 = vpop.f32.mrf.mxu0
          %v985 = vadd.f32 0.0, %v984
          %v986 = vpop.f32.mrf.mxu0
          %v987 = vadd.f32 0.0, %v986
          %v988 = vpop.f32.mrf.mxu0
          %v989 = vadd.f32 0.0, %v988
          %v990 = vpop.f32.mrf.mxu0
          %v991 = vadd.f32 0.0, %v990
          %992 = vdwg.mxu0
          %993 = vmatprep.subr.bf16.mxu0 %v751
          %994 = vmatpush1.bf16.msra.mxu0 %v750
          %995 = vmatprep.subr.bf16.mxu0 %v749
          %996 = vmatpush1.bf16.msra.mxu0 %v748
          %997 = vmatprep.subr.bf16.mxu0 %v747
          %998 = vmatpush1.bf16.msra.mxu0 %v746
          %999 = vmatprep.subr.bf16.mxu0 %v745
          %1000 = vmatpush1.bf16.msra.mxu0 %v744
          %1001 = vmatprep.subr.bf16.mxu0 %v743
          %1002 = vmatpush1.bf16.msra.mxu0 %v742
          %1003 = vmatprep.subr.bf16.mxu0 %v741
          %1004 = vmatpush1.bf16.msra.mxu0 %v740
          %1005 = vmatprep.subr.bf16.mxu0 %v739
          %1006 = vmatpush1.bf16.msra.mxu0 %v738
          %1007 = vmatprep.subr.bf16.mxu0 %v737
          %1008 = vmatpush1.bf16.msra.mxu0 %v736
          %1009 = vmatprep.subr.bf16.mxu0 0
          %1010 = vmatpush2.bf16.msra.mxu0 0
          %1011 = vmatprep.subr.bf16.mxu0 0
          %1012 = vmatpush2.bf16.msra.mxu0 0
          %1013 = vmatprep.subr.bf16.mxu0 0
          %1014 = vmatpush2.bf16.msra.mxu0 0
          %1015 = vmatprep.subr.bf16.mxu0 0
          %1016 = vmatpush2.bf16.msra.mxu0 0
          %1017 = vmatprep.subr.bf16.mxu0 0
          %1018 = vmatpush2.bf16.msra.mxu0 0
          %1019 = vmatprep.subr.bf16.mxu0 0
          %1020 = vmatpush2.bf16.msra.mxu0 0
          %1021 = vmatprep.subr.bf16.mxu0 0
          %1022 = vmatpush2.bf16.msra.mxu0 0
          %1023 = vmatprep.subr.bf16.mxu0 0
          %1024 = vmatpush2.bf16.msra.mxu0 0
          %1025 = vmatprep.mubr.bf16.mxu0 0
          %1026 = vmatmul.mubr.bf16.gmra.mxu0 %v466
          %v1027 = vpop.f32.mrf.mxu0
          %v1028 = vadd.f32 %v835, %v1027
          %v1029 = vpop.f32.mrf.mxu0
          %v1030 = vadd.f32 %v837, %v1029
          %v1031 = vpop.f32.mrf.mxu0
          %v1032 = vadd.f32 %v839, %v1031
          %v1033 = vpop.f32.mrf.mxu0
          %v1034 = vadd.f32 %v841, %v1033
          %1035 = vmatprep.mubr.bf16.mxu0 0
          %1036 = vmatmul.mubr.bf16.gmra.mxu0 %v469
          %v1037 = vpop.f32.mrf.mxu0
          %v1038 = vadd.f32 %v845, %v1037
          %v1039 = vpop.f32.mrf.mxu0
          %v1040 = vadd.f32 %v847, %v1039
          %v1041 = vpop.f32.mrf.mxu0
          %v1042 = vadd.f32 %v849, %v1041
          %v1043 = vpop.f32.mrf.mxu0
          %v1044 = vadd.f32 %v851, %v1043
          %1045 = vmatprep.mubr.bf16.mxu0 0
          %1046 = vmatmul.mubr.bf16.gmra.mxu0 %v472
          %v1047 = vpop.f32.mrf.mxu0
          %v1048 = vadd.f32 %v855, %v1047
          %v1049 = vpop.f32.mrf.mxu0
          %v1050 = vadd.f32 %v857, %v1049
          %v1051 = vpop.f32.mrf.mxu0
          %v1052 = vadd.f32 %v859, %v1051
          %v1053 = vpop.f32.mrf.mxu0
          %v1054 = vadd.f32 %v861, %v1053
          %1055 = vmatprep.mubr.bf16.mxu0 0
          %1056 = vmatmul.mubr.bf16.gmra.mxu0 %v475
          %v1057 = vpop.f32.mrf.mxu0
          %v1058 = vadd.f32 %v865, %v1057
          %v1059 = vpop.f32.mrf.mxu0
          %v1060 = vadd.f32 %v867, %v1059
          %v1061 = vpop.f32.mrf.mxu0
          %v1062 = vadd.f32 %v869, %v1061
          %v1063 = vpop.f32.mrf.mxu0
          %v1064 = vadd.f32 %v871, %v1063
          %1065 = vmatprep.mubr.bf16.mxu0 0
          %1066 = vmatmul.mubr.bf16.gmra.mxu0 %v478
          %v1067 = vpop.f32.mrf.mxu0
          %v1068 = vadd.f32 %v875, %v1067
          %v1069 = vpop.f32.mrf.mxu0
          %v1070 = vadd.f32 %v877, %v1069
          %v1071 = vpop.f32.mrf.mxu0
          %v1072 = vadd.f32 %v879, %v1071
          %v1073 = vpop.f32.mrf.mxu0
          %v1074 = vadd.f32 %v881, %v1073
          %1075 = vmatprep.mubr.bf16.mxu0 0
          %1076 = vmatmul.mubr.bf16.gmra.mxu0 %v481
          %v1077 = vpop.f32.mrf.mxu0
          %v1078 = vadd.f32 %v885, %v1077
          %v1079 = vpop.f32.mrf.mxu0
          %v1080 = vadd.f32 %v887, %v1079
          %v1081 = vpop.f32.mrf.mxu0
          %v1082 = vadd.f32 %v889, %v1081
          %v1083 = vpop.f32.mrf.mxu0
          %v1084 = vadd.f32 %v891, %v1083
          %1085 = vmatprep.mubr.bf16.mxu0 0
          %1086 = vmatmul.mubr.bf16.gmra.mxu0 %v484
          %v1087 = vpop.f32.mrf.mxu0
          %v1088 = vadd.f32 %v895, %v1087
          %v1089 = vpop.f32.mrf.mxu0
          %v1090 = vadd.f32 %v897, %v1089
          %v1091 = vpop.f32.mrf.mxu0
          %v1092 = vadd.f32 %v899, %v1091
          %v1093 = vpop.f32.mrf.mxu0
          %v1094 = vadd.f32 %v901, %v1093
          %1095 = vmatprep.mubr.bf16.mxu0 0
          %1096 = vmatmul.mubr.bf16.gmra.mxu0 %v487
          %v1097 = vpop.f32.mrf.mxu0
          %v1098 = vadd.f32 %v905, %v1097
          %v1099 = vpop.f32.mrf.mxu0
          %v1100 = vadd.f32 %v907, %v1099
          %v1101 = vpop.f32.mrf.mxu0
          %v1102 = vadd.f32 %v909, %v1101
          %v1103 = vpop.f32.mrf.mxu0
          %v1104 = vadd.f32 %v911, %v1103
          %1105 = vmatprep.mubr.bf16.mxu0 0
          %1106 = vmatmul.mubr.bf16.gmra.mxu0 %v490
          %v1107 = vpop.f32.mrf.mxu0
          %v1108 = vadd.f32 %v915, %v1107
          %v1109 = vpop.f32.mrf.mxu0
          %v1110 = vadd.f32 %v917, %v1109
          %v1111 = vpop.f32.mrf.mxu0
          %v1112 = vadd.f32 %v919, %v1111
          %v1113 = vpop.f32.mrf.mxu0
          %v1114 = vadd.f32 %v921, %v1113
          %1115 = vmatprep.mubr.bf16.mxu0 0
          %1116 = vmatmul.mubr.bf16.gmra.mxu0 %v493
          %v1117 = vpop.f32.mrf.mxu0
          %v1118 = vadd.f32 %v925, %v1117
          %v1119 = vpop.f32.mrf.mxu0
          %v1120 = vadd.f32 %v927, %v1119
          %v1121 = vpop.f32.mrf.mxu0
          %v1122 = vadd.f32 %v929, %v1121
          %v1123 = vpop.f32.mrf.mxu0
          %v1124 = vadd.f32 %v931, %v1123
          %1125 = vmatprep.mubr.bf16.mxu0 0
          %1126 = vmatmul.mubr.bf16.gmra.mxu0 %v496
          %v1127 = vpop.f32.mrf.mxu0
          %v1128 = vadd.f32 %v935, %v1127
          %v1129 = vpop.f32.mrf.mxu0
          %v1130 = vadd.f32 %v937, %v1129
          %v1131 = vpop.f32.mrf.mxu0
          %v1132 = vadd.f32 %v939, %v1131
          %v1133 = vpop.f32.mrf.mxu0
          %v1134 = vadd.f32 %v941, %v1133
          %1135 = vmatprep.mubr.bf16.mxu0 0
          %1136 = vmatmul.mubr.bf16.gmra.mxu0 %v499
          %v1137 = vpop.f32.mrf.mxu0
          %v1138 = vadd.f32 %v945, %v1137
          %v1139 = vpop.f32.mrf.mxu0
          %v1140 = vadd.f32 %v947, %v1139
          %v1141 = vpop.f32.mrf.mxu0
          %v1142 = vadd.f32 %v949, %v1141
          %v1143 = vpop.f32.mrf.mxu0
          %v1144 = vadd.f32 %v951, %v1143
          %1145 = vmatprep.mubr.bf16.mxu0 0
          %1146 = vmatmul.mubr.bf16.gmra.mxu0 %v502
          %v1147 = vpop.f32.mrf.mxu0
          %v1148 = vadd.f32 %v955, %v1147
          %v1149 = vpop.f32.mrf.mxu0
          %v1150 = vadd.f32 %v957, %v1149
          %v1151 = vpop.f32.mrf.mxu0
          %v1152 = vadd.f32 %v959, %v1151
          %v1153 = vpop.f32.mrf.mxu0
          %v1154 = vadd.f32 %v961, %v1153
          %1155 = vmatprep.mubr.bf16.mxu0 0
          %1156 = vmatmul.mubr.bf16.gmra.mxu0 %v505
          %v1157 = vpop.f32.mrf.mxu0
          %v1158 = vadd.f32 %v965, %v1157
          %v1159 = vpop.f32.mrf.mxu0
          %v1160 = vadd.f32 %v967, %v1159
          %v1161 = vpop.f32.mrf.mxu0
          %v1162 = vadd.f32 %v969, %v1161
          %v1163 = vpop.f32.mrf.mxu0
          %v1164 = vadd.f32 %v971, %v1163
          %1165 = vmatprep.mubr.bf16.mxu0 0
          %1166 = vmatmul.mubr.bf16.gmra.mxu0 %v508
          %v1167 = vpop.f32.mrf.mxu0
          %v1168 = vadd.f32 %v975, %v1167
          %v1169 = vpop.f32.mrf.mxu0
          %v1170 = vadd.f32 %v977, %v1169
          %v1171 = vpop.f32.mrf.mxu0
          %v1172 = vadd.f32 %v979, %v1171
          %v1173 = vpop.f32.mrf.mxu0
          %v1174 = vadd.f32 %v981, %v1173
          %1175 = vmatprep.mubr.bf16.mxu0 0
          %1176 = vmatmul.mubr.bf16.gmra.mxu0 %v511
          %v1177 = vpop.f32.mrf.mxu0
          %v1178 = vadd.f32 %v985, %v1177
          %v1179 = vpop.f32.mrf.mxu0
          %v1180 = vadd.f32 %v987, %v1179
          %v1181 = vpop.f32.mrf.mxu0
          %v1182 = vadd.f32 %v989, %v1181
          %v1183 = vpop.f32.mrf.mxu0
          %v1184 = vadd.f32 %v991, %v1183
          %1185 = vdwg.mxu0
          %v1186 = vpack.c.bf16 %v1032, %v1028
          %v1187 = vpack.c.bf16 %v1042, %v1038
          %v1188 = vpack.c.bf16 %v1052, %v1048
          %v1189 = vpack.c.bf16 %v1062, %v1058
          %v1190 = vpack.c.bf16 %v1072, %v1068
          %v1191 = vpack.c.bf16 %v1082, %v1078
          %v1192 = vpack.c.bf16 %v1092, %v1088
          %v1193 = vpack.c.bf16 %v1102, %v1098
          %v1194 = vpack.c.bf16 %v1112, %v1108
          %v1195 = vpack.c.bf16 %v1122, %v1118
          %v1196 = vpack.c.bf16 %v1132, %v1128
          %v1197 = vpack.c.bf16 %v1142, %v1138
          %v1198 = vpack.c.bf16 %v1152, %v1148
          %v1199 = vpack.c.bf16 %v1162, %v1158
          %v1200 = vpack.c.bf16 %v1172, %v1168
          %v1201 = vpack.c.bf16 %v1182, %v1178
          %v1218 = vunpack.c.l.b16 %v1186
          %v1219 = vunpack.c.h.b16 %v1186
          %v1220 = vunpack.c.l.b16 %v1187
          %v1221 = vunpack.c.h.b16 %v1187
          %v1222 = vunpack.c.l.b16 %v1188
          %v1223 = vunpack.c.h.b16 %v1188
          %v1224 = vunpack.c.l.b16 %v1189
          %v1225 = vunpack.c.h.b16 %v1189
          %v1226 = vunpack.c.l.b16 %v1190
          %v1227 = vunpack.c.h.b16 %v1190
          %v1228 = vunpack.c.l.b16 %v1191
          %v1229 = vunpack.c.h.b16 %v1191
          %v1230 = vunpack.c.l.b16 %v1192
          %v1231 = vunpack.c.h.b16 %v1192
          %v1232 = vunpack.c.l.b16 %v1193
          %v1233 = vunpack.c.h.b16 %v1193
          %v1234 = vunpack.c.l.b16 %v1194
          %v1235 = vunpack.c.h.b16 %v1194
          %v1236 = vunpack.c.l.b16 %v1195
          %v1237 = vunpack.c.h.b16 %v1195
          %v1238 = vunpack.c.l.b16 %v1196
          %v1239 = vunpack.c.h.b16 %v1196
          %v1240 = vunpack.c.l.b16 %v1197
          %v1241 = vunpack.c.h.b16 %v1197
          %v1242 = vunpack.c.l.b16 %v1198
          %v1243 = vunpack.c.h.b16 %v1198
          %v1244 = vunpack.c.l.b16 %v1199
          %v1245 = vunpack.c.h.b16 %v1199
          %v1246 = vunpack.c.l.b16 %v1200
          %v1247 = vunpack.c.h.b16 %v1200
          %v1248 = vunpack.c.l.b16 %v1201
          %v1249 = vunpack.c.h.b16 %v1201
          %v1250 = vpack.c.b16 %v1218, %v1218
          %v1251 = vpack.c.b16 %v1219, %v1219
          %v1252 = vpack.c.b16 %v1220, %v1220
          %v1253 = vpack.c.b16 %v1221, %v1221
          %v1254 = vpack.c.b16 %v1222, %v1222
          %v1255 = vpack.c.b16 %v1223, %v1223
          %v1256 = vpack.c.b16 %v1224, %v1224
          %v1257 = vpack.c.b16 %v1225, %v1225
          %v1258 = vpack.c.b16 %v1226, %v1226
          %v1259 = vpack.c.b16 %v1227, %v1227
          %v1260 = vpack.c.b16 %v1228, %v1228
          %v1261 = vpack.c.b16 %v1229, %v1229
          %v1262 = vpack.c.b16 %v1230, %v1230
          %v1263 = vpack.c.b16 %v1231, %v1231
          %v1264 = vpack.c.b16 %v1232, %v1232
          %v1265 = vpack.c.b16 %v1233, %v1233
          %v1266 = vpack.c.b16 %v1234, %v1234
          %v1267 = vpack.c.b16 %v1235, %v1235
          %v1268 = vpack.c.b16 %v1236, %v1236
          %v1269 = vpack.c.b16 %v1237, %v1237
          %v1270 = vpack.c.b16 %v1238, %v1238
          %v1271 = vpack.c.b16 %v1239, %v1239
          %v1272 = vpack.c.b16 %v1240, %v1240
          %v1273 = vpack.c.b16 %v1241, %v1241
          %v1274 = vpack.c.b16 %v1242, %v1242
          %v1275 = vpack.c.b16 %v1243, %v1243
          %v1276 = vpack.c.b16 %v1244, %v1244
          %v1277 = vpack.c.b16 %v1245, %v1245
          %v1278 = vpack.c.b16 %v1246, %v1246
          %v1279 = vpack.c.b16 %v1247, %v1247
          %v1280 = vpack.c.b16 %v1248, %v1248
          %v1281 = vpack.c.b16 %v1249, %v1249
          %vm1314 = vcmask 519168
          %1315 = vst.msk [vmem:[#allocation2] sm:$0xf] %vm1314, %v1250
          %1316 = vst.msk [vmem:[#allocation2 + $0x4] sm:$0xf] %vm1314, %v1251
          %1317 = vst.msk [vmem:[#allocation2 + $0x8] sm:$0xf] %vm1314, %v1252
          %1318 = vst.msk [vmem:[#allocation2 + $0xc] sm:$0xf] %vm1314, %v1253
          %1319 = vst.msk [vmem:[#allocation2 + $0x10] sm:$0xf] %vm1314, %v1254
          %1320 = vst.msk [vmem:[#allocation2 + $0x14] sm:$0xf] %vm1314, %v1255
          %1321 = vst.msk [vmem:[#allocation2 + $0x18] sm:$0xf] %vm1314, %v1256
          %1322 = vst.msk [vmem:[#allocation2 + $0x1c] sm:$0xf] %vm1314, %v1257
          %1323 = vst.msk [vmem:[#allocation2 + $0x20] sm:$0xf] %vm1314, %v1258
          %1324 = vst.msk [vmem:[#allocation2 + $0x24] sm:$0xf] %vm1314, %v1259
          %1325 = vst.msk [vmem:[#allocation2 + $0x28] sm:$0xf] %vm1314, %v1260
          %1326 = vst.msk [vmem:[#allocation2 + $0x2c] sm:$0xf] %vm1314, %v1261
          %1327 = vst.msk [vmem:[#allocation2 + $0x30] sm:$0xf] %vm1314, %v1262
          %1328 = vst.msk [vmem:[#allocation2 + $0x34] sm:$0xf] %vm1314, %v1263
          %1329 = vst.msk [vmem:[#allocation2 + $0x38] sm:$0xf] %vm1314, %v1264
          %1330 = vst.msk [vmem:[#allocation2 + $0x3c] sm:$0xf] %vm1314, %v1265
          %1331 = vst.msk [vmem:[#allocation2 + $0x40] sm:$0xf] %vm1314, %v1266
          %1332 = vst.msk [vmem:[#allocation2 + $0x44] sm:$0xf] %vm1314, %v1267
          %1333 = vst.msk [vmem:[#allocation2 + $0x48] sm:$0xf] %vm1314, %v1268
          %1334 = vst.msk [vmem:[#allocation2 + $0x4c] sm:$0xf] %vm1314, %v1269
          %1335 = vst.msk [vmem:[#allocation2 + $0x50] sm:$0xf] %vm1314, %v1270
          %1336 = vst.msk [vmem:[#allocation2 + $0x54] sm:$0xf] %vm1314, %v1271
          %1337 = vst.msk [vmem:[#allocation2 + $0x58] sm:$0xf] %vm1314, %v1272
          %1338 = vst.msk [vmem:[#allocation2 + $0x5c] sm:$0xf] %vm1314, %v1273
          %1339 = vst.msk [vmem:[#allocation2 + $0x60] sm:$0xf] %vm1314, %v1274
          %1340 = vst.msk [vmem:[#allocation2 + $0x64] sm:$0xf] %vm1314, %v1275
          %1341 = vst.msk [vmem:[#allocation2 + $0x68] sm:$0xf] %vm1314, %v1276
          %1342 = vst.msk [vmem:[#allocation2 + $0x6c] sm:$0xf] %vm1314, %v1277
          %1343 = vst.msk [vmem:[#allocation2 + $0x70] sm:$0xf] %vm1314, %v1278
          %1344 = vst.msk [vmem:[#allocation2 + $0x74] sm:$0xf] %vm1314, %v1279
          %1345 = vst.msk [vmem:[#allocation2 + $0x78] sm:$0xf] %vm1314, %v1280
          %1346 = vst.msk [vmem:[#allocation2 + $0x7c] sm:$0xf] %vm1314, %v1281
          %1347 = vrot.lane.b32.xlu0 %v1250, 64
          %v1348 = vpop.permute.xlu0 %1347
          %1349 = vrot.lane.b32.xlu0 %v1251, 64
          %v1350 = vpop.permute.xlu0 %1349
          %1351 = vrot.lane.b32.xlu0 %v1252, 64
          %v1352 = vpop.permute.xlu0 %1351
          %1353 = vrot.lane.b32.xlu0 %v1253, 64
          %v1354 = vpop.permute.xlu0 %1353
          %1355 = vrot.lane.b32.xlu0 %v1254, 64
          %v1356 = vpop.permute.xlu0 %1355
          %1357 = vrot.lane.b32.xlu0 %v1255, 64
          %v1358 = vpop.permute.xlu0 %1357
          %1359 = vrot.lane.b32.xlu0 %v1256, 64
          %v1360 = vpop.permute.xlu0 %1359
          %1361 = vrot.lane.b32.xlu0 %v1257, 64
          %v1362 = vpop.permute.xlu0 %1361
          %1363 = vrot.lane.b32.xlu0 %v1258, 64
          %v1364 = vpop.permute.xlu0 %1363
          %1365 = vrot.lane.b32.xlu0 %v1259, 64
          %v1366 = vpop.permute.xlu0 %1365
          %1367 = vrot.lane.b32.xlu0 %v1260, 64
          %v1368 = vpop.permute.xlu0 %1367
          %1369 = vrot.lane.b32.xlu0 %v1261, 64
          %v1370 = vpop.permute.xlu0 %1369
          %1371 = vrot.lane.b32.xlu0 %v1262, 64
          %v1372 = vpop.permute.xlu0 %1371
          %1373 = vrot.lane.b32.xlu0 %v1263, 64
          %v1374 = vpop.permute.xlu0 %1373
          %1375 = vrot.lane.b32.xlu0 %v1264, 64
          %v1376 = vpop.permute.xlu0 %1375
          %1377 = vrot.lane.b32.xlu0 %v1265, 64
          %v1378 = vpop.permute.xlu0 %1377
          %1379 = vrot.lane.b32.xlu0 %v1266, 64
          %v1380 = vpop.permute.xlu0 %1379
          %1381 = vrot.lane.b32.xlu0 %v1267, 64
          %v1382 = vpop.permute.xlu0 %1381
          %1383 = vrot.lane.b32.xlu0 %v1268, 64
          %v1384 = vpop.permute.xlu0 %1383
          %1385 = vrot.lane.b32.xlu0 %v1269, 64
          %v1386 = vpop.permute.xlu0 %1385
          %1387 = vrot.lane.b32.xlu0 %v1270, 64
          %v1388 = vpop.permute.xlu0 %1387
          %1389 = vrot.lane.b32.xlu0 %v1271, 64
          %v1390 = vpop.permute.xlu0 %1389
          %1391 = vrot.lane.b32.xlu0 %v1272, 64
          %v1392 = vpop.permute.xlu0 %1391
          %1393 = vrot.lane.b32.xlu0 %v1273, 64
          %v1394 = vpop.permute.xlu0 %1393
          %1395 = vrot.lane.b32.xlu0 %v1274, 64
          %v1396 = vpop.permute.xlu0 %1395
          %1397 = vrot.lane.b32.xlu0 %v1275, 64
          %v1398 = vpop.permute.xlu0 %1397
          %1399 = vrot.lane.b32.xlu0 %v1276, 64
          %v1400 = vpop.permute.xlu0 %1399
          %1401 = vrot.lane.b32.xlu0 %v1277, 64
          %v1402 = vpop.permute.xlu0 %1401
          %1403 = vrot.lane.b32.xlu0 %v1278, 64
          %v1404 = vpop.permute.xlu0 %1403
          %1405 = vrot.lane.b32.xlu0 %v1279, 64
          %v1406 = vpop.permute.xlu0 %1405
          %1407 = vrot.lane.b32.xlu0 %v1280, 64
          %v1408 = vpop.permute.xlu0 %1407
          %1409 = vrot.lane.b32.xlu0 %v1281, 64
          %v1410 = vpop.permute.xlu0 %1409
          %1443 = vst.msk [vmem:[#allocation3] sm:$0xf] %vm1314, %v1348
          %1444 = vst.msk [vmem:[#allocation3 + $0x4] sm:$0xf] %vm1314, %v1350
          %1445 = vst.msk [vmem:[#allocation3 + $0x8] sm:$0xf] %vm1314, %v1352
          %1446 = vst.msk [vmem:[#allocation3 + $0xc] sm:$0xf] %vm1314, %v1354
          %1447 = vst.msk [vmem:[#allocation3 + $0x10] sm:$0xf] %vm1314, %v1356
          %1448 = vst.msk [vmem:[#allocation3 + $0x14] sm:$0xf] %vm1314, %v1358
          %1449 = vst.msk [vmem:[#allocation3 + $0x18] sm:$0xf] %vm1314, %v1360
          %1450 = vst.msk [vmem:[#allocation3 + $0x1c] sm:$0xf] %vm1314, %v1362
          %1451 = vst.msk [vmem:[#allocation3 + $0x20] sm:$0xf] %vm1314, %v1364
          %1452 = vst.msk [vmem:[#allocation3 + $0x24] sm:$0xf] %vm1314, %v1366
          %1453 = vst.msk [vmem:[#allocation3 + $0x28] sm:$0xf] %vm1314, %v1368
          %1454 = vst.msk [vmem:[#allocation3 + $0x2c] sm:$0xf] %vm1314, %v1370
          %1455 = vst.msk [vmem:[#allocation3 + $0x30] sm:$0xf] %vm1314, %v1372
          %1456 = vst.msk [vmem:[#allocation3 + $0x34] sm:$0xf] %vm1314, %v1374
          %1457 = vst.msk [vmem:[#allocation3 + $0x38] sm:$0xf] %vm1314, %v1376
          %1458 = vst.msk [vmem:[#allocation3 + $0x3c] sm:$0xf] %vm1314, %v1378
          %1459 = vst.msk [vmem:[#allocation3 + $0x40] sm:$0xf] %vm1314, %v1380
          %1460 = vst.msk [vmem:[#allocation3 + $0x44] sm:$0xf] %vm1314, %v1382
          %1461 = vst.msk [vmem:[#allocation3 + $0x48] sm:$0xf] %vm1314, %v1384
          %1462 = vst.msk [vmem:[#allocation3 + $0x4c] sm:$0xf] %vm1314, %v1386
          %1463 = vst.msk [vmem:[#allocation3 + $0x50] sm:$0xf] %vm1314, %v1388
          %1464 = vst.msk [vmem:[#allocation3 + $0x54] sm:$0xf] %vm1314, %v1390
          %1465 = vst.msk [vmem:[#allocation3 + $0x58] sm:$0xf] %vm1314, %v1392
          %1466 = vst.msk [vmem:[#allocation3 + $0x5c] sm:$0xf] %vm1314, %v1394
          %1467 = vst.msk [vmem:[#allocation3 + $0x60] sm:$0xf] %vm1314, %v1396
          %1468 = vst.msk [vmem:[#allocation3 + $0x64] sm:$0xf] %vm1314, %v1398
          %1469 = vst.msk [vmem:[#allocation3 + $0x68] sm:$0xf] %vm1314, %v1400
          %1470 = vst.msk [vmem:[#allocation3 + $0x6c] sm:$0xf] %vm1314, %v1402
          %1471 = vst.msk [vmem:[#allocation3 + $0x70] sm:$0xf] %vm1314, %v1404
          %1472 = vst.msk [vmem:[#allocation3 + $0x74] sm:$0xf] %vm1314, %v1406
          %1473 = vst.msk [vmem:[#allocation3 + $0x78] sm:$0xf] %vm1314, %v1408
          %1474 = vst.msk [vmem:[#allocation3 + $0x7c] sm:$0xf] %vm1314, %v1410
          %v1475 = vpack.c.bf16 %v1034, %v1030
          %v1476 = vpack.c.bf16 %v1044, %v1040
          %v1477 = vpack.c.bf16 %v1054, %v1050
          %v1478 = vpack.c.bf16 %v1064, %v1060
          %v1479 = vpack.c.bf16 %v1074, %v1070
          %v1480 = vpack.c.bf16 %v1084, %v1080
          %v1481 = vpack.c.bf16 %v1094, %v1090
          %v1482 = vpack.c.bf16 %v1104, %v1100
          %v1483 = vpack.c.bf16 %v1114, %v1110
          %v1484 = vpack.c.bf16 %v1124, %v1120
          %v1485 = vpack.c.bf16 %v1134, %v1130
          %v1486 = vpack.c.bf16 %v1144, %v1140
          %v1487 = vpack.c.bf16 %v1154, %v1150
          %v1488 = vpack.c.bf16 %v1164, %v1160
          %v1489 = vpack.c.bf16 %v1174, %v1170
          %v1490 = vpack.c.bf16 %v1184, %v1180
          %v1507 = vunpack.c.l.b16 %v1475
          %v1508 = vunpack.c.h.b16 %v1475
          %v1509 = vunpack.c.l.b16 %v1476
          %v1510 = vunpack.c.h.b16 %v1476
          %v1511 = vunpack.c.l.b16 %v1477
          %v1512 = vunpack.c.h.b16 %v1477
          %v1513 = vunpack.c.l.b16 %v1478
          %v1514 = vunpack.c.h.b16 %v1478
          %v1515 = vunpack.c.l.b16 %v1479
          %v1516 = vunpack.c.h.b16 %v1479
          %v1517 = vunpack.c.l.b16 %v1480
          %v1518 = vunpack.c.h.b16 %v1480
          %v1519 = vunpack.c.l.b16 %v1481
          %v1520 = vunpack.c.h.b16 %v1481
          %v1521 = vunpack.c.l.b16 %v1482
          %v1522 = vunpack.c.h.b16 %v1482
          %v1523 = vunpack.c.l.b16 %v1483
          %v1524 = vunpack.c.h.b16 %v1483
          %v1525 = vunpack.c.l.b16 %v1484
          %v1526 = vunpack.c.h.b16 %v1484
          %v1527 = vunpack.c.l.b16 %v1485
          %v1528 = vunpack.c.h.b16 %v1485
          %v1529 = vunpack.c.l.b16 %v1486
          %v1530 = vunpack.c.h.b16 %v1486
          %v1531 = vunpack.c.l.b16 %v1487
          %v1532 = vunpack.c.h.b16 %v1487
          %v1533 = vunpack.c.l.b16 %v1488
          %v1534 = vunpack.c.h.b16 %v1488
          %v1535 = vunpack.c.l.b16 %v1489
          %v1536 = vunpack.c.h.b16 %v1489
          %v1537 = vunpack.c.l.b16 %v1490
          %v1538 = vunpack.c.h.b16 %v1490
          %v1539 = vpack.c.b16 %v1507, %v1507
          %v1540 = vpack.c.b16 %v1508, %v1508
          %v1541 = vpack.c.b16 %v1509, %v1509
          %v1542 = vpack.c.b16 %v1510, %v1510
          %v1543 = vpack.c.b16 %v1511, %v1511
          %v1544 = vpack.c.b16 %v1512, %v1512
          %v1545 = vpack.c.b16 %v1513, %v1513
          %v1546 = vpack.c.b16 %v1514, %v1514
          %v1547 = vpack.c.b16 %v1515, %v1515
          %v1548 = vpack.c.b16 %v1516, %v1516
          %v1549 = vpack.c.b16 %v1517, %v1517
          %v1550 = vpack.c.b16 %v1518, %v1518
          %v1551 = vpack.c.b16 %v1519, %v1519
          %v1552 = vpack.c.b16 %v1520, %v1520
          %v1553 = vpack.c.b16 %v1521, %v1521
          %v1554 = vpack.c.b16 %v1522, %v1522
          %v1555 = vpack.c.b16 %v1523, %v1523
          %v1556 = vpack.c.b16 %v1524, %v1524
          %v1557 = vpack.c.b16 %v1525, %v1525
          %v1558 = vpack.c.b16 %v1526, %v1526
          %v1559 = vpack.c.b16 %v1527, %v1527
          %v1560 = vpack.c.b16 %v1528, %v1528
          %v1561 = vpack.c.b16 %v1529, %v1529
          %v1562 = vpack.c.b16 %v1530, %v1530
          %v1563 = vpack.c.b16 %v1531, %v1531
          %v1564 = vpack.c.b16 %v1532, %v1532
          %v1565 = vpack.c.b16 %v1533, %v1533
          %v1566 = vpack.c.b16 %v1534, %v1534
          %v1567 = vpack.c.b16 %v1535, %v1535
          %v1568 = vpack.c.b16 %v1536, %v1536
          %v1569 = vpack.c.b16 %v1537, %v1537
          %v1570 = vpack.c.b16 %v1538, %v1538
          %1603 = vst.msk [vmem:[#allocation4] sm:$0xf] %vm1314, %v1539
          %1604 = vst.msk [vmem:[#allocation4 + $0x4] sm:$0xf] %vm1314, %v1540
          %1605 = vst.msk [vmem:[#allocation4 + $0x8] sm:$0xf] %vm1314, %v1541
          %1606 = vst.msk [vmem:[#allocation4 + $0xc] sm:$0xf] %vm1314, %v1542
          %1607 = vst.msk [vmem:[#allocation4 + $0x10] sm:$0xf] %vm1314, %v1543
          %1608 = vst.msk [vmem:[#allocation4 + $0x14] sm:$0xf] %vm1314, %v1544
          %1609 = vst.msk [vmem:[#allocation4 + $0x18] sm:$0xf] %vm1314, %v1545
          %1610 = vst.msk [vmem:[#allocation4 + $0x1c] sm:$0xf] %vm1314, %v1546
          %1611 = vst.msk [vmem:[#allocation4 + $0x20] sm:$0xf] %vm1314, %v1547
          %1612 = vst.msk [vmem:[#allocation4 + $0x24] sm:$0xf] %vm1314, %v1548
          %1613 = vst.msk [vmem:[#allocation4 + $0x28] sm:$0xf] %vm1314, %v1549
          %1614 = vst.msk [vmem:[#allocation4 + $0x2c] sm:$0xf] %vm1314, %v1550
          %1615 = vst.msk [vmem:[#allocation4 + $0x30] sm:$0xf] %vm1314, %v1551
          %1616 = vst.msk [vmem:[#allocation4 + $0x34] sm:$0xf] %vm1314, %v1552
          %1617 = vst.msk [vmem:[#allocation4 + $0x38] sm:$0xf] %vm1314, %v1553
          %1618 = vst.msk [vmem:[#allocation4 + $0x3c] sm:$0xf] %vm1314, %v1554
          %1619 = vst.msk [vmem:[#allocation4 + $0x40] sm:$0xf] %vm1314, %v1555
          %1620 = vst.msk [vmem:[#allocation4 + $0x44] sm:$0xf] %vm1314, %v1556
          %1621 = vst.msk [vmem:[#allocation4 + $0x48] sm:$0xf] %vm1314, %v1557
          %1622 = vst.msk [vmem:[#allocation4 + $0x4c] sm:$0xf] %vm1314, %v1558
          %1623 = vst.msk [vmem:[#allocation4 + $0x50] sm:$0xf] %vm1314, %v1559
          %1624 = vst.msk [vmem:[#allocation4 + $0x54] sm:$0xf] %vm1314, %v1560
          %1625 = vst.msk [vmem:[#allocation4 + $0x58] sm:$0xf] %vm1314, %v1561
          %1626 = vst.msk [vmem:[#allocation4 + $0x5c] sm:$0xf] %vm1314, %v1562
          %1627 = vst.msk [vmem:[#allocation4 + $0x60] sm:$0xf] %vm1314, %v1563
          %1628 = vst.msk [vmem:[#allocation4 + $0x64] sm:$0xf] %vm1314, %v1564
          %1629 = vst.msk [vmem:[#allocation4 + $0x68] sm:$0xf] %vm1314, %v1565
          %1630 = vst.msk [vmem:[#allocation4 + $0x6c] sm:$0xf] %vm1314, %v1566
          %1631 = vst.msk [vmem:[#allocation4 + $0x70] sm:$0xf] %vm1314, %v1567
          %1632 = vst.msk [vmem:[#allocation4 + $0x74] sm:$0xf] %vm1314, %v1568
          %1633 = vst.msk [vmem:[#allocation4 + $0x78] sm:$0xf] %vm1314, %v1569
          %1634 = vst.msk [vmem:[#allocation4 + $0x7c] sm:$0xf] %vm1314, %v1570
        $region36: #{tpu_custom_call.1} parent=27 // pred_fallthru
          _
        %vm1635 = vcmask 7168
        %1636 = vst.msk [vmem:[#allocation5] sm:$0xff] %vm1635, -inf
        %1637 = vst.msk [vmem:[#allocation5 + $0x8] sm:$0xff] %vm1635, -inf
        %1638 = vst.msk [vmem:[#allocation5 + $0x10] sm:$0xff] %vm1635, -inf
        %1639 = vst.msk [vmem:[#allocation5 + $0x18] sm:$0xff] %vm1635, -inf
        %1640 = vst.msk [vmem:[#allocation5 + $0x20] sm:$0xff] %vm1635, -inf
        %1641 = vst.msk [vmem:[#allocation5 + $0x28] sm:$0xff] %vm1635, -inf
        %1642 = vst.msk [vmem:[#allocation5 + $0x30] sm:$0xff] %vm1635, -inf
        %1643 = vst.msk [vmem:[#allocation5 + $0x38] sm:$0xff] %vm1635, -inf
        %1644 = vst.msk [vmem:[#allocation5 + $0x40] sm:$0xff] %vm1635, -inf
        %1645 = vst.msk [vmem:[#allocation5 + $0x48] sm:$0xff] %vm1635, -inf
        %1646 = vst.msk [vmem:[#allocation5 + $0x50] sm:$0xff] %vm1635, -inf
        %1647 = vst.msk [vmem:[#allocation5 + $0x58] sm:$0xff] %vm1635, -inf
        %1648 = vst.msk [vmem:[#allocation5 + $0x60] sm:$0xff] %vm1635, -inf
        %1649 = vst.msk [vmem:[#allocation5 + $0x68] sm:$0xff] %vm1635, -inf
        %1650 = vst.msk [vmem:[#allocation5 + $0x70] sm:$0xff] %vm1635, -inf
        %1651 = vst.msk [vmem:[#allocation5 + $0x78] sm:$0xff] %vm1635, -inf
        %1652 = vst.msk [vmem:[#allocation6] sm:$0xff] %vm1635, 0.0
        %1653 = vst.msk [vmem:[#allocation6 + $0x8] sm:$0xff] %vm1635, 0.0
        %1654 = vst.msk [vmem:[#allocation6 + $0x10] sm:$0xff] %vm1635, 0.0
        %1655 = vst.msk [vmem:[#allocation6 + $0x18] sm:$0xff] %vm1635, 0.0
        %1656 = vst.msk [vmem:[#allocation6 + $0x20] sm:$0xff] %vm1635, 0.0
        %1657 = vst.msk [vmem:[#allocation6 + $0x28] sm:$0xff] %vm1635, 0.0
        %1658 = vst.msk [vmem:[#allocation6 + $0x30] sm:$0xff] %vm1635, 0.0
        %1659 = vst.msk [vmem:[#allocation6 + $0x38] sm:$0xff] %vm1635, 0.0
        %1660 = vst.msk [vmem:[#allocation6 + $0x40] sm:$0xff] %vm1635, 0.0
        %1661 = vst.msk [vmem:[#allocation6 + $0x48] sm:$0xff] %vm1635, 0.0
        %1662 = vst.msk [vmem:[#allocation6 + $0x50] sm:$0xff] %vm1635, 0.0
        %1663 = vst.msk [vmem:[#allocation6 + $0x58] sm:$0xff] %vm1635, 0.0
        %1664 = vst.msk [vmem:[#allocation6 + $0x60] sm:$0xff] %vm1635, 0.0
        %1665 = vst.msk [vmem:[#allocation6 + $0x68] sm:$0xff] %vm1635, 0.0
        %1666 = vst.msk [vmem:[#allocation6 + $0x70] sm:$0xff] %vm1635, 0.0
        %1667 = vst.msk [vmem:[#allocation6 + $0x78] sm:$0xff] %vm1635, 0.0
        %vm1668 = vcmask 523264
        %1669 = vst.msk [vmem:[#allocation7] sm:$0xff] %vm1668, 0.0
        %1670 = vst.msk [vmem:[#allocation7 + $0x8] sm:$0xff] %vm1668, 0.0
        %1671 = vst.msk [vmem:[#allocation7 + $0x10] sm:$0xff] %vm1668, 0.0
        %1672 = vst.msk [vmem:[#allocation7 + $0x18] sm:$0xff] %vm1668, 0.0
        %1673 = vst.msk [vmem:[#allocation7 + $0x20] sm:$0xff] %vm1668, 0.0
        %1674 = vst.msk [vmem:[#allocation7 + $0x28] sm:$0xff] %vm1668, 0.0
        %1675 = vst.msk [vmem:[#allocation7 + $0x30] sm:$0xff] %vm1668, 0.0
        %1676 = vst.msk [vmem:[#allocation7 + $0x38] sm:$0xff] %vm1668, 0.0
        %1677 = vst.msk [vmem:[#allocation7 + $0x40] sm:$0xff] %vm1668, 0.0
        %1678 = vst.msk [vmem:[#allocation7 + $0x48] sm:$0xff] %vm1668, 0.0
        %1679 = vst.msk [vmem:[#allocation7 + $0x50] sm:$0xff] %vm1668, 0.0
        %1680 = vst.msk [vmem:[#allocation7 + $0x58] sm:$0xff] %vm1668, 0.0
        %1681 = vst.msk [vmem:[#allocation7 + $0x60] sm:$0xff] %vm1668, 0.0
        %1682 = vst.msk [vmem:[#allocation7 + $0x68] sm:$0xff] %vm1668, 0.0
        %1683 = vst.msk [vmem:[#allocation7 + $0x70] sm:$0xff] %vm1668, 0.0
        %1684 = vst.msk [vmem:[#allocation7 + $0x78] sm:$0xff] %vm1668, 0.0
        %s1685 = smul.u32 %s21, 128
        %s1686 = sshra.s32 %s1685, 3
        %s1687 = sand.u32 %s1685, 7
        %s1688 = smul.addr %s1686, 4
        %s1689 = scalar_lea.vmem [#allocation2], %s1688
        %v1690 = vld [vmem:[%s1689] sm:$0xf]
        %v1691 = vld [vmem:[%s1689 + $0x4] sm:$0xf]
        %v1692 = vld [vmem:[%s1689 + $0x8] sm:$0xf]
        %v1693 = vld [vmem:[%s1689 + $0xc] sm:$0xf]
        %v1694 = vld [vmem:[%s1689 + $0x10] sm:$0xf]
        %v1695 = vld [vmem:[%s1689 + $0x14] sm:$0xf]
        %v1696 = vld [vmem:[%s1689 + $0x18] sm:$0xf]
        %v1697 = vld [vmem:[%s1689 + $0x1c] sm:$0xf]
        %v1698 = vld [vmem:[%s1689 + $0x20] sm:$0xf]
        %v1699 = vld [vmem:[%s1689 + $0x24] sm:$0xf]
        %v1700 = vld [vmem:[%s1689 + $0x28] sm:$0xf]
        %v1701 = vld [vmem:[%s1689 + $0x2c] sm:$0xf]
        %v1702 = vld [vmem:[%s1689 + $0x30] sm:$0xf]
        %v1703 = vld [vmem:[%s1689 + $0x34] sm:$0xf]
        %v1704 = vld [vmem:[%s1689 + $0x38] sm:$0xf]
        %v1705 = vld [vmem:[%s1689 + $0x3c] sm:$0xf]
        // While loop
        $region37: #{tpu_custom_call.1} parent=27 // loop_pre_header
          _
        $region38: #{tpu_custom_call.1} parent=27 // loop_header
          %s1707 = sphi 0, %s1709
          %p1708 = scmp.ge.s32.totalorder %s1707, %s21
        $region39: #{tpu_custom_call.1} parent=27 // loop_header_branch
          %1711 = sbr.rel (%p1708) target = $region43
        $region40: #{tpu_custom_call.1} parent=27 // loop_body
          %s1712 = smul.u32 %s1707, 128
          %s1713 = sshra.s32 %s1712, 3
          %s1714 = sand.u32 %s1712, 7
          %s1715 = smul.addr %s1713, 4
          %s1716 = scalar_lea.vmem [#allocation3], %s1715
          %v1717 = vld [vmem:[%s1716] sm:$0xf]
          %v1718 = vld [vmem:[%s1716 + $0x4] sm:$0xf]
          %v1719 = vld [vmem:[%s1716 + $0x8] sm:$0xf]
          %v1720 = vld [vmem:[%s1716 + $0xc] sm:$0xf]
          %v1721 = vld [vmem:[%s1716 + $0x10] sm:$0xf]
          %v1722 = vld [vmem:[%s1716 + $0x14] sm:$0xf]
          %v1723 = vld [vmem:[%s1716 + $0x18] sm:$0xf]
          %v1724 = vld [vmem:[%s1716 + $0x1c] sm:$0xf]
          %v1725 = vld [vmem:[%s1716 + $0x20] sm:$0xf]
          %v1726 = vld [vmem:[%s1716 + $0x24] sm:$0xf]
          %v1727 = vld [vmem:[%s1716 + $0x28] sm:$0xf]
          %v1728 = vld [vmem:[%s1716 + $0x2c] sm:$0xf]
          %v1729 = vld [vmem:[%s1716 + $0x30] sm:$0xf]
          %v1730 = vld [vmem:[%s1716 + $0x34] sm:$0xf]
          %v1731 = vld [vmem:[%s1716 + $0x38] sm:$0xf]
          %v1732 = vld [vmem:[%s1716 + $0x3c] sm:$0xf]
          %s1733 = smul.addr %s1713, 4
          %s1734 = scalar_lea.vmem [#allocation4], %s1733
          %v1735 = vld [vmem:[%s1734] sm:$0xf]
          %v1736 = vld [vmem:[%s1734 + $0x4] sm:$0xf]
          %v1737 = vld [vmem:[%s1734 + $0x8] sm:$0xf]
          %v1738 = vld [vmem:[%s1734 + $0xc] sm:$0xf]
          %v1739 = vld [vmem:[%s1734 + $0x10] sm:$0xf]
          %v1740 = vld [vmem:[%s1734 + $0x14] sm:$0xf]
          %v1741 = vld [vmem:[%s1734 + $0x18] sm:$0xf]
          %v1742 = vld [vmem:[%s1734 + $0x1c] sm:$0xf]
          %v1743 = vld [vmem:[%s1734 + $0x20] sm:$0xf]
          %v1744 = vld [vmem:[%s1734 + $0x24] sm:$0xf]
          %v1745 = vld [vmem:[%s1734 + $0x28] sm:$0xf]
          %v1746 = vld [vmem:[%s1734 + $0x2c] sm:$0xf]
          %v1747 = vld [vmem:[%s1734 + $0x30] sm:$0xf]
          %v1748 = vld [vmem:[%s1734 + $0x34] sm:$0xf]
          %v1749 = vld [vmem:[%s1734 + $0x38] sm:$0xf]
          %v1750 = vld [vmem:[%s1734 + $0x3c] sm:$0xf]
          %v1767 = vunpack.c.l.b16 %v1690
          %v1768 = vunpack.c.l.b16 %v1691
          %v1769 = vunpack.c.l.b16 %v1692
          %v1770 = vunpack.c.l.b16 %v1693
          %v1771 = vunpack.c.l.b16 %v1694
          %v1772 = vunpack.c.l.b16 %v1695
          %v1773 = vunpack.c.l.b16 %v1696
          %v1774 = vunpack.c.l.b16 %v1697
          %v1775 = vunpack.c.l.b16 %v1698
          %v1776 = vunpack.c.l.b16 %v1699
          %v1777 = vunpack.c.l.b16 %v1700
          %v1778 = vunpack.c.l.b16 %v1701
          %v1779 = vunpack.c.l.b16 %v1702
          %v1780 = vunpack.c.l.b16 %v1703
          %v1781 = vunpack.c.l.b16 %v1704
          %v1782 = vunpack.c.l.b16 %v1705
          %v1783 = vpack.c.b16 %v1768, %v1767
          %v1784 = vpack.c.b16 %v1770, %v1769
          %v1785 = vpack.c.b16 %v1772, %v1771
          %v1786 = vpack.c.b16 %v1774, %v1773
          %v1787 = vpack.c.b16 %v1776, %v1775
          %v1788 = vpack.c.b16 %v1778, %v1777
          %v1789 = vpack.c.b16 %v1780, %v1779
          %v1790 = vpack.c.b16 %v1782, %v1781
          %v1807 = vunpack.c.l.b16 %v1717
          %v1808 = vunpack.c.l.b16 %v1718
          %v1809 = vunpack.c.l.b16 %v1719
          %v1810 = vunpack.c.l.b16 %v1720
          %v1811 = vunpack.c.l.b16 %v1721
          %v1812 = vunpack.c.l.b16 %v1722
          %v1813 = vunpack.c.l.b16 %v1723
          %v1814 = vunpack.c.l.b16 %v1724
          %v1815 = vunpack.c.l.b16 %v1725
          %v1816 = vunpack.c.l.b16 %v1726
          %v1817 = vunpack.c.l.b16 %v1727
          %v1818 = vunpack.c.l.b16 %v1728
          %v1819 = vunpack.c.l.b16 %v1729
          %v1820 = vunpack.c.l.b16 %v1730
          %v1821 = vunpack.c.l.b16 %v1731
          %v1822 = vunpack.c.l.b16 %v1732
          %v1823 = vpack.c.b16 %v1808, %v1807
          %v1824 = vpack.c.b16 %v1810, %v1809
          %v1825 = vpack.c.b16 %v1812, %v1811
          %v1826 = vpack.c.b16 %v1814, %v1813
          %v1827 = vpack.c.b16 %v1816, %v1815
          %v1828 = vpack.c.b16 %v1818, %v1817
          %v1829 = vpack.c.b16 %v1820, %v1819
          %v1830 = vpack.c.b16 %v1822, %v1821
          %v1832 = vsel %vm1668, %v1783, 0
          %v1835 = vsel %vm1668, %v1784, 0
          %v1838 = vsel %vm1668, %v1785, 0
          %v1841 = vsel %vm1668, %v1786, 0
          %v1844 = vsel %vm1668, %v1787, 0
          %v1847 = vsel %vm1668, %v1788, 0
          %v1850 = vsel %vm1668, %v1789, 0
          %v1853 = vsel %vm1668, %v1790, 0
          %v1856 = vsel %vm1668, %v1823, 0
          %v1859 = vsel %vm1668, %v1824, 0
          %v1862 = vsel %vm1668, %v1825, 0
          %v1865 = vsel %vm1668, %v1826, 0
          %v1868 = vsel %vm1668, %v1827, 0
          %v1871 = vsel %vm1668, %v1828, 0
          %v1874 = vsel %vm1668, %v1829, 0
          %v1877 = vsel %vm1668, %v1830, 0
          %1879 = vmatprep.subr.bf16.mxu0 0
          %1880 = vmatpush1.bf16.xpose.msra.mxu0 %v1877
          %1881 = vmatprep.subr.bf16.mxu0 0
          %1882 = vmatpush1.bf16.xpose.msra.mxu0 %v1874
          %1883 = vmatprep.subr.bf16.mxu0 0
          %1884 = vmatpush1.bf16.xpose.msra.mxu0 %v1871
          %1885 = vmatprep.subr.bf16.mxu0 0
          %1886 = vmatpush1.bf16.xpose.msra.mxu0 %v1868
          %1887 = vmatprep.subr.bf16.mxu0 0
          %1888 = vmatpush1.bf16.xpose.msra.mxu0 %v1865
          %1889 = vmatprep.subr.bf16.mxu0 0
          %1890 = vmatpush1.bf16.xpose.msra.mxu0 %v1862
          %1891 = vmatprep.subr.bf16.mxu0 0
          %1892 = vmatpush1.bf16.xpose.msra.mxu0 %v1859
          %1893 = vmatprep.subr.bf16.mxu0 0
          %1894 = vmatpush1.bf16.xpose.msra.mxu0 %v1856
          %1895 = vmatprep.subr.bf16.mxu0 0
          %1896 = vmatpush2.bf16.xpose.msra.mxu0 0
          %1897 = vmatprep.subr.bf16.mxu0 0
          %1898 = vmatpush2.bf16.xpose.msra.mxu0 0
          %1899 = vmatprep.subr.bf16.mxu0 0
          %1900 = vmatpush2.bf16.xpose.msra.mxu0 0
          %1901 = vmatprep.subr.bf16.mxu0 0
          %1902 = vmatpush2.bf16.xpose.msra.mxu0 0
          %1903 = vmatprep.subr.bf16.mxu0 0
          %1904 = vmatpush2.bf16.xpose.msra.mxu0 0
          %1905 = vmatprep.subr.bf16.mxu0 0
          %1906 = vmatpush2.bf16.xpose.msra.mxu0 0
          %1907 = vmatprep.subr.bf16.mxu0 0
          %1908 = vmatpush2.bf16.xpose.msra.mxu0 0
          %1909 = vmatprep.subr.bf16.mxu0 0
          %1910 = vmatpush2.bf16.xpose.msra.mxu0 0
          %1911 = vmatprep.mubr.bf16.mxu0 0
          %1912 = vmatmul.mubr.bf16.gmra.mxu0 %v1832
          %v1913 = vpop.f32.mrf.mxu0
          %v1914 = vadd.f32 0.0, %v1913
          %v1915 = vpop.f32.mrf.mxu0
          %v1916 = vpop.f32.mrf.mxu0
          %v1917 = vadd.f32 0.0, %v1916
          %v1918 = vpop.f32.mrf.mxu0
          %1919 = vmatprep.mubr.bf16.mxu0 0
          %1920 = vmatmul.mubr.bf16.gmra.mxu0 %v1835
          %v1921 = vpop.f32.mrf.mxu0
          %v1922 = vadd.f32 0.0, %v1921
          %v1923 = vpop.f32.mrf.mxu0
          %v1924 = vpop.f32.mrf.mxu0
          %v1925 = vadd.f32 0.0, %v1924
          %v1926 = vpop.f32.mrf.mxu0
          %1927 = vmatprep.mubr.bf16.mxu0 0
          %1928 = vmatmul.mubr.bf16.gmra.mxu0 %v1838
          %v1929 = vpop.f32.mrf.mxu0
          %v1930 = vadd.f32 0.0, %v1929
          %v1931 = vpop.f32.mrf.mxu0
          %v1932 = vpop.f32.mrf.mxu0
          %v1933 = vadd.f32 0.0, %v1932
          %v1934 = vpop.f32.mrf.mxu0
          %1935 = vmatprep.mubr.bf16.mxu0 0
          %1936 = vmatmul.mubr.bf16.gmra.mxu0 %v1841
          %v1937 = vpop.f32.mrf.mxu0
          %v1938 = vadd.f32 0.0, %v1937
          %v1939 = vpop.f32.mrf.mxu0
          %v1940 = vpop.f32.mrf.mxu0
          %v1941 = vadd.f32 0.0, %v1940
          %v1942 = vpop.f32.mrf.mxu0
          %1943 = vmatprep.mubr.bf16.mxu0 0
          %1944 = vmatmul.mubr.bf16.gmra.mxu0 %v1844
          %v1945 = vpop.f32.mrf.mxu0
          %v1946 = vadd.f32 0.0, %v1945
          %v1947 = vpop.f32.mrf.mxu0
          %v1948 = vpop.f32.mrf.mxu0
          %v1949 = vadd.f32 0.0, %v1948
          %v1950 = vpop.f32.mrf.mxu0
          %1951 = vmatprep.mubr.bf16.mxu0 0
          %1952 = vmatmul.mubr.bf16.gmra.mxu0 %v1847
          %v1953 = vpop.f32.mrf.mxu0
          %v1954 = vadd.f32 0.0, %v1953
          %v1955 = vpop.f32.mrf.mxu0
          %v1956 = vpop.f32.mrf.mxu0
          %v1957 = vadd.f32 0.0, %v1956
          %v1958 = vpop.f32.mrf.mxu0
          %1959 = vmatprep.mubr.bf16.mxu0 0
          %1960 = vmatmul.mubr.bf16.gmra.mxu0 %v1850
          %v1961 = vpop.f32.mrf.mxu0
          %v1962 = vadd.f32 0.0, %v1961
          %v1963 = vpop.f32.mrf.mxu0
          %v1964 = vpop.f32.mrf.mxu0
          %v1965 = vadd.f32 0.0, %v1964
          %v1966 = vpop.f32.mrf.mxu0
          %1967 = vmatprep.mubr.bf16.mxu0 0
          %1968 = vmatmul.mubr.bf16.gmra.mxu0 %v1853
          %v1969 = vpop.f32.mrf.mxu0
          %v1970 = vadd.f32 0.0, %v1969
          %v1971 = vpop.f32.mrf.mxu0
          %v1972 = vpop.f32.mrf.mxu0
          %v1973 = vadd.f32 0.0, %v1972
          %v1974 = vpop.f32.mrf.mxu0
          %1975 = vdwg.mxu0
          %v1976 = vld [vmem:[#allocation5] sm:$0xff]
          %v1977 = vld [vmem:[#allocation5 + $0x8] sm:$0xff]
          %v1978 = vld [vmem:[#allocation5 + $0x10] sm:$0xff]
          %v1979 = vld [vmem:[#allocation5 + $0x18] sm:$0xff]
          %v1980 = vld [vmem:[#allocation5 + $0x20] sm:$0xff]
          %v1981 = vld [vmem:[#allocation5 + $0x28] sm:$0xff]
          %v1982 = vld [vmem:[#allocation5 + $0x30] sm:$0xff]
          %v1983 = vld [vmem:[#allocation5 + $0x38] sm:$0xff]
          %v1984 = vld [vmem:[#allocation5 + $0x40] sm:$0xff]
          %v1985 = vld [vmem:[#allocation5 + $0x48] sm:$0xff]
          %v1986 = vld [vmem:[#allocation5 + $0x50] sm:$0xff]
          %v1987 = vld [vmem:[#allocation5 + $0x58] sm:$0xff]
          %v1988 = vld [vmem:[#allocation5 + $0x60] sm:$0xff]
          %v1989 = vld [vmem:[#allocation5 + $0x68] sm:$0xff]
          %v1990 = vld [vmem:[#allocation5 + $0x70] sm:$0xff]
          %v1991 = vld [vmem:[#allocation5 + $0x78] sm:$0xff]
          %1992 = vmax.xlane.f32.xlu0 %v1914
          %v1993 = vpop.xlane.xlu0 %1992
          %1994 = vmax.xlane.f32.xlu0 %v1917
          %v1995 = vpop.xlane.xlu0 %1994
          %1996 = vmax.xlane.f32.xlu0 %v1922
          %v1997 = vpop.xlane.xlu0 %1996
          %1998 = vmax.xlane.f32.xlu0 %v1925
          %v1999 = vpop.xlane.xlu0 %1998
          %2000 = vmax.xlane.f32.xlu0 %v1930
          %v2001 = vpop.xlane.xlu0 %2000
          %2002 = vmax.xlane.f32.xlu0 %v1933
          %v2003 = vpop.xlane.xlu0 %2002
          %2004 = vmax.xlane.f32.xlu0 %v1938
          %v2005 = vpop.xlane.xlu0 %2004
          %2006 = vmax.xlane.f32.xlu0 %v1941
          %v2007 = vpop.xlane.xlu0 %2006
          %2008 = vmax.xlane.f32.xlu0 %v1946
          %v2009 = vpop.xlane.xlu0 %2008
          %2010 = vmax.xlane.f32.xlu0 %v1949
          %v2011 = vpop.xlane.xlu0 %2010
          %2012 = vmax.xlane.f32.xlu0 %v1954
          %v2013 = vpop.xlane.xlu0 %2012
          %2014 = vmax.xlane.f32.xlu0 %v1957
          %v2015 = vpop.xlane.xlu0 %2014
          %2016 = vmax.xlane.f32.xlu0 %v1962
          %v2017 = vpop.xlane.xlu0 %2016
          %2018 = vmax.xlane.f32.xlu0 %v1965
          %v2019 = vpop.xlane.xlu0 %2018
          %2020 = vmax.xlane.f32.xlu0 %v1970
          %v2021 = vpop.xlane.xlu0 %2020
          %2022 = vmax.xlane.f32.xlu0 %v1973
          %v2023 = vpop.xlane.xlu0 %2022
          %v2024 = vmax.f32 %v1976, %v1993
          %v2025 = vmax.f32 %v1977, %v1995
          %v2026 = vmax.f32 %v1978, %v1997
          %v2027 = vmax.f32 %v1979, %v1999
          %v2028 = vmax.f32 %v1980, %v2001
          %v2029 = vmax.f32 %v1981, %v2003
          %v2030 = vmax.f32 %v1982, %v2005
          %v2031 = vmax.f32 %v1983, %v2007
          %v2032 = vmax.f32 %v1984, %v2009
          %v2033 = vmax.f32 %v1985, %v2011
          %v2034 = vmax.f32 %v1986, %v2013
          %v2035 = vmax.f32 %v1987, %v2015
          %v2036 = vmax.f32 %v1988, %v2017
          %v2037 = vmax.f32 %v1989, %v2019
          %v2038 = vmax.f32 %v1990, %v2021
          %v2039 = vmax.f32 %v1991, %v2023
          %v2040 = vsub.f32 %v1976, %v2024
          %v2041 = vsub.f32 %v1977, %v2025
          %v2042 = vsub.f32 %v1978, %v2026
          %v2043 = vsub.f32 %v1979, %v2027
          %v2044 = vsub.f32 %v1980, %v2028
          %v2045 = vsub.f32 %v1981, %v2029
          %v2046 = vsub.f32 %v1982, %v2030
          %v2047 = vsub.f32 %v1983, %v2031
          %v2048 = vsub.f32 %v1984, %v2032
          %v2049 = vsub.f32 %v1985, %v2033
          %v2050 = vsub.f32 %v1986, %v2034
          %v2051 = vsub.f32 %v1987, %v2035
          %v2052 = vsub.f32 %v1988, %v2036
          %v2053 = vsub.f32 %v1989, %v2037
          %v2054 = vsub.f32 %v1990, %v2038
          %v2055 = vsub.f32 %v1991, %v2039
          %v2056 = vmul.f32 %v2040, 1.442695
          %v2057 = vpow.pop %v2056
          %v2058 = vmul.f32 %v2041, 1.442695
          %v2059 = vpow.pop %v2058
          %v2060 = vmul.f32 %v2042, 1.442695
          %v2061 = vpow.pop %v2060
          %v2062 = vmul.f32 %v2043, 1.442695
          %v2063 = vpow.pop %v2062
          %v2064 = vmul.f32 %v2044, 1.442695
          %v2065 = vpow.pop %v2064
          %v2066 = vmul.f32 %v2045, 1.442695
          %v2067 = vpow.pop %v2066
          %v2068 = vmul.f32 %v2046, 1.442695
          %v2069 = vpow.pop %v2068
          %v2070 = vmul.f32 %v2047, 1.442695
          %v2071 = vpow.pop %v2070
          %v2072 = vmul.f32 %v2048, 1.442695
          %v2073 = vpow.pop %v2072
          %v2074 = vmul.f32 %v2049, 1.442695
          %v2075 = vpow.pop %v2074
          %v2076 = vmul.f32 %v2050, 1.442695
          %v2077 = vpow.pop %v2076
          %v2078 = vmul.f32 %v2051, 1.442695
          %v2079 = vpow.pop %v2078
          %v2080 = vmul.f32 %v2052, 1.442695
          %v2081 = vpow.pop %v2080
          %v2082 = vmul.f32 %v2053, 1.442695
          %v2083 = vpow.pop %v2082
          %v2084 = vmul.f32 %v2054, 1.442695
          %v2085 = vpow.pop %v2084
          %v2086 = vmul.f32 %v2055, 1.442695
          %v2087 = vpow.pop %v2086
          %2089 = vset.pattern.permute.xlu0 0
          %2090 = vperm.xlu0 %2089, %v2024
          %v2091 = vpop.permute.xlu0 %2090
          %2094 = vset.pattern.permute.xlu0 0
          %2095 = vperm.xlu0 %2094, %v2025
          %v2096 = vpop.permute.xlu0 %2095
          %2099 = vset.pattern.permute.xlu0 0
          %2100 = vperm.xlu0 %2099, %v2026
          %v2101 = vpop.permute.xlu0 %2100
          %2104 = vset.pattern.permute.xlu0 0
          %2105 = vperm.xlu0 %2104, %v2027
          %v2106 = vpop.permute.xlu0 %2105
          %2109 = vset.pattern.permute.xlu0 0
          %2110 = vperm.xlu0 %2109, %v2028
          %v2111 = vpop.permute.xlu0 %2110
          %2114 = vset.pattern.permute.xlu0 0
          %2115 = vperm.xlu0 %2114, %v2029
          %v2116 = vpop.permute.xlu0 %2115
          %2119 = vset.pattern.permute.xlu0 0
          %2120 = vperm.xlu0 %2119, %v2030
          %v2121 = vpop.permute.xlu0 %2120
          %2124 = vset.pattern.permute.xlu0 0
          %2125 = vperm.xlu0 %2124, %v2031
          %v2126 = vpop.permute.xlu0 %2125
          %2129 = vset.pattern.permute.xlu0 0
          %2130 = vperm.xlu0 %2129, %v2032
          %v2131 = vpop.permute.xlu0 %2130
          %2134 = vset.pattern.permute.xlu0 0
          %2135 = vperm.xlu0 %2134, %v2033
          %v2136 = vpop.permute.xlu0 %2135
          %2139 = vset.pattern.permute.xlu0 0
          %2140 = vperm.xlu0 %2139, %v2034
          %v2141 = vpop.permute.xlu0 %2140
          %2144 = vset.pattern.permute.xlu0 0
          %2145 = vperm.xlu0 %2144, %v2035
          %v2146 = vpop.permute.xlu0 %2145
          %2149 = vset.pattern.permute.xlu0 0
          %2150 = vperm.xlu0 %2149, %v2036
          %v2151 = vpop.permute.xlu0 %2150
          %2154 = vset.pattern.permute.xlu0 0
          %2155 = vperm.xlu0 %2154, %v2037
          %v2156 = vpop.permute.xlu0 %2155
          %2159 = vset.pattern.permute.xlu0 0
          %2160 = vperm.xlu0 %2159, %v2038
          %v2161 = vpop.permute.xlu0 %2160
          %2164 = vset.pattern.permute.xlu0 0
          %2165 = vperm.xlu0 %2164, %v2039
          %v2166 = vpop.permute.xlu0 %2165
          %v2168 = vsub.f32 %v1914, %v2091
          %v2169 = vsub.f32 %v1917, %v2096
          %v2170 = vsub.f32 %v1922, %v2101
          %v2171 = vsub.f32 %v1925, %v2106
          %v2172 = vsub.f32 %v1930, %v2111
          %v2173 = vsub.f32 %v1933, %v2116
          %v2174 = vsub.f32 %v1938, %v2121
          %v2175 = vsub.f32 %v1941, %v2126
          %v2176 = vsub.f32 %v1946, %v2131
          %v2177 = vsub.f32 %v1949, %v2136
          %v2178 = vsub.f32 %v1954, %v2141
          %v2179 = vsub.f32 %v1957, %v2146
          %v2180 = vsub.f32 %v1962, %v2151
          %v2181 = vsub.f32 %v1965, %v2156
          %v2182 = vsub.f32 %v1970, %v2161
          %v2183 = vsub.f32 %v1973, %v2166
          %v2184 = vmul.f32 %v2168, 1.442695
          %v2185 = vpow.pop %v2184
          %v2186 = vmul.f32 %v2169, 1.442695
          %v2187 = vpow.pop %v2186
          %v2188 = vmul.f32 %v2170, 1.442695
          %v2189 = vpow.pop %v2188
          %v2190 = vmul.f32 %v2171, 1.442695
          %v2191 = vpow.pop %v2190
          %v2192 = vmul.f32 %v2172, 1.442695
          %v2193 = vpow.pop %v2192
          %v2194 = vmul.f32 %v2173, 1.442695
          %v2195 = vpow.pop %v2194
          %v2196 = vmul.f32 %v2174, 1.442695
          %v2197 = vpow.pop %v2196
          %v2198 = vmul.f32 %v2175, 1.442695
          %v2199 = vpow.pop %v2198
          %v2200 = vmul.f32 %v2176, 1.442695
          %v2201 = vpow.pop %v2200
          %v2202 = vmul.f32 %v2177, 1.442695
          %v2203 = vpow.pop %v2202
          %v2204 = vmul.f32 %v2178, 1.442695
          %v2205 = vpow.pop %v2204
          %v2206 = vmul.f32 %v2179, 1.442695
          %v2207 = vpow.pop %v2206
          %v2208 = vmul.f32 %v2180, 1.442695
          %v2209 = vpow.pop %v2208
          %v2210 = vmul.f32 %v2181, 1.442695
          %v2211 = vpow.pop %v2210
          %v2212 = vmul.f32 %v2182, 1.442695
          %v2213 = vpow.pop %v2212
          %v2214 = vmul.f32 %v2183, 1.442695
          %v2215 = vpow.pop %v2214
          %v2216 = vld [vmem:[#allocation6] sm:$0xff]
          %v2217 = vld [vmem:[#allocation6 + $0x8] sm:$0xff]
          %v2218 = vld [vmem:[#allocation6 + $0x10] sm:$0xff]
          %v2219 = vld [vmem:[#allocation6 + $0x18] sm:$0xff]
          %v2220 = vld [vmem:[#allocation6 + $0x20] sm:$0xff]
          %v2221 = vld [vmem:[#allocation6 + $0x28] sm:$0xff]
          %v2222 = vld [vmem:[#allocation6 + $0x30] sm:$0xff]
          %v2223 = vld [vmem:[#allocation6 + $0x38] sm:$0xff]
          %v2224 = vld [vmem:[#allocation6 + $0x40] sm:$0xff]
          %v2225 = vld [vmem:[#allocation6 + $0x48] sm:$0xff]
          %v2226 = vld [vmem:[#allocation6 + $0x50] sm:$0xff]
          %v2227 = vld [vmem:[#allocation6 + $0x58] sm:$0xff]
          %v2228 = vld [vmem:[#allocation6 + $0x60] sm:$0xff]
          %v2229 = vld [vmem:[#allocation6 + $0x68] sm:$0xff]
          %v2230 = vld [vmem:[#allocation6 + $0x70] sm:$0xff]
          %v2231 = vld [vmem:[#allocation6 + $0x78] sm:$0xff]
          %v2232 = vmul.f32 %v2057, %v2216
          %v2233 = vmul.f32 %v2059, %v2217
          %v2234 = vmul.f32 %v2061, %v2218
          %v2235 = vmul.f32 %v2063, %v2219
          %v2236 = vmul.f32 %v2065, %v2220
          %v2237 = vmul.f32 %v2067, %v2221
          %v2238 = vmul.f32 %v2069, %v2222
          %v2239 = vmul.f32 %v2071, %v2223
          %v2240 = vmul.f32 %v2073, %v2224
          %v2241 = vmul.f32 %v2075, %v2225
          %v2242 = vmul.f32 %v2077, %v2226
          %v2243 = vmul.f32 %v2079, %v2227
          %v2244 = vmul.f32 %v2081, %v2228
          %v2245 = vmul.f32 %v2083, %v2229
          %v2246 = vmul.f32 %v2085, %v2230
          %v2247 = vmul.f32 %v2087, %v2231
          %2248 = vadd.xlane.f32.xlu0 %v2185
          %v2249 = vpop.xlane.xlu0 %2248
          %2250 = vadd.xlane.f32.xlu0 %v2187
          %v2251 = vpop.xlane.xlu0 %2250
          %2252 = vadd.xlane.f32.xlu0 %v2189
          %v2253 = vpop.xlane.xlu0 %2252
          %2254 = vadd.xlane.f32.xlu0 %v2191
          %v2255 = vpop.xlane.xlu0 %2254
          %2256 = vadd.xlane.f32.xlu0 %v2193
          %v2257 = vpop.xlane.xlu0 %2256
          %2258 = vadd.xlane.f32.xlu0 %v2195
          %v2259 = vpop.xlane.xlu0 %2258
          %2260 = vadd.xlane.f32.xlu0 %v2197
          %v2261 = vpop.xlane.xlu0 %2260
          %2262 = vadd.xlane.f32.xlu0 %v2199
          %v2263 = vpop.xlane.xlu0 %2262
          %2264 = vadd.xlane.f32.xlu0 %v2201
          %v2265 = vpop.xlane.xlu0 %2264
          %2266 = vadd.xlane.f32.xlu0 %v2203
          %v2267 = vpop.xlane.xlu0 %2266
          %2268 = vadd.xlane.f32.xlu0 %v2205
          %v2269 = vpop.xlane.xlu0 %2268
          %2270 = vadd.xlane.f32.xlu0 %v2207
          %v2271 = vpop.xlane.xlu0 %2270
          %2272 = vadd.xlane.f32.xlu0 %v2209
          %v2273 = vpop.xlane.xlu0 %2272
          %2274 = vadd.xlane.f32.xlu0 %v2211
          %v2275 = vpop.xlane.xlu0 %2274
          %2276 = vadd.xlane.f32.xlu0 %v2213
          %v2277 = vpop.xlane.xlu0 %2276
          %2278 = vadd.xlane.f32.xlu0 %v2215
          %v2279 = vpop.xlane.xlu0 %2278
          %v2280 = vadd.f32 %v2232, %v2249
          %v2281 = vadd.f32 %v2233, %v2251
          %v2282 = vadd.f32 %v2234, %v2253
          %v2283 = vadd.f32 %v2235, %v2255
          %v2284 = vadd.f32 %v2236, %v2257
          %v2285 = vadd.f32 %v2237, %v2259
          %v2286 = vadd.f32 %v2238, %v2261
          %v2287 = vadd.f32 %v2239, %v2263
          %v2288 = vadd.f32 %v2240, %v2265
          %v2289 = vadd.f32 %v2241, %v2267
          %v2290 = vadd.f32 %v2242, %v2269
          %v2291 = vadd.f32 %v2243, %v2271
          %v2292 = vadd.f32 %v2244, %v2273
          %v2293 = vadd.f32 %v2245, %v2275
          %v2294 = vadd.f32 %v2246, %v2277
          %v2295 = vadd.f32 %v2247, %v2279
          %2296 = vst.msk [vmem:[#allocation6] sm:$0xff] %vm1635, %v2280
          %2297 = vst.msk [vmem:[#allocation6 + $0x8] sm:$0xff] %vm1635, %v2281
          %2298 = vst.msk [vmem:[#allocation6 + $0x10] sm:$0xff] %vm1635, %v2282
          %2299 = vst.msk [vmem:[#allocation6 + $0x18] sm:$0xff] %vm1635, %v2283
          %2300 = vst.msk [vmem:[#allocation6 + $0x20] sm:$0xff] %vm1635, %v2284
          %2301 = vst.msk [vmem:[#allocation6 + $0x28] sm:$0xff] %vm1635, %v2285
          %2302 = vst.msk [vmem:[#allocation6 + $0x30] sm:$0xff] %vm1635, %v2286
          %2303 = vst.msk [vmem:[#allocation6 + $0x38] sm:$0xff] %vm1635, %v2287
          %2304 = vst.msk [vmem:[#allocation6 + $0x40] sm:$0xff] %vm1635, %v2288
          %2305 = vst.msk [vmem:[#allocation6 + $0x48] sm:$0xff] %vm1635, %v2289
          %2306 = vst.msk [vmem:[#allocation6 + $0x50] sm:$0xff] %vm1635, %v2290
          %2307 = vst.msk [vmem:[#allocation6 + $0x58] sm:$0xff] %vm1635, %v2291
          %2308 = vst.msk [vmem:[#allocation6 + $0x60] sm:$0xff] %vm1635, %v2292
          %2309 = vst.msk [vmem:[#allocation6 + $0x68] sm:$0xff] %vm1635, %v2293
          %2310 = vst.msk [vmem:[#allocation6 + $0x70] sm:$0xff] %vm1635, %v2294
          %2311 = vst.msk [vmem:[#allocation6 + $0x78] sm:$0xff] %vm1635, %v2295
          %v2312 = vld [vmem:[#allocation7] sm:$0xff]
          %v2313 = vld [vmem:[#allocation7 + $0x8] sm:$0xff]
          %v2314 = vld [vmem:[#allocation7 + $0x10] sm:$0xff]
          %v2315 = vld [vmem:[#allocation7 + $0x18] sm:$0xff]
          %v2316 = vld [vmem:[#allocation7 + $0x20] sm:$0xff]
          %v2317 = vld [vmem:[#allocation7 + $0x28] sm:$0xff]
          %v2318 = vld [vmem:[#allocation7 + $0x30] sm:$0xff]
          %v2319 = vld [vmem:[#allocation7 + $0x38] sm:$0xff]
          %v2320 = vld [vmem:[#allocation7 + $0x40] sm:$0xff]
          %v2321 = vld [vmem:[#allocation7 + $0x48] sm:$0xff]
          %v2322 = vld [vmem:[#allocation7 + $0x50] sm:$0xff]
          %v2323 = vld [vmem:[#allocation7 + $0x58] sm:$0xff]
          %v2324 = vld [vmem:[#allocation7 + $0x60] sm:$0xff]
          %v2325 = vld [vmem:[#allocation7 + $0x68] sm:$0xff]
          %v2326 = vld [vmem:[#allocation7 + $0x70] sm:$0xff]
          %v2327 = vld [vmem:[#allocation7 + $0x78] sm:$0xff]
          %2329 = vset.pattern.permute.xlu0 0
          %2330 = vperm.xlu0 %2329, %v2057
          %v2331 = vpop.permute.xlu0 %2330
          %2334 = vset.pattern.permute.xlu0 0
          %2335 = vperm.xlu0 %2334, %v2059
          %v2336 = vpop.permute.xlu0 %2335
          %2339 = vset.pattern.permute.xlu0 0
          %2340 = vperm.xlu0 %2339, %v2061
          %v2341 = vpop.permute.xlu0 %2340
          %2344 = vset.pattern.permute.xlu0 0
          %2345 = vperm.xlu0 %2344, %v2063
          %v2346 = vpop.permute.xlu0 %2345
          %2349 = vset.pattern.permute.xlu0 0
          %2350 = vperm.xlu0 %2349, %v2065
          %v2351 = vpop.permute.xlu0 %2350
          %2354 = vset.pattern.permute.xlu0 0
          %2355 = vperm.xlu0 %2354, %v2067
          %v2356 = vpop.permute.xlu0 %2355
          %2359 = vset.pattern.permute.xlu0 0
          %2360 = vperm.xlu0 %2359, %v2069
          %v2361 = vpop.permute.xlu0 %2360
          %2364 = vset.pattern.permute.xlu0 0
          %2365 = vperm.xlu0 %2364, %v2071
          %v2366 = vpop.permute.xlu0 %2365
          %2369 = vset.pattern.permute.xlu0 0
          %2370 = vperm.xlu0 %2369, %v2073
          %v2371 = vpop.permute.xlu0 %2370
          %2374 = vset.pattern.permute.xlu0 0
          %2375 = vperm.xlu0 %2374, %v2075
          %v2376 = vpop.permute.xlu0 %2375
          %2379 = vset.pattern.permute.xlu0 0
          %2380 = vperm.xlu0 %2379, %v2077
          %v2381 = vpop.permute.xlu0 %2380
          %2384 = vset.pattern.permute.xlu0 0
          %2385 = vperm.xlu0 %2384, %v2079
          %v2386 = vpop.permute.xlu0 %2385
          %2389 = vset.pattern.permute.xlu0 0
          %2390 = vperm.xlu0 %2389, %v2081
          %v2391 = vpop.permute.xlu0 %2390
          %2394 = vset.pattern.permute.xlu0 0
          %2395 = vperm.xlu0 %2394, %v2083
          %v2396 = vpop.permute.xlu0 %2395
          %2399 = vset.pattern.permute.xlu0 0
          %2400 = vperm.xlu0 %2399, %v2085
          %v2401 = vpop.permute.xlu0 %2400
          %2404 = vset.pattern.permute.xlu0 0
          %2405 = vperm.xlu0 %2404, %v2087
          %v2406 = vpop.permute.xlu0 %2405
          %v2408 = vmul.f32 %v2331, %v2312
          %v2409 = vmul.f32 %v2336, %v2313
          %v2410 = vmul.f32 %v2341, %v2314
          %v2411 = vmul.f32 %v2346, %v2315
          %v2412 = vmul.f32 %v2351, %v2316
          %v2413 = vmul.f32 %v2356, %v2317
          %v2414 = vmul.f32 %v2361, %v2318
          %v2415 = vmul.f32 %v2366, %v2319
          %v2416 = vmul.f32 %v2371, %v2320
          %v2417 = vmul.f32 %v2376, %v2321
          %v2418 = vmul.f32 %v2381, %v2322
          %v2419 = vmul.f32 %v2386, %v2323
          %v2420 = vmul.f32 %v2391, %v2324
          %v2421 = vmul.f32 %v2396, %v2325
          %v2422 = vmul.f32 %v2401, %v2326
          %v2423 = vmul.f32 %v2406, %v2327
          %v2424 = vpack.c.bf16 %v2187, %v2185
          %v2425 = vpack.c.bf16 %v2191, %v2189
          %v2426 = vpack.c.bf16 %v2195, %v2193
          %v2427 = vpack.c.bf16 %v2199, %v2197
          %v2428 = vpack.c.bf16 %v2203, %v2201
          %v2429 = vpack.c.bf16 %v2207, %v2205
          %v2430 = vpack.c.bf16 %v2211, %v2209
          %v2431 = vpack.c.bf16 %v2215, %v2213
          %v2448 = vunpack.c.l.b16 %v1735
          %v2449 = vunpack.c.l.b16 %v1736
          %v2450 = vunpack.c.l.b16 %v1737
          %v2451 = vunpack.c.l.b16 %v1738
          %v2452 = vunpack.c.l.b16 %v1739
          %v2453 = vunpack.c.l.b16 %v1740
          %v2454 = vunpack.c.l.b16 %v1741
          %v2455 = vunpack.c.l.b16 %v1742
          %v2456 = vunpack.c.l.b16 %v1743
          %v2457 = vunpack.c.l.b16 %v1744
          %v2458 = vunpack.c.l.b16 %v1745
          %v2459 = vunpack.c.l.b16 %v1746
          %v2460 = vunpack.c.l.b16 %v1747
          %v2461 = vunpack.c.l.b16 %v1748
          %v2462 = vunpack.c.l.b16 %v1749
          %v2463 = vunpack.c.l.b16 %v1750
          %v2464 = vpack.c.b16 %v2449, %v2448
          %v2465 = vpack.c.b16 %v2451, %v2450
          %v2466 = vpack.c.b16 %v2453, %v2452
          %v2467 = vpack.c.b16 %v2455, %v2454
          %v2468 = vpack.c.b16 %v2457, %v2456
          %v2469 = vpack.c.b16 %v2459, %v2458
          %v2470 = vpack.c.b16 %v2461, %v2460
          %v2471 = vpack.c.b16 %v2463, %v2462
          %2480 = vmatprep.subr.bf16.mxu0 0
          %2481 = vmatpush1.bf16.msra.mxu0 %v2471
          %2482 = vmatprep.subr.bf16.mxu0 0
          %2483 = vmatpush1.bf16.msra.mxu0 %v2470
          %2484 = vmatprep.subr.bf16.mxu0 0
          %2485 = vmatpush1.bf16.msra.mxu0 %v2469
          %2486 = vmatprep.subr.bf16.mxu0 0
          %2487 = vmatpush1.bf16.msra.mxu0 %v2468
          %2488 = vmatprep.subr.bf16.mxu0 0
          %2489 = vmatpush1.bf16.msra.mxu0 %v2467
          %2490 = vmatprep.subr.bf16.mxu0 0
          %2491 = vmatpush1.bf16.msra.mxu0 %v2466
          %2492 = vmatprep.subr.bf16.mxu0 0
          %2493 = vmatpush1.bf16.msra.mxu0 %v2465
          %2494 = vmatprep.subr.bf16.mxu0 0
          %2495 = vmatpush1.bf16.msra.mxu0 %v2464
          %2496 = vmatprep.subr.bf16.mxu0 0
          %2497 = vmatpush2.bf16.msra.mxu0 0
          %2498 = vmatprep.subr.bf16.mxu0 0
          %2499 = vmatpush2.bf16.msra.mxu0 0
          %2500 = vmatprep.subr.bf16.mxu0 0
          %2501 = vmatpush2.bf16.msra.mxu0 0
          %2502 = vmatprep.subr.bf16.mxu0 0
          %2503 = vmatpush2.bf16.msra.mxu0 0
          %2504 = vmatprep.subr.bf16.mxu0 0
          %2505 = vmatpush2.bf16.msra.mxu0 0
          %2506 = vmatprep.subr.bf16.mxu0 0
          %2507 = vmatpush2.bf16.msra.mxu0 0
          %2508 = vmatprep.subr.bf16.mxu0 0
          %2509 = vmatpush2.bf16.msra.mxu0 0
          %2510 = vmatprep.subr.bf16.mxu0 0
          %2511 = vmatpush2.bf16.msra.mxu0 0
          %2512 = vmatprep.mubr.bf16.mxu0 0
          %2513 = vmatmul.mubr.bf16.gmra.mxu0 %v2424
          %v2514 = vpop.f32.mrf.mxu0
          %v2515 = vadd.f32 0.0, %v2514
          %v2516 = vpop.f32.mrf.mxu0
          %v2517 = vpop.f32.mrf.mxu0
          %v2518 = vadd.f32 0.0, %v2517
          %v2519 = vpop.f32.mrf.mxu0
          %2520 = vmatprep.mubr.bf16.mxu0 0
          %2521 = vmatmul.mubr.bf16.gmra.mxu0 %v2425
          %v2522 = vpop.f32.mrf.mxu0
          %v2523 = vadd.f32 0.0, %v2522
          %v2524 = vpop.f32.mrf.mxu0
          %v2525 = vpop.f32.mrf.mxu0
          %v2526 = vadd.f32 0.0, %v2525
          %v2527 = vpop.f32.mrf.mxu0
          %2528 = vmatprep.mubr.bf16.mxu0 0
          %2529 = vmatmul.mubr.bf16.gmra.mxu0 %v2426
          %v2530 = vpop.f32.mrf.mxu0
          %v2531 = vadd.f32 0.0, %v2530
          %v2532 = vpop.f32.mrf.mxu0
          %v2533 = vpop.f32.mrf.mxu0
          %v2534 = vadd.f32 0.0, %v2533
          %v2535 = vpop.f32.mrf.mxu0
          %2536 = vmatprep.mubr.bf16.mxu0 0
          %2537 = vmatmul.mubr.bf16.gmra.mxu0 %v2427
          %v2538 = vpop.f32.mrf.mxu0
          %v2539 = vadd.f32 0.0, %v2538
          %v2540 = vpop.f32.mrf.mxu0
          %v2541 = vpop.f32.mrf.mxu0
          %v2542 = vadd.f32 0.0, %v2541
          %v2543 = vpop.f32.mrf.mxu0
          %2544 = vmatprep.mubr.bf16.mxu0 0
          %2545 = vmatmul.mubr.bf16.gmra.mxu0 %v2428
          %v2546 = vpop.f32.mrf.mxu0
          %v2547 = vadd.f32 0.0, %v2546
          %v2548 = vpop.f32.mrf.mxu0
          %v2549 = vpop.f32.mrf.mxu0
          %v2550 = vadd.f32 0.0, %v2549
          %v2551 = vpop.f32.mrf.mxu0
          %2552 = vmatprep.mubr.bf16.mxu0 0
          %2553 = vmatmul.mubr.bf16.gmra.mxu0 %v2429
          %v2554 = vpop.f32.mrf.mxu0
          %v2555 = vadd.f32 0.0, %v2554
          %v2556 = vpop.f32.mrf.mxu0
          %v2557 = vpop.f32.mrf.mxu0
          %v2558 = vadd.f32 0.0, %v2557
          %v2559 = vpop.f32.mrf.mxu0
          %2560 = vmatprep.mubr.bf16.mxu0 0
          %2561 = vmatmul.mubr.bf16.gmra.mxu0 %v2430
          %v2562 = vpop.f32.mrf.mxu0
          %v2563 = vadd.f32 0.0, %v2562
          %v2564 = vpop.f32.mrf.mxu0
          %v2565 = vpop.f32.mrf.mxu0
          %v2566 = vadd.f32 0.0, %v2565
          %v2567 = vpop.f32.mrf.mxu0
          %2568 = vmatprep.mubr.bf16.mxu0 0
          %2569 = vmatmul.mubr.bf16.gmra.mxu0 %v2431
          %v2570 = vpop.f32.mrf.mxu0
          %v2571 = vadd.f32 0.0, %v2570
          %v2572 = vpop.f32.mrf.mxu0
          %v2573 = vpop.f32.mrf.mxu0
          %v2574 = vadd.f32 0.0, %v2573
          %v2575 = vpop.f32.mrf.mxu0
          %2576 = vdwg.mxu0
          %v2577 = vadd.f32 %v2408, %v2515
          %v2578 = vadd.f32 %v2409, %v2518
          %v2579 = vadd.f32 %v2410, %v2523
          %v2580 = vadd.f32 %v2411, %v2526
          %v2581 = vadd.f32 %v2412, %v2531
          %v2582 = vadd.f32 %v2413, %v2534
          %v2583 = vadd.f32 %v2414, %v2539
          %v2584 = vadd.f32 %v2415, %v2542
          %v2585 = vadd.f32 %v2416, %v2547
          %v2586 = vadd.f32 %v2417, %v2550
          %v2587 = vadd.f32 %v2418, %v2555
          %v2588 = vadd.f32 %v2419, %v2558
          %v2589 = vadd.f32 %v2420, %v2563
          %v2590 = vadd.f32 %v2421, %v2566
          %v2591 = vadd.f32 %v2422, %v2571
          %v2592 = vadd.f32 %v2423, %v2574
          %2593 = vst.msk [vmem:[#allocation7] sm:$0xff] %vm1668, %v2577
          %2594 = vst.msk [vmem:[#allocation7 + $0x8] sm:$0xff] %vm1668, %v2578
          %2595 = vst.msk [vmem:[#allocation7 + $0x10] sm:$0xff] %vm1668, %v2579
          %2596 = vst.msk [vmem:[#allocation7 + $0x18] sm:$0xff] %vm1668, %v2580
          %2597 = vst.msk [vmem:[#allocation7 + $0x20] sm:$0xff] %vm1668, %v2581
          %2598 = vst.msk [vmem:[#allocation7 + $0x28] sm:$0xff] %vm1668, %v2582
          %2599 = vst.msk [vmem:[#allocation7 + $0x30] sm:$0xff] %vm1668, %v2583
          %2600 = vst.msk [vmem:[#allocation7 + $0x38] sm:$0xff] %vm1668, %v2584
          %2601 = vst.msk [vmem:[#allocation7 + $0x40] sm:$0xff] %vm1668, %v2585
          %2602 = vst.msk [vmem:[#allocation7 + $0x48] sm:$0xff] %vm1668, %v2586
          %2603 = vst.msk [vmem:[#allocation7 + $0x50] sm:$0xff] %vm1668, %v2587
          %2604 = vst.msk [vmem:[#allocation7 + $0x58] sm:$0xff] %vm1668, %v2588
          %2605 = vst.msk [vmem:[#allocation7 + $0x60] sm:$0xff] %vm1668, %v2589
          %2606 = vst.msk [vmem:[#allocation7 + $0x68] sm:$0xff] %vm1668, %v2590
          %2607 = vst.msk [vmem:[#allocation7 + $0x70] sm:$0xff] %vm1668, %v2591
          %2608 = vst.msk [vmem:[#allocation7 + $0x78] sm:$0xff] %vm1668, %v2592
          %2609 = vst.msk [vmem:[#allocation5] sm:$0xff] %vm1635, %v2024
          %2610 = vst.msk [vmem:[#allocation5 + $0x8] sm:$0xff] %vm1635, %v2025
          %2611 = vst.msk [vmem:[#allocation5 + $0x10] sm:$0xff] %vm1635, %v2026
          %2612 = vst.msk [vmem:[#allocation5 + $0x18] sm:$0xff] %vm1635, %v2027
          %2613 = vst.msk [vmem:[#allocation5 + $0x20] sm:$0xff] %vm1635, %v2028
          %2614 = vst.msk [vmem:[#allocation5 + $0x28] sm:$0xff] %vm1635, %v2029
          %2615 = vst.msk [vmem:[#allocation5 + $0x30] sm:$0xff] %vm1635, %v2030
          %2616 = vst.msk [vmem:[#allocation5 + $0x38] sm:$0xff] %vm1635, %v2031
          %2617 = vst.msk [vmem:[#allocation5 + $0x40] sm:$0xff] %vm1635, %v2032
          %2618 = vst.msk [vmem:[#allocation5 + $0x48] sm:$0xff] %vm1635, %v2033
          %2619 = vst.msk [vmem:[#allocation5 + $0x50] sm:$0xff] %vm1635, %v2034
          %2620 = vst.msk [vmem:[#allocation5 + $0x58] sm:$0xff] %vm1635, %v2035
          %2621 = vst.msk [vmem:[#allocation5 + $0x60] sm:$0xff] %vm1635, %v2036
          %2622 = vst.msk [vmem:[#allocation5 + $0x68] sm:$0xff] %vm1635, %v2037
          %2623 = vst.msk [vmem:[#allocation5 + $0x70] sm:$0xff] %vm1635, %v2038
          %2624 = vst.msk [vmem:[#allocation5 + $0x78] sm:$0xff] %vm1635, %v2039
        $region41: #{tpu_custom_call.1} parent=27 // loop_footer
          %s1709 = sadd.s32 %s1707, 1
        $region42: #{tpu_custom_call.1} parent=27 // loop_footer_branch
          %1706 = sbr.rel target = $region38
        $region43: #{tpu_custom_call.1} parent=27 // loop_exit
          _
        %s2625 = smul.addr %s1686, 4
        %s2626 = scalar_lea.vmem [#allocation3], %s2625
        %v2627 = vld [vmem:[%s2626] sm:$0xf]
        %v2628 = vld [vmem:[%s2626 + $0x4] sm:$0xf]
        %v2629 = vld [vmem:[%s2626 + $0x8] sm:$0xf]
        %v2630 = vld [vmem:[%s2626 + $0xc] sm:$0xf]
        %v2631 = vld [vmem:[%s2626 + $0x10] sm:$0xf]
        %v2632 = vld [vmem:[%s2626 + $0x14] sm:$0xf]
        %v2633 = vld [vmem:[%s2626 + $0x18] sm:$0xf]
        %v2634 = vld [vmem:[%s2626 + $0x1c] sm:$0xf]
        %v2635 = vld [vmem:[%s2626 + $0x20] sm:$0xf]
        %v2636 = vld [vmem:[%s2626 + $0x24] sm:$0xf]
        %v2637 = vld [vmem:[%s2626 + $0x28] sm:$0xf]
        %v2638 = vld [vmem:[%s2626 + $0x2c] sm:$0xf]
        %v2639 = vld [vmem:[%s2626 + $0x30] sm:$0xf]
        %v2640 = vld [vmem:[%s2626 + $0x34] sm:$0xf]
        %v2641 = vld [vmem:[%s2626 + $0x38] sm:$0xf]
        %v2642 = vld [vmem:[%s2626 + $0x3c] sm:$0xf]
        %s2643 = smul.addr %s1686, 4
        %s2644 = scalar_lea.vmem [#allocation4], %s2643
        %v2645 = vld [vmem:[%s2644] sm:$0xf]
        %v2646 = vld [vmem:[%s2644 + $0x4] sm:$0xf]
        %v2647 = vld [vmem:[%s2644 + $0x8] sm:$0xf]
        %v2648 = vld [vmem:[%s2644 + $0xc] sm:$0xf]
        %v2649 = vld [vmem:[%s2644 + $0x10] sm:$0xf]
        %v2650 = vld [vmem:[%s2644 + $0x14] sm:$0xf]
        %v2651 = vld [vmem:[%s2644 + $0x18] sm:$0xf]
        %v2652 = vld [vmem:[%s2644 + $0x1c] sm:$0xf]
        %v2653 = vld [vmem:[%s2644 + $0x20] sm:$0xf]
        %v2654 = vld [vmem:[%s2644 + $0x24] sm:$0xf]
        %v2655 = vld [vmem:[%s2644 + $0x28] sm:$0xf]
        %v2656 = vld [vmem:[%s2644 + $0x2c] sm:$0xf]
        %v2657 = vld [vmem:[%s2644 + $0x30] sm:$0xf]
        %v2658 = vld [vmem:[%s2644 + $0x34] sm:$0xf]
        %v2659 = vld [vmem:[%s2644 + $0x38] sm:$0xf]
        %v2660 = vld [vmem:[%s2644 + $0x3c] sm:$0xf]
        %v2677 = vunpack.c.l.b16 %v1690
        %v2678 = vunpack.c.l.b16 %v1691
        %v2679 = vunpack.c.l.b16 %v1692
        %v2680 = vunpack.c.l.b16 %v1693
        %v2681 = vunpack.c.l.b16 %v1694
        %v2682 = vunpack.c.l.b16 %v1695
        %v2683 = vunpack.c.l.b16 %v1696
        %v2684 = vunpack.c.l.b16 %v1697
        %v2685 = vunpack.c.l.b16 %v1698
        %v2686 = vunpack.c.l.b16 %v1699
        %v2687 = vunpack.c.l.b16 %v1700
        %v2688 = vunpack.c.l.b16 %v1701
        %v2689 = vunpack.c.l.b16 %v1702
        %v2690 = vunpack.c.l.b16 %v1703
        %v2691 = vunpack.c.l.b16 %v1704
        %v2692 = vunpack.c.l.b16 %v1705
        %v2693 = vpack.c.b16 %v2678, %v2677
        %v2694 = vpack.c.b16 %v2680, %v2679
        %v2695 = vpack.c.b16 %v2682, %v2681
        %v2696 = vpack.c.b16 %v2684, %v2683
        %v2697 = vpack.c.b16 %v2686, %v2685
        %v2698 = vpack.c.b16 %v2688, %v2687
        %v2699 = vpack.c.b16 %v2690, %v2689
        %v2700 = vpack.c.b16 %v2692, %v2691
        %v2717 = vunpack.c.l.b16 %v2627
        %v2718 = vunpack.c.l.b16 %v2628
        %v2719 = vunpack.c.l.b16 %v2629
        %v2720 = vunpack.c.l.b16 %v2630
        %v2721 = vunpack.c.l.b16 %v2631
        %v2722 = vunpack.c.l.b16 %v2632
        %v2723 = vunpack.c.l.b16 %v2633
        %v2724 = vunpack.c.l.b16 %v2634
        %v2725 = vunpack.c.l.b16 %v2635
        %v2726 = vunpack.c.l.b16 %v2636
        %v2727 = vunpack.c.l.b16 %v2637
        %v2728 = vunpack.c.l.b16 %v2638
        %v2729 = vunpack.c.l.b16 %v2639
        %v2730 = vunpack.c.l.b16 %v2640
        %v2731 = vunpack.c.l.b16 %v2641
        %v2732 = vunpack.c.l.b16 %v2642
        %v2733 = vpack.c.b16 %v2718, %v2717
        %v2734 = vpack.c.b16 %v2720, %v2719
        %v2735 = vpack.c.b16 %v2722, %v2721
        %v2736 = vpack.c.b16 %v2724, %v2723
        %v2737 = vpack.c.b16 %v2726, %v2725
        %v2738 = vpack.c.b16 %v2728, %v2727
        %v2739 = vpack.c.b16 %v2730, %v2729
        %v2740 = vpack.c.b16 %v2732, %v2731
        %v2742 = vsel %vm1668, %v2693, 0
        %v2745 = vsel %vm1668, %v2694, 0
        %v2748 = vsel %vm1668, %v2695, 0
        %v2751 = vsel %vm1668, %v2696, 0
        %v2754 = vsel %vm1668, %v2697, 0
        %v2757 = vsel %vm1668, %v2698, 0
        %v2760 = vsel %vm1668, %v2699, 0
        %v2763 = vsel %vm1668, %v2700, 0
        %v2766 = vsel %vm1668, %v2733, 0
        %v2769 = vsel %vm1668, %v2734, 0
        %v2772 = vsel %vm1668, %v2735, 0
        %v2775 = vsel %vm1668, %v2736, 0
        %v2778 = vsel %vm1668, %v2737, 0
        %v2781 = vsel %vm1668, %v2738, 0
        %v2784 = vsel %vm1668, %v2739, 0
        %v2787 = vsel %vm1668, %v2740, 0
        %2789 = vmatprep.subr.bf16.mxu0 0
        %2790 = vmatpush1.bf16.xpose.msra.mxu0 %v2787
        %2791 = vmatprep.subr.bf16.mxu0 0
        %2792 = vmatpush1.bf16.xpose.msra.mxu0 %v2784
        %2793 = vmatprep.subr.bf16.mxu0 0
        %2794 = vmatpush1.bf16.xpose.msra.mxu0 %v2781
        %2795 = vmatprep.subr.bf16.mxu0 0
        %2796 = vmatpush1.bf16.xpose.msra.mxu0 %v2778
        %2797 = vmatprep.subr.bf16.mxu0 0
        %2798 = vmatpush1.bf16.xpose.msra.mxu0 %v2775
        %2799 = vmatprep.subr.bf16.mxu0 0
        %2800 = vmatpush1.bf16.xpose.msra.mxu0 %v2772
        %2801 = vmatprep.subr.bf16.mxu0 0
        %2802 = vmatpush1.bf16.xpose.msra.mxu0 %v2769
        %2803 = vmatprep.subr.bf16.mxu0 0
        %2804 = vmatpush1.bf16.xpose.msra.mxu0 %v2766
        %2805 = vmatprep.subr.bf16.mxu0 0
        %2806 = vmatpush2.bf16.xpose.msra.mxu0 0
        %2807 = vmatprep.subr.bf16.mxu0 0
        %2808 = vmatpush2.bf16.xpose.msra.mxu0 0
        %2809 = vmatprep.subr.bf16.mxu0 0
        %2810 = vmatpush2.bf16.xpose.msra.mxu0 0
        %2811 = vmatprep.subr.bf16.mxu0 0
        %2812 = vmatpush2.bf16.xpose.msra.mxu0 0
        %2813 = vmatprep.subr.bf16.mxu0 0
        %2814 = vmatpush2.bf16.xpose.msra.mxu0 0
        %2815 = vmatprep.subr.bf16.mxu0 0
        %2816 = vmatpush2.bf16.xpose.msra.mxu0 0
        %2817 = vmatprep.subr.bf16.mxu0 0
        %2818 = vmatpush2.bf16.xpose.msra.mxu0 0
        %2819 = vmatprep.subr.bf16.mxu0 0
        %2820 = vmatpush2.bf16.xpose.msra.mxu0 0
        %2821 = vmatprep.mubr.bf16.mxu0 0
        %2822 = vmatmul.mubr.bf16.gmra.mxu0 %v2742
        %v2823 = vpop.f32.mrf.mxu0
        %v2824 = vadd.f32 0.0, %v2823
        %v2825 = vpop.f32.mrf.mxu0
        %v2826 = vpop.f32.mrf.mxu0
        %v2827 = vadd.f32 0.0, %v2826
        %v2828 = vpop.f32.mrf.mxu0
        %2829 = vmatprep.mubr.bf16.mxu0 0
        %2830 = vmatmul.mubr.bf16.gmra.mxu0 %v2745
        %v2831 = vpop.f32.mrf.mxu0
        %v2832 = vadd.f32 0.0, %v2831
        %v2833 = vpop.f32.mrf.mxu0
        %v2834 = vpop.f32.mrf.mxu0
        %v2835 = vadd.f32 0.0, %v2834
        %v2836 = vpop.f32.mrf.mxu0
        %2837 = vmatprep.mubr.bf16.mxu0 0
        %2838 = vmatmul.mubr.bf16.gmra.mxu0 %v2748
        %v2839 = vpop.f32.mrf.mxu0
        %v2840 = vadd.f32 0.0, %v2839
        %v2841 = vpop.f32.mrf.mxu0
        %v2842 = vpop.f32.mrf.mxu0
        %v2843 = vadd.f32 0.0, %v2842
        %v2844 = vpop.f32.mrf.mxu0
        %2845 = vmatprep.mubr.bf16.mxu0 0
        %2846 = vmatmul.mubr.bf16.gmra.mxu0 %v2751
        %v2847 = vpop.f32.mrf.mxu0
        %v2848 = vadd.f32 0.0, %v2847
        %v2849 = vpop.f32.mrf.mxu0
        %v2850 = vpop.f32.mrf.mxu0
        %v2851 = vadd.f32 0.0, %v2850
        %v2852 = vpop.f32.mrf.mxu0
        %2853 = vmatprep.mubr.bf16.mxu0 0
        %2854 = vmatmul.mubr.bf16.gmra.mxu0 %v2754
        %v2855 = vpop.f32.mrf.mxu0
        %v2856 = vadd.f32 0.0, %v2855
        %v2857 = vpop.f32.mrf.mxu0
        %v2858 = vpop.f32.mrf.mxu0
        %v2859 = vadd.f32 0.0, %v2858
        %v2860 = vpop.f32.mrf.mxu0
        %2861 = vmatprep.mubr.bf16.mxu0 0
        %2862 = vmatmul.mubr.bf16.gmra.mxu0 %v2757
        %v2863 = vpop.f32.mrf.mxu0
        %v2864 = vadd.f32 0.0, %v2863
        %v2865 = vpop.f32.mrf.mxu0
        %v2866 = vpop.f32.mrf.mxu0
        %v2867 = vadd.f32 0.0, %v2866
        %v2868 = vpop.f32.mrf.mxu0
        %2869 = vmatprep.mubr.bf16.mxu0 0
        %2870 = vmatmul.mubr.bf16.gmra.mxu0 %v2760
        %v2871 = vpop.f32.mrf.mxu0
        %v2872 = vadd.f32 0.0, %v2871
        %v2873 = vpop.f32.mrf.mxu0
        %v2874 = vpop.f32.mrf.mxu0
        %v2875 = vadd.f32 0.0, %v2874
        %v2876 = vpop.f32.mrf.mxu0
        %2877 = vmatprep.mubr.bf16.mxu0 0
        %2878 = vmatmul.mubr.bf16.gmra.mxu0 %v2763
        %v2879 = vpop.f32.mrf.mxu0
        %v2880 = vadd.f32 0.0, %v2879
        %v2881 = vpop.f32.mrf.mxu0
        %v2882 = vpop.f32.mrf.mxu0
        %v2883 = vadd.f32 0.0, %v2882
        %v2884 = vpop.f32.mrf.mxu0
        %2885 = vdwg.mxu0
        %v2886 = vlaneseq
        %v2887 = vshrl.u32 %v2886, 7
        %v2888 = vadd.s32 %v2887, 8
        %v2889 = vadd.s32 %v2887, 16
        %v2890 = vadd.s32 %v2887, 24
        %v2891 = vadd.s32 %v2887, 32
        %v2892 = vadd.s32 %v2887, 40
        %v2893 = vadd.s32 %v2887, 48
        %v2894 = vadd.s32 %v2887, 56
        %v2895 = vadd.s32 %v2887, 64
        %v2896 = vadd.s32 %v2887, 72
        %v2897 = vadd.s32 %v2887, 80
        %v2898 = vadd.s32 %v2887, 88
        %v2899 = vadd.s32 %v2887, 96
        %v2900 = vadd.s32 %v2887, 104
        %v2901 = vadd.s32 %v2887, 112
        %v2902 = vadd.s32 %v2887, 120
        %v2903 = vlaneseq
        %v2904 = vand.u32 %v2903, 127
        %vm2905 = vcmp.le.s32.totalorder %v2904, %v2887
        %vm2906 = vcmp.le.s32.totalorder %v2904, %v2888
        %vm2907 = vcmp.le.s32.totalorder %v2904, %v2889
        %vm2908 = vcmp.le.s32.totalorder %v2904, %v2890
        %vm2909 = vcmp.le.s32.totalorder %v2904, %v2891
        %vm2910 = vcmp.le.s32.totalorder %v2904, %v2892
        %vm2911 = vcmp.le.s32.totalorder %v2904, %v2893
        %vm2912 = vcmp.le.s32.totalorder %v2904, %v2894
        %vm2913 = vcmp.le.s32.totalorder %v2904, %v2895
        %vm2914 = vcmp.le.s32.totalorder %v2904, %v2896
        %vm2915 = vcmp.le.s32.totalorder %v2904, %v2897
        %vm2916 = vcmp.le.s32.totalorder %v2904, %v2898
        %vm2917 = vcmp.le.s32.totalorder %v2904, %v2899
        %vm2918 = vcmp.le.s32.totalorder %v2904, %v2900
        %vm2919 = vcmp.le.s32.totalorder %v2904, %v2901
        %vm2920 = vcmp.le.s32.totalorder %v2904, %v2902
        %v2921 = vsel %vm2905, %v2824, -inf
        %v2922 = vsel %vm2906, %v2827, -inf
        %v2923 = vsel %vm2907, %v2832, -inf
        %v2924 = vsel %vm2908, %v2835, -inf
        %v2925 = vsel %vm2909, %v2840, -inf
        %v2926 = vsel %vm2910, %v2843, -inf
        %v2927 = vsel %vm2911, %v2848, -inf
        %v2928 = vsel %vm2912, %v2851, -inf
        %v2929 = vsel %vm2913, %v2856, -inf
        %v2930 = vsel %vm2914, %v2859, -inf
        %v2931 = vsel %vm2915, %v2864, -inf
        %v2932 = vsel %vm2916, %v2867, -inf
        %v2933 = vsel %vm2917, %v2872, -inf
        %v2934 = vsel %vm2918, %v2875, -inf
        %v2935 = vsel %vm2919, %v2880, -inf
        %v2936 = vsel %vm2920, %v2883, -inf
        %v2937 = vld [vmem:[#allocation5] sm:$0xff]
        %v2938 = vld [vmem:[#allocation5 + $0x8] sm:$0xff]
        %v2939 = vld [vmem:[#allocation5 + $0x10] sm:$0xff]
        %v2940 = vld [vmem:[#allocation5 + $0x18] sm:$0xff]
        %v2941 = vld [vmem:[#allocation5 + $0x20] sm:$0xff]
        %v2942 = vld [vmem:[#allocation5 + $0x28] sm:$0xff]
        %v2943 = vld [vmem:[#allocation5 + $0x30] sm:$0xff]
        %v2944 = vld [vmem:[#allocation5 + $0x38] sm:$0xff]
        %v2945 = vld [vmem:[#allocation5 + $0x40] sm:$0xff]
        %v2946 = vld [vmem:[#allocation5 + $0x48] sm:$0xff]
        %v2947 = vld [vmem:[#allocation5 + $0x50] sm:$0xff]
        %v2948 = vld [vmem:[#allocation5 + $0x58] sm:$0xff]
        %v2949 = vld [vmem:[#allocation5 + $0x60] sm:$0xff]
        %v2950 = vld [vmem:[#allocation5 + $0x68] sm:$0xff]
        %v2951 = vld [vmem:[#allocation5 + $0x70] sm:$0xff]
        %v2952 = vld [vmem:[#allocation5 + $0x78] sm:$0xff]
        %2953 = vmax.xlane.f32.xlu0 %v2921
        %v2954 = vpop.xlane.xlu0 %2953
        %2955 = vmax.xlane.f32.xlu0 %v2922
        %v2956 = vpop.xlane.xlu0 %2955
        %2957 = vmax.xlane.f32.xlu0 %v2923
        %v2958 = vpop.xlane.xlu0 %2957
        %2959 = vmax.xlane.f32.xlu0 %v2924
        %v2960 = vpop.xlane.xlu0 %2959
        %2961 = vmax.xlane.f32.xlu0 %v2925
        %v2962 = vpop.xlane.xlu0 %2961
        %2963 = vmax.xlane.f32.xlu0 %v2926
        %v2964 = vpop.xlane.xlu0 %2963
        %2965 = vmax.xlane.f32.xlu0 %v2927
        %v2966 = vpop.xlane.xlu0 %2965
        %2967 = vmax.xlane.f32.xlu0 %v2928
        %v2968 = vpop.xlane.xlu0 %2967
        %2969 = vmax.xlane.f32.xlu0 %v2929
        %v2970 = vpop.xlane.xlu0 %2969
        %2971 = vmax.xlane.f32.xlu0 %v2930
        %v2972 = vpop.xlane.xlu0 %2971
        %2973 = vmax.xlane.f32.xlu0 %v2931
        %v2974 = vpop.xlane.xlu0 %2973
        %2975 = vmax.xlane.f32.xlu0 %v2932
        %v2976 = vpop.xlane.xlu0 %2975
        %2977 = vmax.xlane.f32.xlu0 %v2933
        %v2978 = vpop.xlane.xlu0 %2977
        %2979 = vmax.xlane.f32.xlu0 %v2934
        %v2980 = vpop.xlane.xlu0 %2979
        %2981 = vmax.xlane.f32.xlu0 %v2935
        %v2982 = vpop.xlane.xlu0 %2981
        %2983 = vmax.xlane.f32.xlu0 %v2936
        %v2984 = vpop.xlane.xlu0 %2983
        %v2985 = vmax.f32 %v2937, %v2954
        %v2986 = vmax.f32 %v2938, %v2956
        %v2987 = vmax.f32 %v2939, %v2958
        %v2988 = vmax.f32 %v2940, %v2960
        %v2989 = vmax.f32 %v2941, %v2962
        %v2990 = vmax.f32 %v2942, %v2964
        %v2991 = vmax.f32 %v2943, %v2966
        %v2992 = vmax.f32 %v2944, %v2968
        %v2993 = vmax.f32 %v2945, %v2970
        %v2994 = vmax.f32 %v2946, %v2972
        %v2995 = vmax.f32 %v2947, %v2974
        %v2996 = vmax.f32 %v2948, %v2976
        %v2997 = vmax.f32 %v2949, %v2978
        %v2998 = vmax.f32 %v2950, %v2980
        %v2999 = vmax.f32 %v2951, %v2982
        %v3000 = vmax.f32 %v2952, %v2984
        %v3001 = vsub.f32 %v2937, %v2985
        %v3002 = vsub.f32 %v2938, %v2986
        %v3003 = vsub.f32 %v2939, %v2987
        %v3004 = vsub.f32 %v2940, %v2988
        %v3005 = vsub.f32 %v2941, %v2989
        %v3006 = vsub.f32 %v2942, %v2990
        %v3007 = vsub.f32 %v2943, %v2991
        %v3008 = vsub.f32 %v2944, %v2992
        %v3009 = vsub.f32 %v2945, %v2993
        %v3010 = vsub.f32 %v2946, %v2994
        %v3011 = vsub.f32 %v2947, %v2995
        %v3012 = vsub.f32 %v2948, %v2996
        %v3013 = vsub.f32 %v2949, %v2997
        %v3014 = vsub.f32 %v2950, %v2998
        %v3015 = vsub.f32 %v2951, %v2999
        %v3016 = vsub.f32 %v2952, %v3000
        %v3017 = vmul.f32 %v3001, 1.442695
        %v3018 = vpow.pop %v3017
        %v3019 = vmul.f32 %v3002, 1.442695
        %v3020 = vpow.pop %v3019
        %v3021 = vmul.f32 %v3003, 1.442695
        %v3022 = vpow.pop %v3021
        %v3023 = vmul.f32 %v3004, 1.442695
        %v3024 = vpow.pop %v3023
        %v3025 = vmul.f32 %v3005, 1.442695
        %v3026 = vpow.pop %v3025
        %v3027 = vmul.f32 %v3006, 1.442695
        %v3028 = vpow.pop %v3027
        %v3029 = vmul.f32 %v3007, 1.442695
        %v3030 = vpow.pop %v3029
        %v3031 = vmul.f32 %v3008, 1.442695
        %v3032 = vpow.pop %v3031
        %v3033 = vmul.f32 %v3009, 1.442695
        %v3034 = vpow.pop %v3033
        %v3035 = vmul.f32 %v3010, 1.442695
        %v3036 = vpow.pop %v3035
        %v3037 = vmul.f32 %v3011, 1.442695
        %v3038 = vpow.pop %v3037
        %v3039 = vmul.f32 %v3012, 1.442695
        %v3040 = vpow.pop %v3039
        %v3041 = vmul.f32 %v3013, 1.442695
        %v3042 = vpow.pop %v3041
        %v3043 = vmul.f32 %v3014, 1.442695
        %v3044 = vpow.pop %v3043
        %v3045 = vmul.f32 %v3015, 1.442695
        %v3046 = vpow.pop %v3045
        %v3047 = vmul.f32 %v3016, 1.442695
        %v3048 = vpow.pop %v3047
        %3050 = vset.pattern.permute.xlu0 0
        %3051 = vperm.xlu0 %3050, %v2985
        %v3052 = vpop.permute.xlu0 %3051
        %3055 = vset.pattern.permute.xlu0 0
        %3056 = vperm.xlu0 %3055, %v2986
        %v3057 = vpop.permute.xlu0 %3056
        %3060 = vset.pattern.permute.xlu0 0
        %3061 = vperm.xlu0 %3060, %v2987
        %v3062 = vpop.permute.xlu0 %3061
        %3065 = vset.pattern.permute.xlu0 0
        %3066 = vperm.xlu0 %3065, %v2988
        %v3067 = vpop.permute.xlu0 %3066
        %3070 = vset.pattern.permute.xlu0 0
        %3071 = vperm.xlu0 %3070, %v2989
        %v3072 = vpop.permute.xlu0 %3071
        %3075 = vset.pattern.permute.xlu0 0
        %3076 = vperm.xlu0 %3075, %v2990
        %v3077 = vpop.permute.xlu0 %3076
        %3080 = vset.pattern.permute.xlu0 0
        %3081 = vperm.xlu0 %3080, %v2991
        %v3082 = vpop.permute.xlu0 %3081
        %3085 = vset.pattern.permute.xlu0 0
        %3086 = vperm.xlu0 %3085, %v2992
        %v3087 = vpop.permute.xlu0 %3086
        %3090 = vset.pattern.permute.xlu0 0
        %3091 = vperm.xlu0 %3090, %v2993
        %v3092 = vpop.permute.xlu0 %3091
        %3095 = vset.pattern.permute.xlu0 0
        %3096 = vperm.xlu0 %3095, %v2994
        %v3097 = vpop.permute.xlu0 %3096
        %3100 = vset.pattern.permute.xlu0 0
        %3101 = vperm.xlu0 %3100, %v2995
        %v3102 = vpop.permute.xlu0 %3101
        %3105 = vset.pattern.permute.xlu0 0
        %3106 = vperm.xlu0 %3105, %v2996
        %v3107 = vpop.permute.xlu0 %3106
        %3110 = vset.pattern.permute.xlu0 0
        %3111 = vperm.xlu0 %3110, %v2997
        %v3112 = vpop.permute.xlu0 %3111
        %3115 = vset.pattern.permute.xlu0 0
        %3116 = vperm.xlu0 %3115, %v2998
        %v3117 = vpop.permute.xlu0 %3116
        %3120 = vset.pattern.permute.xlu0 0
        %3121 = vperm.xlu0 %3120, %v2999
        %v3122 = vpop.permute.xlu0 %3121
        %3125 = vset.pattern.permute.xlu0 0
        %3126 = vperm.xlu0 %3125, %v3000
        %v3127 = vpop.permute.xlu0 %3126
        %v3129 = vsub.f32 %v2921, %v3052
        %v3130 = vsub.f32 %v2922, %v3057
        %v3131 = vsub.f32 %v2923, %v3062
        %v3132 = vsub.f32 %v2924, %v3067
        %v3133 = vsub.f32 %v2925, %v3072
        %v3134 = vsub.f32 %v2926, %v3077
        %v3135 = vsub.f32 %v2927, %v3082
        %v3136 = vsub.f32 %v2928, %v3087
        %v3137 = vsub.f32 %v2929, %v3092
        %v3138 = vsub.f32 %v2930, %v3097
        %v3139 = vsub.f32 %v2931, %v3102
        %v3140 = vsub.f32 %v2932, %v3107
        %v3141 = vsub.f32 %v2933, %v3112
        %v3142 = vsub.f32 %v2934, %v3117
        %v3143 = vsub.f32 %v2935, %v3122
        %v3144 = vsub.f32 %v2936, %v3127
        %v3145 = vmul.f32 %v3129, 1.442695
        %v3146 = vpow.pop %v3145
        %v3147 = vmul.f32 %v3130, 1.442695
        %v3148 = vpow.pop %v3147
        %v3149 = vmul.f32 %v3131, 1.442695
        %v3150 = vpow.pop %v3149
        %v3151 = vmul.f32 %v3132, 1.442695
        %v3152 = vpow.pop %v3151
        %v3153 = vmul.f32 %v3133, 1.442695
        %v3154 = vpow.pop %v3153
        %v3155 = vmul.f32 %v3134, 1.442695
        %v3156 = vpow.pop %v3155
        %v3157 = vmul.f32 %v3135, 1.442695
        %v3158 = vpow.pop %v3157
        %v3159 = vmul.f32 %v3136, 1.442695
        %v3160 = vpow.pop %v3159
        %v3161 = vmul.f32 %v3137, 1.442695
        %v3162 = vpow.pop %v3161
        %v3163 = vmul.f32 %v3138, 1.442695
        %v3164 = vpow.pop %v3163
        %v3165 = vmul.f32 %v3139, 1.442695
        %v3166 = vpow.pop %v3165
        %v3167 = vmul.f32 %v3140, 1.442695
        %v3168 = vpow.pop %v3167
        %v3169 = vmul.f32 %v3141, 1.442695
        %v3170 = vpow.pop %v3169
        %v3171 = vmul.f32 %v3142, 1.442695
        %v3172 = vpow.pop %v3171
        %v3173 = vmul.f32 %v3143, 1.442695
        %v3174 = vpow.pop %v3173
        %v3175 = vmul.f32 %v3144, 1.442695
        %v3176 = vpow.pop %v3175
        %v3177 = vld [vmem:[#allocation6] sm:$0xff]
        %v3178 = vld [vmem:[#allocation6 + $0x8] sm:$0xff]
        %v3179 = vld [vmem:[#allocation6 + $0x10] sm:$0xff]
        %v3180 = vld [vmem:[#allocation6 + $0x18] sm:$0xff]
        %v3181 = vld [vmem:[#allocation6 + $0x20] sm:$0xff]
        %v3182 = vld [vmem:[#allocation6 + $0x28] sm:$0xff]
        %v3183 = vld [vmem:[#allocation6 + $0x30] sm:$0xff]
        %v3184 = vld [vmem:[#allocation6 + $0x38] sm:$0xff]
        %v3185 = vld [vmem:[#allocation6 + $0x40] sm:$0xff]
        %v3186 = vld [vmem:[#allocation6 + $0x48] sm:$0xff]
        %v3187 = vld [vmem:[#allocation6 + $0x50] sm:$0xff]
        %v3188 = vld [vmem:[#allocation6 + $0x58] sm:$0xff]
        %v3189 = vld [vmem:[#allocation6 + $0x60] sm:$0xff]
        %v3190 = vld [vmem:[#allocation6 + $0x68] sm:$0xff]
        %v3191 = vld [vmem:[#allocation6 + $0x70] sm:$0xff]
        %v3192 = vld [vmem:[#allocation6 + $0x78] sm:$0xff]
        %v3193 = vmul.f32 %v3018, %v3177
        %v3194 = vmul.f32 %v3020, %v3178
        %v3195 = vmul.f32 %v3022, %v3179
        %v3196 = vmul.f32 %v3024, %v3180
        %v3197 = vmul.f32 %v3026, %v3181
        %v3198 = vmul.f32 %v3028, %v3182
        %v3199 = vmul.f32 %v3030, %v3183
        %v3200 = vmul.f32 %v3032, %v3184
        %v3201 = vmul.f32 %v3034, %v3185
        %v3202 = vmul.f32 %v3036, %v3186
        %v3203 = vmul.f32 %v3038, %v3187
        %v3204 = vmul.f32 %v3040, %v3188
        %v3205 = vmul.f32 %v3042, %v3189
        %v3206 = vmul.f32 %v3044, %v3190
        %v3207 = vmul.f32 %v3046, %v3191
        %v3208 = vmul.f32 %v3048, %v3192
        %3209 = vadd.xlane.f32.xlu0 %v3146
        %v3210 = vpop.xlane.xlu0 %3209
        %3211 = vadd.xlane.f32.xlu0 %v3148
        %v3212 = vpop.xlane.xlu0 %3211
        %3213 = vadd.xlane.f32.xlu0 %v3150
        %v3214 = vpop.xlane.xlu0 %3213
        %3215 = vadd.xlane.f32.xlu0 %v3152
        %v3216 = vpop.xlane.xlu0 %3215
        %3217 = vadd.xlane.f32.xlu0 %v3154
        %v3218 = vpop.xlane.xlu0 %3217
        %3219 = vadd.xlane.f32.xlu0 %v3156
        %v3220 = vpop.xlane.xlu0 %3219
        %3221 = vadd.xlane.f32.xlu0 %v3158
        %v3222 = vpop.xlane.xlu0 %3221
        %3223 = vadd.xlane.f32.xlu0 %v3160
        %v3224 = vpop.xlane.xlu0 %3223
        %3225 = vadd.xlane.f32.xlu0 %v3162
        %v3226 = vpop.xlane.xlu0 %3225
        %3227 = vadd.xlane.f32.xlu0 %v3164
        %v3228 = vpop.xlane.xlu0 %3227
        %3229 = vadd.xlane.f32.xlu0 %v3166
        %v3230 = vpop.xlane.xlu0 %3229
        %3231 = vadd.xlane.f32.xlu0 %v3168
        %v3232 = vpop.xlane.xlu0 %3231
        %3233 = vadd.xlane.f32.xlu0 %v3170
        %v3234 = vpop.xlane.xlu0 %3233
        %3235 = vadd.xlane.f32.xlu0 %v3172
        %v3236 = vpop.xlane.xlu0 %3235
        %3237 = vadd.xlane.f32.xlu0 %v3174
        %v3238 = vpop.xlane.xlu0 %3237
        %3239 = vadd.xlane.f32.xlu0 %v3176
        %v3240 = vpop.xlane.xlu0 %3239
        %v3241 = vadd.f32 %v3193, %v3210
        %v3242 = vadd.f32 %v3194, %v3212
        %v3243 = vadd.f32 %v3195, %v3214
        %v3244 = vadd.f32 %v3196, %v3216
        %v3245 = vadd.f32 %v3197, %v3218
        %v3246 = vadd.f32 %v3198, %v3220
        %v3247 = vadd.f32 %v3199, %v3222
        %v3248 = vadd.f32 %v3200, %v3224
        %v3249 = vadd.f32 %v3201, %v3226
        %v3250 = vadd.f32 %v3202, %v3228
        %v3251 = vadd.f32 %v3203, %v3230
        %v3252 = vadd.f32 %v3204, %v3232
        %v3253 = vadd.f32 %v3205, %v3234
        %v3254 = vadd.f32 %v3206, %v3236
        %v3255 = vadd.f32 %v3207, %v3238
        %v3256 = vadd.f32 %v3208, %v3240
        %3257 = vst.msk [vmem:[#allocation6] sm:$0xff] %vm1635, %v3241
        %3258 = vst.msk [vmem:[#allocation6 + $0x8] sm:$0xff] %vm1635, %v3242
        %3259 = vst.msk [vmem:[#allocation6 + $0x10] sm:$0xff] %vm1635, %v3243
        %3260 = vst.msk [vmem:[#allocation6 + $0x18] sm:$0xff] %vm1635, %v3244
        %3261 = vst.msk [vmem:[#allocation6 + $0x20] sm:$0xff] %vm1635, %v3245
        %3262 = vst.msk [vmem:[#allocation6 + $0x28] sm:$0xff] %vm1635, %v3246
        %3263 = vst.msk [vmem:[#allocation6 + $0x30] sm:$0xff] %vm1635, %v3247
        %3264 = vst.msk [vmem:[#allocation6 + $0x38] sm:$0xff] %vm1635, %v3248
        %3265 = vst.msk [vmem:[#allocation6 + $0x40] sm:$0xff] %vm1635, %v3249
        %3266 = vst.msk [vmem:[#allocation6 + $0x48] sm:$0xff] %vm1635, %v3250
        %3267 = vst.msk [vmem:[#allocation6 + $0x50] sm:$0xff] %vm1635, %v3251
        %3268 = vst.msk [vmem:[#allocation6 + $0x58] sm:$0xff] %vm1635, %v3252
        %3269 = vst.msk [vmem:[#allocation6 + $0x60] sm:$0xff] %vm1635, %v3253
        %3270 = vst.msk [vmem:[#allocation6 + $0x68] sm:$0xff] %vm1635, %v3254
        %3271 = vst.msk [vmem:[#allocation6 + $0x70] sm:$0xff] %vm1635, %v3255
        %3272 = vst.msk [vmem:[#allocation6 + $0x78] sm:$0xff] %vm1635, %v3256
        %v3273 = vld [vmem:[#allocation7] sm:$0xff]
        %v3274 = vld [vmem:[#allocation7 + $0x8] sm:$0xff]
        %v3275 = vld [vmem:[#allocation7 + $0x10] sm:$0xff]
        %v3276 = vld [vmem:[#allocation7 + $0x18] sm:$0xff]
        %v3277 = vld [vmem:[#allocation7 + $0x20] sm:$0xff]
        %v3278 = vld [vmem:[#allocation7 + $0x28] sm:$0xff]
        %v3279 = vld [vmem:[#allocation7 + $0x30] sm:$0xff]
        %v3280 = vld [vmem:[#allocation7 + $0x38] sm:$0xff]
        %v3281 = vld [vmem:[#allocation7 + $0x40] sm:$0xff]
        %v3282 = vld [vmem:[#allocation7 + $0x48] sm:$0xff]
        %v3283 = vld [vmem:[#allocation7 + $0x50] sm:$0xff]
        %v3284 = vld [vmem:[#allocation7 + $0x58] sm:$0xff]
        %v3285 = vld [vmem:[#allocation7 + $0x60] sm:$0xff]
        %v3286 = vld [vmem:[#allocation7 + $0x68] sm:$0xff]
        %v3287 = vld [vmem:[#allocation7 + $0x70] sm:$0xff]
        %v3288 = vld [vmem:[#allocation7 + $0x78] sm:$0xff]
        %3290 = vset.pattern.permute.xlu0 0
        %3291 = vperm.xlu0 %3290, %v3018
        %v3292 = vpop.permute.xlu0 %3291
        %3295 = vset.pattern.permute.xlu0 0
        %3296 = vperm.xlu0 %3295, %v3020
        %v3297 = vpop.permute.xlu0 %3296
        %3300 = vset.pattern.permute.xlu0 0
        %3301 = vperm.xlu0 %3300, %v3022
        %v3302 = vpop.permute.xlu0 %3301
        %3305 = vset.pattern.permute.xlu0 0
        %3306 = vperm.xlu0 %3305, %v3024
        %v3307 = vpop.permute.xlu0 %3306
        %3310 = vset.pattern.permute.xlu0 0
        %3311 = vperm.xlu0 %3310, %v3026
        %v3312 = vpop.permute.xlu0 %3311
        %3315 = vset.pattern.permute.xlu0 0
        %3316 = vperm.xlu0 %3315, %v3028
        %v3317 = vpop.permute.xlu0 %3316
        %3320 = vset.pattern.permute.xlu0 0
        %3321 = vperm.xlu0 %3320, %v3030
        %v3322 = vpop.permute.xlu0 %3321
        %3325 = vset.pattern.permute.xlu0 0
        %3326 = vperm.xlu0 %3325, %v3032
        %v3327 = vpop.permute.xlu0 %3326
        %3330 = vset.pattern.permute.xlu0 0
        %3331 = vperm.xlu0 %3330, %v3034
        %v3332 = vpop.permute.xlu0 %3331
        %3335 = vset.pattern.permute.xlu0 0
        %3336 = vperm.xlu0 %3335, %v3036
        %v3337 = vpop.permute.xlu0 %3336
        %3340 = vset.pattern.permute.xlu0 0
        %3341 = vperm.xlu0 %3340, %v3038
        %v3342 = vpop.permute.xlu0 %3341
        %3345 = vset.pattern.permute.xlu0 0
        %3346 = vperm.xlu0 %3345, %v3040
        %v3347 = vpop.permute.xlu0 %3346
        %3350 = vset.pattern.permute.xlu0 0
        %3351 = vperm.xlu0 %3350, %v3042
        %v3352 = vpop.permute.xlu0 %3351
        %3355 = vset.pattern.permute.xlu0 0
        %3356 = vperm.xlu0 %3355, %v3044
        %v3357 = vpop.permute.xlu0 %3356
        %3360 = vset.pattern.permute.xlu0 0
        %3361 = vperm.xlu0 %3360, %v3046
        %v3362 = vpop.permute.xlu0 %3361
        %3365 = vset.pattern.permute.xlu0 0
        %3366 = vperm.xlu0 %3365, %v3048
        %v3367 = vpop.permute.xlu0 %3366
        %v3369 = vmul.f32 %v3292, %v3273
        %v3370 = vmul.f32 %v3297, %v3274
        %v3371 = vmul.f32 %v3302, %v3275
        %v3372 = vmul.f32 %v3307, %v3276
        %v3373 = vmul.f32 %v3312, %v3277
        %v3374 = vmul.f32 %v3317, %v3278
        %v3375 = vmul.f32 %v3322, %v3279
        %v3376 = vmul.f32 %v3327, %v3280
        %v3377 = vmul.f32 %v3332, %v3281
        %v3378 = vmul.f32 %v3337, %v3282
        %v3379 = vmul.f32 %v3342, %v3283
        %v3380 = vmul.f32 %v3347, %v3284
        %v3381 = vmul.f32 %v3352, %v3285
        %v3382 = vmul.f32 %v3357, %v3286
        %v3383 = vmul.f32 %v3362, %v3287
        %v3384 = vmul.f32 %v3367, %v3288
        %v3385 = vpack.c.bf16 %v3148, %v3146
        %v3386 = vpack.c.bf16 %v3152, %v3150
        %v3387 = vpack.c.bf16 %v3156, %v3154
        %v3388 = vpack.c.bf16 %v3160, %v3158
        %v3389 = vpack.c.bf16 %v3164, %v3162
        %v3390 = vpack.c.bf16 %v3168, %v3166
        %v3391 = vpack.c.bf16 %v3172, %v3170
        %v3392 = vpack.c.bf16 %v3176, %v3174
        %v3409 = vunpack.c.l.b16 %v2645
        %v3410 = vunpack.c.l.b16 %v2646
        %v3411 = vunpack.c.l.b16 %v2647
        %v3412 = vunpack.c.l.b16 %v2648
        %v3413 = vunpack.c.l.b16 %v2649
        %v3414 = vunpack.c.l.b16 %v2650
        %v3415 = vunpack.c.l.b16 %v2651
        %v3416 = vunpack.c.l.b16 %v2652
        %v3417 = vunpack.c.l.b16 %v2653
        %v3418 = vunpack.c.l.b16 %v2654
        %v3419 = vunpack.c.l.b16 %v2655
        %v3420 = vunpack.c.l.b16 %v2656
        %v3421 = vunpack.c.l.b16 %v2657
        %v3422 = vunpack.c.l.b16 %v2658
        %v3423 = vunpack.c.l.b16 %v2659
        %v3424 = vunpack.c.l.b16 %v2660
        %v3425 = vpack.c.b16 %v3410, %v3409
        %v3426 = vpack.c.b16 %v3412, %v3411
        %v3427 = vpack.c.b16 %v3414, %v3413
        %v3428 = vpack.c.b16 %v3416, %v3415
        %v3429 = vpack.c.b16 %v3418, %v3417
        %v3430 = vpack.c.b16 %v3420, %v3419
        %v3431 = vpack.c.b16 %v3422, %v3421
        %v3432 = vpack.c.b16 %v3424, %v3423
        %3441 = vmatprep.subr.bf16.mxu0 0
        %3442 = vmatpush1.bf16.msra.mxu0 %v3432
        %3443 = vmatprep.subr.bf16.mxu0 0
        %3444 = vmatpush1.bf16.msra.mxu0 %v3431
        %3445 = vmatprep.subr.bf16.mxu0 0
        %3446 = vmatpush1.bf16.msra.mxu0 %v3430
        %3447 = vmatprep.subr.bf16.mxu0 0
        %3448 = vmatpush1.bf16.msra.mxu0 %v3429
        %3449 = vmatprep.subr.bf16.mxu0 0
        %3450 = vmatpush1.bf16.msra.mxu0 %v3428
        %3451 = vmatprep.subr.bf16.mxu0 0
        %3452 = vmatpush1.bf16.msra.mxu0 %v3427
        %3453 = vmatprep.subr.bf16.mxu0 0
        %3454 = vmatpush1.bf16.msra.mxu0 %v3426
        %3455 = vmatprep.subr.bf16.mxu0 0
        %3456 = vmatpush1.bf16.msra.mxu0 %v3425
        %3457 = vmatprep.subr.bf16.mxu0 0
        %3458 = vmatpush2.bf16.msra.mxu0 0
        %3459 = vmatprep.subr.bf16.mxu0 0
        %3460 = vmatpush2.bf16.msra.mxu0 0
        %3461 = vmatprep.subr.bf16.mxu0 0
        %3462 = vmatpush2.bf16.msra.mxu0 0
        %3463 = vmatprep.subr.bf16.mxu0 0
        %3464 = vmatpush2.bf16.msra.mxu0 0
        %3465 = vmatprep.subr.bf16.mxu0 0
        %3466 = vmatpush2.bf16.msra.mxu0 0
        %3467 = vmatprep.subr.bf16.mxu0 0
        %3468 = vmatpush2.bf16.msra.mxu0 0
        %3469 = vmatprep.subr.bf16.mxu0 0
        %3470 = vmatpush2.bf16.msra.mxu0 0
        %3471 = vmatprep.subr.bf16.mxu0 0
        %3472 = vmatpush2.bf16.msra.mxu0 0
        %3473 = vmatprep.mubr.bf16.mxu0 0
        %3474 = vmatmul.mubr.bf16.gmra.mxu0 %v3385
        %v3475 = vpop.f32.mrf.mxu0
        %v3476 = vadd.f32 0.0, %v3475
        %v3477 = vpop.f32.mrf.mxu0
        %v3478 = vpop.f32.mrf.mxu0
        %v3479 = vadd.f32 0.0, %v3478
        %v3480 = vpop.f32.mrf.mxu0
        %3481 = vmatprep.mubr.bf16.mxu0 0
        %3482 = vmatmul.mubr.bf16.gmra.mxu0 %v3386
        %v3483 = vpop.f32.mrf.mxu0
        %v3484 = vadd.f32 0.0, %v3483
        %v3485 = vpop.f32.mrf.mxu0
        %v3486 = vpop.f32.mrf.mxu0
        %v3487 = vadd.f32 0.0, %v3486
        %v3488 = vpop.f32.mrf.mxu0
        %3489 = vmatprep.mubr.bf16.mxu0 0
        %3490 = vmatmul.mubr.bf16.gmra.mxu0 %v3387
        %v3491 = vpop.f32.mrf.mxu0
        %v3492 = vadd.f32 0.0, %v3491
        %v3493 = vpop.f32.mrf.mxu0
        %v3494 = vpop.f32.mrf.mxu0
        %v3495 = vadd.f32 0.0, %v3494
        %v3496 = vpop.f32.mrf.mxu0
        %3497 = vmatprep.mubr.bf16.mxu0 0
        %3498 = vmatmul.mubr.bf16.gmra.mxu0 %v3388
        %v3499 = vpop.f32.mrf.mxu0
        %v3500 = vadd.f32 0.0, %v3499
        %v3501 = vpop.f32.mrf.mxu0
        %v3502 = vpop.f32.mrf.mxu0
        %v3503 = vadd.f32 0.0, %v3502
        %v3504 = vpop.f32.mrf.mxu0
        %3505 = vmatprep.mubr.bf16.mxu0 0
        %3506 = vmatmul.mubr.bf16.gmra.mxu0 %v3389
        %v3507 = vpop.f32.mrf.mxu0
        %v3508 = vadd.f32 0.0, %v3507
        %v3509 = vpop.f32.mrf.mxu0
        %v3510 = vpop.f32.mrf.mxu0
        %v3511 = vadd.f32 0.0, %v3510
        %v3512 = vpop.f32.mrf.mxu0
        %3513 = vmatprep.mubr.bf16.mxu0 0
        %3514 = vmatmul.mubr.bf16.gmra.mxu0 %v3390
        %v3515 = vpop.f32.mrf.mxu0
        %v3516 = vadd.f32 0.0, %v3515
        %v3517 = vpop.f32.mrf.mxu0
        %v3518 = vpop.f32.mrf.mxu0
        %v3519 = vadd.f32 0.0, %v3518
        %v3520 = vpop.f32.mrf.mxu0
        %3521 = vmatprep.mubr.bf16.mxu0 0
        %3522 = vmatmul.mubr.bf16.gmra.mxu0 %v3391
        %v3523 = vpop.f32.mrf.mxu0
        %v3524 = vadd.f32 0.0, %v3523
        %v3525 = vpop.f32.mrf.mxu0
        %v3526 = vpop.f32.mrf.mxu0
        %v3527 = vadd.f32 0.0, %v3526
        %v3528 = vpop.f32.mrf.mxu0
        %3529 = vmatprep.mubr.bf16.mxu0 0
        %3530 = vmatmul.mubr.bf16.gmra.mxu0 %v3392
        %v3531 = vpop.f32.mrf.mxu0
        %v3532 = vadd.f32 0.0, %v3531
        %v3533 = vpop.f32.mrf.mxu0
        %v3534 = vpop.f32.mrf.mxu0
        %v3535 = vadd.f32 0.0, %v3534
        %v3536 = vpop.f32.mrf.mxu0
        %3537 = vdwg.mxu0
        %v3538 = vadd.f32 %v3369, %v3476
        %v3539 = vadd.f32 %v3370, %v3479
        %v3540 = vadd.f32 %v3371, %v3484
        %v3541 = vadd.f32 %v3372, %v3487
        %v3542 = vadd.f32 %v3373, %v3492
        %v3543 = vadd.f32 %v3374, %v3495
        %v3544 = vadd.f32 %v3375, %v3500
        %v3545 = vadd.f32 %v3376, %v3503
        %v3546 = vadd.f32 %v3377, %v3508
        %v3547 = vadd.f32 %v3378, %v3511
        %v3548 = vadd.f32 %v3379, %v3516
        %v3549 = vadd.f32 %v3380, %v3519
        %v3550 = vadd.f32 %v3381, %v3524
        %v3551 = vadd.f32 %v3382, %v3527
        %v3552 = vadd.f32 %v3383, %v3532
        %v3553 = vadd.f32 %v3384, %v3535
        %3554 = vst.msk [vmem:[#allocation7] sm:$0xff] %vm1668, %v3538
        %3555 = vst.msk [vmem:[#allocation7 + $0x8] sm:$0xff] %vm1668, %v3539
        %3556 = vst.msk [vmem:[#allocation7 + $0x10] sm:$0xff] %vm1668, %v3540
        %3557 = vst.msk [vmem:[#allocation7 + $0x18] sm:$0xff] %vm1668, %v3541
        %3558 = vst.msk [vmem:[#allocation7 + $0x20] sm:$0xff] %vm1668, %v3542
        %3559 = vst.msk [vmem:[#allocation7 + $0x28] sm:$0xff] %vm1668, %v3543
        %3560 = vst.msk [vmem:[#allocation7 + $0x30] sm:$0xff] %vm1668, %v3544
        %3561 = vst.msk [vmem:[#allocation7 + $0x38] sm:$0xff] %vm1668, %v3545
        %3562 = vst.msk [vmem:[#allocation7 + $0x40] sm:$0xff] %vm1668, %v3546
        %3563 = vst.msk [vmem:[#allocation7 + $0x48] sm:$0xff] %vm1668, %v3547
        %3564 = vst.msk [vmem:[#allocation7 + $0x50] sm:$0xff] %vm1668, %v3548
        %3565 = vst.msk [vmem:[#allocation7 + $0x58] sm:$0xff] %vm1668, %v3549
        %3566 = vst.msk [vmem:[#allocation7 + $0x60] sm:$0xff] %vm1668, %v3550
        %3567 = vst.msk [vmem:[#allocation7 + $0x68] sm:$0xff] %vm1668, %v3551
        %3568 = vst.msk [vmem:[#allocation7 + $0x70] sm:$0xff] %vm1668, %v3552
        %3569 = vst.msk [vmem:[#allocation7 + $0x78] sm:$0xff] %vm1668, %v3553
        %3570 = vst.msk [vmem:[#allocation5] sm:$0xff] %vm1635, %v2985
        %3571 = vst.msk [vmem:[#allocation5 + $0x8] sm:$0xff] %vm1635, %v2986
        %3572 = vst.msk [vmem:[#allocation5 + $0x10] sm:$0xff] %vm1635, %v2987
        %3573 = vst.msk [vmem:[#allocation5 + $0x18] sm:$0xff] %vm1635, %v2988
        %3574 = vst.msk [vmem:[#allocation5 + $0x20] sm:$0xff] %vm1635, %v2989
        %3575 = vst.msk [vmem:[#allocation5 + $0x28] sm:$0xff] %vm1635, %v2990
        %3576 = vst.msk [vmem:[#allocation5 + $0x30] sm:$0xff] %vm1635, %v2991
        %3577 = vst.msk [vmem:[#allocation5 + $0x38] sm:$0xff] %vm1635, %v2992
        %3578 = vst.msk [vmem:[#allocation5 + $0x40] sm:$0xff] %vm1635, %v2993
        %3579 = vst.msk [vmem:[#allocation5 + $0x48] sm:$0xff] %vm1635, %v2994
        %3580 = vst.msk [vmem:[#allocation5 + $0x50] sm:$0xff] %vm1635, %v2995
        %3581 = vst.msk [vmem:[#allocation5 + $0x58] sm:$0xff] %vm1635, %v2996
        %3582 = vst.msk [vmem:[#allocation5 + $0x60] sm:$0xff] %vm1635, %v2997
        %3583 = vst.msk [vmem:[#allocation5 + $0x68] sm:$0xff] %vm1635, %v2998
        %3584 = vst.msk [vmem:[#allocation5 + $0x70] sm:$0xff] %vm1635, %v2999
        %3585 = vst.msk [vmem:[#allocation5 + $0x78] sm:$0xff] %vm1635, %v3000
        %v3586 = vld [vmem:[#allocation7] sm:$0xff]
        %v3587 = vld [vmem:[#allocation7 + $0x8] sm:$0xff]
        %v3588 = vld [vmem:[#allocation7 + $0x10] sm:$0xff]
        %v3589 = vld [vmem:[#allocation7 + $0x18] sm:$0xff]
        %v3590 = vld [vmem:[#allocation7 + $0x20] sm:$0xff]
        %v3591 = vld [vmem:[#allocation7 + $0x28] sm:$0xff]
        %v3592 = vld [vmem:[#allocation7 + $0x30] sm:$0xff]
        %v3593 = vld [vmem:[#allocation7 + $0x38] sm:$0xff]
        %v3594 = vld [vmem:[#allocation7 + $0x40] sm:$0xff]
        %v3595 = vld [vmem:[#allocation7 + $0x48] sm:$0xff]
        %v3596 = vld [vmem:[#allocation7 + $0x50] sm:$0xff]
        %v3597 = vld [vmem:[#allocation7 + $0x58] sm:$0xff]
        %v3598 = vld [vmem:[#allocation7 + $0x60] sm:$0xff]
        %v3599 = vld [vmem:[#allocation7 + $0x68] sm:$0xff]
        %v3600 = vld [vmem:[#allocation7 + $0x70] sm:$0xff]
        %v3601 = vld [vmem:[#allocation7 + $0x78] sm:$0xff]
        %v3602 = vld [vmem:[#allocation6] sm:$0xff]
        %v3603 = vld [vmem:[#allocation6 + $0x8] sm:$0xff]
        %v3604 = vld [vmem:[#allocation6 + $0x10] sm:$0xff]
        %v3605 = vld [vmem:[#allocation6 + $0x18] sm:$0xff]
        %v3606 = vld [vmem:[#allocation6 + $0x20] sm:$0xff]
        %v3607 = vld [vmem:[#allocation6 + $0x28] sm:$0xff]
        %v3608 = vld [vmem:[#allocation6 + $0x30] sm:$0xff]
        %v3609 = vld [vmem:[#allocation6 + $0x38] sm:$0xff]
        %v3610 = vld [vmem:[#allocation6 + $0x40] sm:$0xff]
        %v3611 = vld [vmem:[#allocation6 + $0x48] sm:$0xff]
        %v3612 = vld [vmem:[#allocation6 + $0x50] sm:$0xff]
        %v3613 = vld [vmem:[#allocation6 + $0x58] sm:$0xff]
        %v3614 = vld [vmem:[#allocation6 + $0x60] sm:$0xff]
        %v3615 = vld [vmem:[#allocation6 + $0x68] sm:$0xff]
        %v3616 = vld [vmem:[#allocation6 + $0x70] sm:$0xff]
        %v3617 = vld [vmem:[#allocation6 + $0x78] sm:$0xff]
        %v3618 = vrcp.pop %v3602
        %v3619 = vrcp.pop %v3603
        %v3620 = vrcp.pop %v3604
        %v3621 = vrcp.pop %v3605
        %v3622 = vrcp.pop %v3606
        %v3623 = vrcp.pop %v3607
        %v3624 = vrcp.pop %v3608
        %v3625 = vrcp.pop %v3609
        %v3626 = vrcp.pop %v3610
        %v3627 = vrcp.pop %v3611
        %v3628 = vrcp.pop %v3612
        %v3629 = vrcp.pop %v3613
        %v3630 = vrcp.pop %v3614
        %v3631 = vrcp.pop %v3615
        %v3632 = vrcp.pop %v3616
        %v3633 = vrcp.pop %v3617
        %3635 = vset.pattern.permute.xlu0 0
        %3636 = vperm.xlu0 %3635, %v3618
        %v3637 = vpop.permute.xlu0 %3636
        %3640 = vset.pattern.permute.xlu0 0
        %3641 = vperm.xlu0 %3640, %v3619
        %v3642 = vpop.permute.xlu0 %3641
        %3645 = vset.pattern.permute.xlu0 0
        %3646 = vperm.xlu0 %3645, %v3620
        %v3647 = vpop.permute.xlu0 %3646
        %3650 = vset.pattern.permute.xlu0 0
        %3651 = vperm.xlu0 %3650, %v3621
        %v3652 = vpop.permute.xlu0 %3651
        %3655 = vset.pattern.permute.xlu0 0
        %3656 = vperm.xlu0 %3655, %v3622
        %v3657 = vpop.permute.xlu0 %3656
        %3660 = vset.pattern.permute.xlu0 0
        %3661 = vperm.xlu0 %3660, %v3623
        %v3662 = vpop.permute.xlu0 %3661
        %3665 = vset.pattern.permute.xlu0 0
        %3666 = vperm.xlu0 %3665, %v3624
        %v3667 = vpop.permute.xlu0 %3666
        %3670 = vset.pattern.permute.xlu0 0
        %3671 = vperm.xlu0 %3670, %v3625
        %v3672 = vpop.permute.xlu0 %3671
        %3675 = vset.pattern.permute.xlu0 0
        %3676 = vperm.xlu0 %3675, %v3626
        %v3677 = vpop.permute.xlu0 %3676
        %3680 = vset.pattern.permute.xlu0 0
        %3681 = vperm.xlu0 %3680, %v3627
        %v3682 = vpop.permute.xlu0 %3681
        %3685 = vset.pattern.permute.xlu0 0
        %3686 = vperm.xlu0 %3685, %v3628
        %v3687 = vpop.permute.xlu0 %3686
        %3690 = vset.pattern.permute.xlu0 0
        %3691 = vperm.xlu0 %3690, %v3629
        %v3692 = vpop.permute.xlu0 %3691
        %3695 = vset.pattern.permute.xlu0 0
        %3696 = vperm.xlu0 %3695, %v3630
        %v3697 = vpop.permute.xlu0 %3696
        %3700 = vset.pattern.permute.xlu0 0
        %3701 = vperm.xlu0 %3700, %v3631
        %v3702 = vpop.permute.xlu0 %3701
        %3705 = vset.pattern.permute.xlu0 0
        %3706 = vperm.xlu0 %3705, %v3632
        %v3707 = vpop.permute.xlu0 %3706
        %3710 = vset.pattern.permute.xlu0 0
        %3711 = vperm.xlu0 %3710, %v3633
        %v3712 = vpop.permute.xlu0 %3711
        %v3714 = vmul.f32 %v3586, %v3637
        %v3715 = vmul.f32 %v3587, %v3642
        %v3716 = vmul.f32 %v3588, %v3647
        %v3717 = vmul.f32 %v3589, %v3652
        %v3718 = vmul.f32 %v3590, %v3657
        %v3719 = vmul.f32 %v3591, %v3662
        %v3720 = vmul.f32 %v3592, %v3667
        %v3721 = vmul.f32 %v3593, %v3672
        %v3722 = vmul.f32 %v3594, %v3677
        %v3723 = vmul.f32 %v3595, %v3682
        %v3724 = vmul.f32 %v3596, %v3687
        %v3725 = vmul.f32 %v3597, %v3692
        %v3726 = vmul.f32 %v3598, %v3697
        %v3727 = vmul.f32 %v3599, %v3702
        %v3728 = vmul.f32 %v3600, %v3707
        %v3729 = vmul.f32 %v3601, %v3712
        %3730 = vst.msk [vmem:[%s185] sm:$0xff] %vm1668, %v3714
        %3731 = vst.msk [vmem:[%s185 + $0x8] sm:$0xff] %vm1668, %v3715
        %3732 = vst.msk [vmem:[%s185 + $0x10] sm:$0xff] %vm1668, %v3716
        %3733 = vst.msk [vmem:[%s185 + $0x18] sm:$0xff] %vm1668, %v3717
        %3734 = vst.msk [vmem:[%s185 + $0x20] sm:$0xff] %vm1668, %v3718
        %3735 = vst.msk [vmem:[%s185 + $0x28] sm:$0xff] %vm1668, %v3719
        %3736 = vst.msk [vmem:[%s185 + $0x30] sm:$0xff] %vm1668, %v3720
        %3737 = vst.msk [vmem:[%s185 + $0x38] sm:$0xff] %vm1668, %v3721
        %3738 = vst.msk [vmem:[%s185 + $0x40] sm:$0xff] %vm1668, %v3722
        %3739 = vst.msk [vmem:[%s185 + $0x48] sm:$0xff] %vm1668, %v3723
        %3740 = vst.msk [vmem:[%s185 + $0x50] sm:$0xff] %vm1668, %v3724
        %3741 = vst.msk [vmem:[%s185 + $0x58] sm:$0xff] %vm1668, %v3725
        %3742 = vst.msk [vmem:[%s185 + $0x60] sm:$0xff] %vm1668, %v3726
        %3743 = vst.msk [vmem:[%s185 + $0x68] sm:$0xff] %vm1668, %v3727
        %3744 = vst.msk [vmem:[%s185 + $0x70] sm:$0xff] %vm1668, %v3728
        %3745 = vst.msk [vmem:[%s185 + $0x78] sm:$0xff] %vm1668, %v3729
        %s3746 = smul.u32 16, %s21
        %p3747 = scmp.lt.s32.totalorder %s20, 1
        %s3748 = scalar_select %p3747, %s20, 1
        %p3749 = scmp.lt.s32.totalorder %s3746, 31
        %s3750 = scalar_select %p3749, %s3746, 31
        %s3751 = smul.addr %s3748, 32
        %s3752 = sadd.s32 %s3750, %s3751
        %s3753 = smul.addr %s3752, 8
        %s3754 = scalar_lea.vmem %s2, %s3753
        // Predicated region
        $region44: #{tpu_custom_call.1} parent=27 // pred_check
          %p3755 = pneg %p95
        $region45: #{tpu_custom_call.1} parent=27 // pred_check_branch
          %3757 = sbr.rel (%p3755) target = $region47
        $region46: #{tpu_custom_call.1} parent=27 // pred_region
          %s3758 = smul.u32 16, %s21
        $region47: #{tpu_custom_call.1} parent=27 // pred_fallthru
          _
      $region28: #{tpu_custom_call.1} parent=5 // pred_fallthru
        _
      %p3759 = scmp.le.s32.totalorder 2, %s11
      // Predicated region
      $region48: #{tpu_custom_call.1} parent=5 // pred_check
        %p3760 = pneg %p3759
      $region49: #{tpu_custom_call.1} parent=5 // pred_check_branch
        %3762 = sbr.rel (%p3760) target = $region51
      $region50: #{tpu_custom_call.1} parent=5 // pred_region
        %s3763 = ssub.s32 %s11, 2
        // Predicated region
        $region52: #{tpu_custom_call.1} parent=50 // pred_check
          %p3764 = pneg %p101
        $region53: #{tpu_custom_call.1} parent=50 // pred_check_branch
          %3766 = sbr.rel (%p3764) target = $region55
        $region54: #{tpu_custom_call.1} parent=50 // pred_region
          %s3767 = smul.u32 16, %s23
          %p3768 = scmp.lt.s32.totalorder %s22, 1
          %s3769 = scalar_select %p3768, %s22, 1
          %p3770 = scmp.lt.s32.totalorder %s3767, 31
          %s3771 = scalar_select %p3770, %s3767, 31
          %s3772 = smul.addr %s3769, 32
          %s3773 = sadd.s32 %s3771, %s3772
          %s3774 = smul.addr %s3773, 8
          %s3775 = scalar_lea.vmem %s2, %s3774
        $region55: #{tpu_custom_call.1} parent=50 // pred_fallthru
          _
      $region51: #{tpu_custom_call.1} parent=5 // pred_fallthru
        _
    $region6: #{tpu_custom_call.1} parent=1 // loop_footer
      %s15 = sadd.s32 1, %s11
    $region7: #{tpu_custom_call.1} parent=1 // loop_footer_branch
      %10 = sbr.rel target = $region3
    $region8: #{tpu_custom_call.1} parent=1 // loop_exit
      _
    %3776 = vsyncpa [#allocation9], 1
    %s3777 = scalar_lea.sflag [#allocation9], 1
    %3778 = vsyncpa %s3777, 1

</llo_original>
